<compile_context>
chip_gen: v7x
topology: tpu7x:2x2x1
jax: 0.10.0
libtpu: 0.0.40
codegen_flags: <defaults>
</compile_context>

<pallas_src>
import functools

import jax
import jax.numpy as jnp
from jax.experimental import pallas as pl
from jax.experimental.pallas import tpu as pltpu

EPS = 1e-5
NEG_SLOPE = 0.01     # torch.nn.LeakyReLU default
LANES = 128          # output channel axes are zero-padded to the lane width
SUBLANES = 8         # input channel axes are zero-padded to the sublane width


def _round_up(x, m):
    return -(-x // m) * m


# ------------------------------------------------------------ kernel helpers
def _bn_lrelu(x, gamma, beta):
    """Training-mode BatchNorm over rows of (M, C), then LeakyReLU.

    Padded lanes stay exactly 0 because their gamma/beta padding is 0 and
    (x - mean) is 0 there (do not change the padding values of gamma/beta).
    """
    mean = jnp.mean(x, axis=0, keepdims=True)
    var = jnp.mean(jnp.square(x - mean), axis=0, keepdims=True)   # biased var
    y = (x - mean) * jax.lax.rsqrt(var + EPS) * gamma + beta
    return jnp.where(y >= 0, y, NEG_SLOPE * y)


def _zero_halo(pad_ref, hh, wh):
    """Zero only the 1-pixel halo border (4 thin slabs), not the whole buffer."""
    n, hp, wp, c = pad_ref.shape
    zrow = jnp.zeros((n, 1, wp, c), jnp.float32)
    pad_ref[:, 0:1, :, :] = zrow                    # top halo row
    pad_ref[:, hh + 1:hh + 2, :, :] = zrow          # bottom halo row
    zcol = jnp.zeros((n, hp, 1, c), jnp.float32)
    pad_ref[:, :, 0:1, :] = zcol                    # left halo column
    pad_ref[:, :, wh + 1:wh + 2, :] = zcol          # right halo column
    # Columns beyond wh+1 (sublane rounding) are never read -> left untouched.


def _conv3x3(pad_ref, w_ref, n, hh, wh, c):
    """3x3 'same' conv as a 9-tap matmul accumulation (no im2col concat).

    pad_ref: (n, hh+2, >=wh+2, c) zero-haloed input, w_ref: (9, c, LANES).
    Returns (n*hh*wh, LANES) f32.
    """
    m = n * hh * wh
    acc = None
    for t in range(9):
        dy, dx = divmod(t, 3)
        patch = pad_ref[:, dy:dy + hh, dx:dx + wh, :].reshape(m, c)
        contrib = jnp.dot(patch, w_ref[t], preferred_element_type=jnp.float32)
        acc = contrib if acc is None else acc + contrib
    return acc


# ----------------------------------------------------------- fused Down body
def _down_kernel(x_ref, w1_ref, w2_ref, pb_ref, o_ref, pad1_ref, pad2_ref,
                 *, n, hh, wh, cin_pad, cmid_pad):
    # x_ref: (4, n, hh, wh, cin_pad) -- the four 2x2-pool taps pre-split.
    # ---- fused 2x2 max pool: pure VPU max of four views --------------------
    pooled = jnp.maximum(jnp.maximum(x_ref[0], x_ref[1]),
                         jnp.maximum(x_ref[2], x_ref[3]))   # (n, hh, wh, cin_pad)

    pb = pb_ref[...]                                        # (8, LANES)
    b1, g1, be1 = pb[0:1], pb[1:2], pb[2:3]
    b2, g2, be2 = pb[3:4], pb[4:5], pb[5:6]

    # ---- conv1: halo lives in VMEM scratch; only the border is zeroed ------
    _zero_halo(pad1_ref, hh, wh)
    pad1_ref[:, 1:hh + 1, 1:wh + 1, :] = pooled
    y = _conv3x3(pad1_ref, w1_ref, n, hh, wh, cin_pad) + b1
    y = _bn_lrelu(y, g1, be1)                               # (m, LANES)

    # ---- conv2: only the real (sublane-padded) channels feed the contraction
    _zero_halo(pad2_ref, hh, wh)
    pad2_ref[:, 1:hh + 1, 1:wh + 1, :] = (
        y[:, :cmid_pad].reshape(n, hh, wh, cmid_pad))
    y = _conv3x3(pad2_ref, w2_ref, n, hh, wh, cmid_pad) + b2
    y = _bn_lrelu(y, g2, be2)                               # (m, LANES)

    # ---- lane-dense store (last dim == 128, no masked vst) ------------------
    o_ref[...] = y.reshape(n, hh, wh, LANES)


# -------------------------------------------------- one-time parameter prep
def prepare_down_params(params):
    """Pad / reshape weights once (hoisted out of the per-call wrapper)."""
    w1, w2 = params["w1"], params["w2"]                 # HWIO (3,3,Ci,Co)
    cin, cmid = w1.shape[2], w1.shape[3]
    cout = w2.shape[3]
    assert cmid <= LANES and cout <= LANES
    cin_pad = _round_up(cin, SUBLANES)
    cmid_pad = _round_up(cmid, SUBLANES)

    w1p = jnp.pad(w1, ((0, 0), (0, 0), (0, cin_pad - cin), (0, LANES - cmid)))
    w1p = w1p.reshape(9, cin_pad, LANES)                # tap t = dy*3+dx
    w2p = jnp.pad(w2, ((0, 0), (0, 0), (0, cmid_pad - cmid), (0, LANES - cout)))
    w2p = w2p.reshape(9, cmid_pad, LANES)

    def padc(v):
        return jnp.pad(v, (0, LANES - v.shape[0]))

    zero = jnp.zeros((LANES,), jnp.float32)
    pb = jnp.stack([padc(params["b1"]), padc(params["g1"]), padc(params["be1"]),
                    padc(params["b2"]), padc(params["g2"]), padc(params["be2"]),
                    zero, zero])                        # (8, LANES), sublane-aligned

    return {"w1": w1p, "w2": w2p, "pb": pb,
            "cin": cin, "cin_pad": cin_pad, "cmid_pad": cmid_pad, "cout": cout}


# --------------------------------------------------------------------- module
def down_pallas(x_nchw, prep):
    """Down(in_ch, out_ch).forward — NCHW in / NCHW out (PyTorch layout)."""
    n, cin, h, w = x_nchw.shape
    assert h % 2 == 0 and w % 2 == 0
    assert cin == prep["cin"]
    hh, wh = h // 2, w // 2
    cin_pad, cmid_pad, cout = prep["cin_pad"], prep["cmid_pad"], prep["cout"]

    # ---- glue: NCHW -> NHWC, pad cin to a sublane multiple, pre-split taps --
    x = jnp.transpose(x_nchw, (0, 2, 3, 1))                       # (n, h, w, c)
    if cin_pad > cin:
        x = jnp.pad(x, ((0, 0), (0, 0), (0, 0), (0, cin_pad - cin)))
    # x4[a*2+b, n, i, j, c] == x[n, 2*i+a, 2*j+b, c]
    x4 = (x.reshape(n, hh, 2, wh, 2, cin_pad)
            .transpose(2, 4, 0, 1, 3, 5)
            .reshape(4, n, hh, wh, cin_pad))

    wp = _round_up(wh + 2, SUBLANES)   # scratch W axis rounded to sublanes

    kern = functools.partial(_down_kernel, n=n, hh=hh, wh=wh,
                             cin_pad=cin_pad, cmid_pad=cmid_pad)
    # NOTE: BN reduces over the whole batch, so the fused kernel is a single
    # program (grid=(1,)).  With the de-padded w2 (37 KB) the exposed input
    # DMA is negligible, so no manual weight-prefetch overlap is needed.
    out = pl.pallas_call(
        kern,
        out_shape=jax.ShapeDtypeStruct((n, hh, wh, LANES), jnp.float32),
        grid=(1,),
        in_specs=[
            pl.BlockSpec((4, n, hh, wh, cin_pad), lambda i: (0, 0, 0, 0, 0)),
            pl.BlockSpec((9, cin_pad, LANES), lambda i: (0, 0, 0)),
            pl.BlockSpec((9, cmid_pad, LANES), lambda i: (0, 0, 0)),
            pl.BlockSpec((8, LANES), lambda i: (0, 0)),
        ],
        out_specs=pl.BlockSpec((n, hh, wh, LANES), lambda i: (0, 0, 0, 0)),
        scratch_shapes=[
            pltpu.VMEM((n, hh + 2, wp, cin_pad), jnp.float32),    # conv1 halo
            pltpu.VMEM((n, hh + 2, wp, cmid_pad), jnp.float32),   # conv2 halo
        ],
        compiler_params=pltpu.CompilerParams(
            dimension_semantics=("arbitrary",)),
    )(x4, prep["w1"], prep["w2"], prep["pb"])

    # If the consumer is another NHWC Pallas kernel, keep `out` as-is (padded
    # NHWC) instead of the slice + transpose below.
    out = out[:, :, :, :cout]                     # drop padded lanes (glue)
    return jnp.transpose(out, (0, 3, 1, 2))       # NHWC -> NCHW


# --------------------------------------------------------- pure-JAX reference
def down_reference(x_nchw, params):
    x = jnp.transpose(x_nchw, (0, 2, 3, 1))
    n, h, w, c = x.shape
    x = x.reshape(n, h // 2, 2, w // 2, 2, c).max(axis=(2, 4))

    def conv(x, wt, bs):
        y = jax.lax.conv_general_dilated(
            x, wt, window_strides=(1, 1), padding="SAME",
            dimension_numbers=("NHWC", "HWIO", "NHWC"))
        return y + bs

    def bn(x, g, b):
        m = x.mean(axis=(0, 1, 2), keepdims=True)
        v = jnp.square(x - m).mean(axis=(0, 1, 2), keepdims=True)
        return (x - m) * jax.lax.rsqrt(v + EPS) * g + b

    def lrelu(x):
        return jnp.where(x >= 0, x, NEG_SLOPE * x)

    x = lrelu(bn(conv(x, params["w1"], params["b1"]), params["g1"], params["be1"]))
    x = lrelu(bn(conv(x, params["w2"], params["b2"]), params["g2"], params["be2"]))
    return jnp.transpose(x, (0, 3, 1, 2))


# --------------------------------------------------------------------- main
if __name__ == "__main__":
    key = jax.random.PRNGKey(0)
    ks = jax.random.split(key, 9)

    N, Cin, H, W = 2, 4, 16, 16
    Cout = 8                      # Down(4, 8): mid_channels == out_channels == 8

    x = jax.random.normal(ks[0], (N, Cin, H, W), jnp.float32)

    params = {
        # conv weights stored HWIO (3, 3, Cin, Cout)
        "w1": 0.1 * jax.random.normal(ks[1], (3, 3, Cin, Cout), jnp.float32),
        "b1": 0.1 * jax.random.normal(ks[2], (Cout,), jnp.float32),
        "g1": 1.0 + 0.1 * jax.random.normal(ks[3], (Cout,), jnp.float32),
        "be1": 0.1 * jax.random.normal(ks[4], (Cout,), jnp.float32),
        "w2": 0.1 * jax.random.normal(ks[5], (3, 3, Cout, Cout), jnp.float32),
        "b2": 0.1 * jax.random.normal(ks[6], (Cout,), jnp.float32),
        "g2": 1.0 + 0.1 * jax.random.normal(ks[7], (Cout,), jnp.float32),
        "be2": 0.1 * jax.random.normal(ks[8], (Cout,), jnp.float32),
    }

    prep = jax.tree_util.tree_map(
        lambda v: jax.block_until_ready(v) if isinstance(v, jax.Array) else v,
        prepare_down_params(params))          # one-time parameter prep (hoisted)

    out = jax.block_until_ready(down_pallas(x, prep))
    ref = jax.block_until_ready(down_reference(x, params))

    assert out.shape == (N, Cout, H // 2, W // 2), out.shape
    assert jnp.allclose(out, ref, atol=2e-3, rtol=2e-3), float(
        jnp.max(jnp.abs(out - ref)))

    print("KERNEL_OK")
</pallas_src>

<mosaic_0001>
module attributes {stable_mosaic.version = 11 : i64} {
  func.func @_down_kernel(%arg0: i32, %arg1: memref<4x2x8x8x8xf32, #tpu.memory_space<vmem>>, %arg2: memref<9x8x128xf32, #tpu.memory_space<vmem>>, %arg3: memref<9x8x128xf32, #tpu.memory_space<vmem>>, %arg4: memref<8x128xf32, #tpu.memory_space<vmem>>, %arg5: memref<2x8x8x128xf32, #tpu.memory_space<vmem>>, %arg6: memref<2x10x16x8xf32, #tpu.memory_space<vmem>>, %arg7: memref<2x10x16x8xf32, #tpu.memory_space<vmem>>) attributes {dimension_semantics = [#tpu.dimension_semantics<arbitrary>], iteration_bounds = array<i64: 1>, scalar_prefetch = 0 : i64, scratch_operands = 2 : i64, tpu.core_type = #tpu.core_type<tc>, window_params = [{pipeline_mode = #tpu.pipeline_mode<synchronous>, transform_indices = @transform_0, window_bounds = array<i64: 4, 2, 8, 8, 8>}, {pipeline_mode = #tpu.pipeline_mode<synchronous>, transform_indices = @transform_1, window_bounds = array<i64: 9, 8, 128>}, {pipeline_mode = #tpu.pipeline_mode<synchronous>, transform_indices = @transform_2, window_bounds = array<i64: 9, 8, 128>}, {pipeline_mode = #tpu.pipeline_mode<synchronous>, transform_indices = @transform_3, window_bounds = array<i64: 8, 128>}, {pipeline_mode = #tpu.pipeline_mode<synchronous>, transform_indices = @transform_4, window_bounds = array<i64: 2, 8, 8, 128>}]} {
    %c0 = arith.constant 0 : index
    %c0_0 = arith.constant 0 : index
    %c0_1 = arith.constant 0 : index
    %c0_2 = arith.constant 0 : index
    %c0_3 = arith.constant 0 : index
    %0 = vector.load %arg1[%c0, %c0_0, %c0_1, %c0_2, %c0_3] : memref<4x2x8x8x8xf32, #tpu.memory_space<vmem>>, vector<1x2x8x8x8xf32>
    %1 = vector.shape_cast %0 : vector<1x2x8x8x8xf32> to vector<2x8x8x8xf32>
    %c1 = arith.constant 1 : index
    %c0_4 = arith.constant 0 : index
    %c0_5 = arith.constant 0 : index
    %c0_6 = arith.constant 0 : index
    %c0_7 = arith.constant 0 : index
    %2 = vector.load %arg1[%c1, %c0_4, %c0_5, %c0_6, %c0_7] : memref<4x2x8x8x8xf32, #tpu.memory_space<vmem>>, vector<1x2x8x8x8xf32>
    %3 = vector.shape_cast %2 : vector<1x2x8x8x8xf32> to vector<2x8x8x8xf32>
    %4 = arith.maximumf %1, %3 : vector<2x8x8x8xf32>
    %c2 = arith.constant 2 : index
    %c0_8 = arith.constant 0 : index
    %c0_9 = arith.constant 0 : index
    %c0_10 = arith.constant 0 : index
    %c0_11 = arith.constant 0 : index
    %5 = vector.load %arg1[%c2, %c0_8, %c0_9, %c0_10, %c0_11] : memref<4x2x8x8x8xf32, #tpu.memory_space<vmem>>, vector<1x2x8x8x8xf32>
    %6 = vector.shape_cast %5 : vector<1x2x8x8x8xf32> to vector<2x8x8x8xf32>
    %c3 = arith.constant 3 : index
    %c0_12 = arith.constant 0 : index
    %c0_13 = arith.constant 0 : index
    %c0_14 = arith.constant 0 : index
    %c0_15 = arith.constant 0 : index
    %7 = vector.load %arg1[%c3, %c0_12, %c0_13, %c0_14, %c0_15] : memref<4x2x8x8x8xf32, #tpu.memory_space<vmem>>, vector<1x2x8x8x8xf32>
    %8 = vector.shape_cast %7 : vector<1x2x8x8x8xf32> to vector<2x8x8x8xf32>
    %9 = arith.maximumf %6, %8 : vector<2x8x8x8xf32>
    %10 = arith.maximumf %4, %9 : vector<2x8x8x8xf32>
    %c0_16 = arith.constant 0 : index
    %c0_17 = arith.constant 0 : index
    %11 = vector.load %arg4[%c0_16, %c0_17] : memref<8x128xf32, #tpu.memory_space<vmem>>, vector<8x128xf32>
    %12 = vector.extract_strided_slice %11 {offsets = [0, 0], sizes = [1, 128], strides = [1, 1]} : vector<8x128xf32> to vector<1x128xf32>
    %13 = vector.extract_strided_slice %11 {offsets = [1, 0], sizes = [1, 128], strides = [1, 1]} : vector<8x128xf32> to vector<1x128xf32>
    %14 = vector.extract_strided_slice %11 {offsets = [2, 0], sizes = [1, 128], strides = [1, 1]} : vector<8x128xf32> to vector<1x128xf32>
    %15 = vector.extract_strided_slice %11 {offsets = [3, 0], sizes = [1, 128], strides = [1, 1]} : vector<8x128xf32> to vector<1x128xf32>
    %16 = vector.extract_strided_slice %11 {offsets = [4, 0], sizes = [1, 128], strides = [1, 1]} : vector<8x128xf32> to vector<1x128xf32>
    %17 = vector.extract_strided_slice %11 {offsets = [5, 0], sizes = [1, 128], strides = [1, 1]} : vector<8x128xf32> to vector<1x128xf32>
    %cst = arith.constant 0.000000e+00 : f32
    %18 = vector.broadcast %cst : f32 to vector<2x1x16x8xf32>
    %c0_18 = arith.constant 0 : index
    %c0_19 = arith.constant 0 : index
    %c0_20 = arith.constant 0 : index
    %c0_21 = arith.constant 0 : index
    %19 = vector.load %arg6[%c0_18, %c0_19, %c0_20, %c0_21] : memref<2x10x16x8xf32, #tpu.memory_space<vmem>>, vector<2x1x16x8xf32>
    tpu.vector_store %arg6[%c0_18, %c0_19, %c0_20, %c0_21], %18 {strides = array<i32>} : memref<2x10x16x8xf32, #tpu.memory_space<vmem>>, vector<2x1x16x8xf32>,
    %c0_22 = arith.constant 0 : index
    %c9 = arith.constant 9 : index
    %c0_23 = arith.constant 0 : index
    %c0_24 = arith.constant 0 : index
    %20 = vector.load %arg6[%c0_22, %c9, %c0_23, %c0_24] : memref<2x10x16x8xf32, #tpu.memory_space<vmem>>, vector<2x1x16x8xf32>
    tpu.vector_store %arg6[%c0_22, %c9, %c0_23, %c0_24], %18 {strides = array<i32>} : memref<2x10x16x8xf32, #tpu.memory_space<vmem>>, vector<2x1x16x8xf32>,
    %cst_25 = arith.constant 0.000000e+00 : f32
    %21 = vector.broadcast %cst_25 : f32 to vector<2x10x1x8xf32>
    %c0_26 = arith.constant 0 : index
    %c0_27 = arith.constant 0 : index
    %c0_28 = arith.constant 0 : index
    %c0_29 = arith.constant 0 : index
    %22 = vector.load %arg6[%c0_26, %c0_27, %c0_28, %c0_29] : memref<2x10x16x8xf32, #tpu.memory_space<vmem>>, vector<2x10x1x8xf32>
    tpu.vector_store %arg6[%c0_26, %c0_27, %c0_28, %c0_29], %21 {strides = array<i32>} : memref<2x10x16x8xf32, #tpu.memory_space<vmem>>, vector<2x10x1x8xf32>,
    %c0_30 = arith.constant 0 : index
    %c0_31 = arith.constant 0 : index
    %c9_32 = arith.constant 9 : index
    %c0_33 = arith.constant 0 : index
    %23 = vector.load %arg6[%c0_30, %c0_31, %c9_32, %c0_33] : memref<2x10x16x8xf32, #tpu.memory_space<vmem>>, vector<2x10x1x8xf32>
    tpu.vector_store %arg6[%c0_30, %c0_31, %c9_32, %c0_33], %21 {strides = array<i32>} : memref<2x10x16x8xf32, #tpu.memory_space<vmem>>, vector<2x10x1x8xf32>,
    %c0_34 = arith.constant 0 : index
    %c1_35 = arith.constant 1 : index
    %c1_36 = arith.constant 1 : index
    %c0_37 = arith.constant 0 : index
    %24 = vector.load %arg6[%c0_34, %c1_35, %c1_36, %c0_37] : memref<2x10x16x8xf32, #tpu.memory_space<vmem>>, vector<2x8x8x8xf32>
    tpu.vector_store %arg6[%c0_34, %c1_35, %c1_36, %c0_37], %10 {strides = array<i32>} : memref<2x10x16x8xf32, #tpu.memory_space<vmem>>, vector<2x8x8x8xf32>,
    %c0_38 = arith.constant 0 : index
    %c0_39 = arith.constant 0 : index
    %c0_40 = arith.constant 0 : index
    %c0_41 = arith.constant 0 : index
    %25 = vector.load %arg6[%c0_38, %c0_39, %c0_40, %c0_41] : memref<2x10x16x8xf32, #tpu.memory_space<vmem>>, vector<2x8x8x8xf32>
    %26 = vector.shape_cast %25 : vector<2x8x8x8xf32> to vector<128x8xf32>
    %c0_42 = arith.constant 0 : index
    %c0_43 = arith.constant 0 : index
    %c0_44 = arith.constant 0 : index
    %27 = vector.load %arg2[%c0_42, %c0_43, %c0_44] : memref<9x8x128xf32, #tpu.memory_space<vmem>>, vector<1x8x128xf32>
    %28 = vector.shape_cast %27 : vector<1x8x128xf32> to vector<8x128xf32>
    %cst_45 = arith.constant dense<0.000000e+00> : vector<128x128xf32>
    %29 = tpu.matmul %26, %28, %cst_45 {dimension_numbers = #tpu.dot_dimension_numbers<[1], [0], [0], [1], [0, 0, 1, 1], [], []>} : vector<128x8xf32>, vector<8x128xf32>, vector<128x128xf32> -> vector<128x128xf32>
    %c0_46 = arith.constant 0 : index
    %c0_47 = arith.constant 0 : index
    %c1_48 = arith.constant 1 : index
    %c0_49 = arith.constant 0 : index
    %30 = vector.load %arg6[%c0_46, %c0_47, %c1_48, %c0_49] : memref<2x10x16x8xf32, #tpu.memory_space<vmem>>, vector<2x8x8x8xf32>
    %31 = vector.shape_cast %30 : vector<2x8x8x8xf32> to vector<128x8xf32>
    %c1_50 = arith.constant 1 : index
    %c0_51 = arith.constant 0 : index
    %c0_52 = arith.constant 0 : index
    %32 = vector.load %arg2[%c1_50, %c0_51, %c0_52] : memref<9x8x128xf32, #tpu.memory_space<vmem>>, vector<1x8x128xf32>
    %33 = vector.shape_cast %32 : vector<1x8x128xf32> to vector<8x128xf32>
    %cst_53 = arith.constant dense<0.000000e+00> : vector<128x128xf32>
    %34 = tpu.matmul %31, %33, %cst_53 {dimension_numbers = #tpu.dot_dimension_numbers<[1], [0], [0], [1], [0, 0, 1, 1], [], []>} : vector<128x8xf32>, vector<8x128xf32>, vector<128x128xf32> -> vector<128x128xf32>
    %35 = arith.addf %29, %34 : vector<128x128xf32>
    %c0_54 = arith.constant 0 : index
    %c0_55 = arith.constant 0 : index
    %c2_56 = arith.constant 2 : index
    %c0_57 = arith.constant 0 : index
    %36 = vector.load %arg6[%c0_54, %c0_55, %c2_56, %c0_57] : memref<2x10x16x8xf32, #tpu.memory_space<vmem>>, vector<2x8x8x8xf32>
    %37 = vector.shape_cast %36 : vector<2x8x8x8xf32> to vector<128x8xf32>
    %c2_58 = arith.constant 2 : index
    %c0_59 = arith.constant 0 : index
    %c0_60 = arith.constant 0 : index
    %38 = vector.load %arg2[%c2_58, %c0_59, %c0_60] : memref<9x8x128xf32, #tpu.memory_space<vmem>>, vector<1x8x128xf32>
    %39 = vector.shape_cast %38 : vector<1x8x128xf32> to vector<8x128xf32>
    %cst_61 = arith.constant dense<0.000000e+00> : vector<128x128xf32>
    %40 = tpu.matmul %37, %39, %cst_61 {dimension_numbers = #tpu.dot_dimension_numbers<[1], [0], [0], [1], [0, 0, 1, 1], [], []>} : vector<128x8xf32>, vector<8x128xf32>, vector<128x128xf32> -> vector<128x128xf32>
    %41 = arith.addf %35, %40 : vector<128x128xf32>
    %c0_62 = arith.constant 0 : index
    %c1_63 = arith.constant 1 : index
    %c0_64 = arith.constant 0 : index
    %c0_65 = arith.constant 0 : index
    %42 = vector.load %arg6[%c0_62, %c1_63, %c0_64, %c0_65] : memref<2x10x16x8xf32, #tpu.memory_space<vmem>>, vector<2x8x8x8xf32>
    %43 = vector.shape_cast %42 : vector<2x8x8x8xf32> to vector<128x8xf32>
    %c3_66 = arith.constant 3 : index
    %c0_67 = arith.constant 0 : index
    %c0_68 = arith.constant 0 : index
    %44 = vector.load %arg2[%c3_66, %c0_67, %c0_68] : memref<9x8x128xf32, #tpu.memory_space<vmem>>, vector<1x8x128xf32>
    %45 = vector.shape_cast %44 : vector<1x8x128xf32> to vector<8x128xf32>
    %cst_69 = arith.constant dense<0.000000e+00> : vector<128x128xf32>
    %46 = tpu.matmul %43, %45, %cst_69 {dimension_numbers = #tpu.dot_dimension_numbers<[1], [0], [0], [1], [0, 0, 1, 1], [], []>} : vector<128x8xf32>, vector<8x128xf32>, vector<128x128xf32> -> vector<128x128xf32>
    %47 = arith.addf %41, %46 : vector<128x128xf32>
    %c0_70 = arith.constant 0 : index
    %c1_71 = arith.constant 1 : index
    %c1_72 = arith.constant 1 : index
    %c0_73 = arith.constant 0 : index
    %48 = vector.load %arg6[%c0_70, %c1_71, %c1_72, %c0_73] : memref<2x10x16x8xf32, #tpu.memory_space<vmem>>, vector<2x8x8x8xf32>
    %49 = vector.shape_cast %48 : vector<2x8x8x8xf32> to vector<128x8xf32>
    %c4 = arith.constant 4 : index
    %c0_74 = arith.constant 0 : index
    %c0_75 = arith.constant 0 : index
    %50 = vector.load %arg2[%c4, %c0_74, %c0_75] : memref<9x8x128xf32, #tpu.memory_space<vmem>>, vector<1x8x128xf32>
    %51 = vector.shape_cast %50 : vector<1x8x128xf32> to vector<8x128xf32>
    %cst_76 = arith.constant dense<0.000000e+00> : vector<128x128xf32>
    %52 = tpu.matmul %49, %51, %cst_76 {dimension_numbers = #tpu.dot_dimension_numbers<[1], [0], [0], [1], [0, 0, 1, 1], [], []>} : vector<128x8xf32>, vector<8x128xf32>, vector<128x128xf32> -> vector<128x128xf32>
    %53 = arith.addf %47, %52 : vector<128x128xf32>
    %c0_77 = arith.constant 0 : index
    %c1_78 = arith.constant 1 : index
    %c2_79 = arith.constant 2 : index
    %c0_80 = arith.constant 0 : index
    %54 = vector.load %arg6[%c0_77, %c1_78, %c2_79, %c0_80] : memref<2x10x16x8xf32, #tpu.memory_space<vmem>>, vector<2x8x8x8xf32>
    %55 = vector.shape_cast %54 : vector<2x8x8x8xf32> to vector<128x8xf32>
    %c5 = arith.constant 5 : index
    %c0_81 = arith.constant 0 : index
    %c0_82 = arith.constant 0 : index
    %56 = vector.load %arg2[%c5, %c0_81, %c0_82] : memref<9x8x128xf32, #tpu.memory_space<vmem>>, vector<1x8x128xf32>
    %57 = vector.shape_cast %56 : vector<1x8x128xf32> to vector<8x128xf32>
    %cst_83 = arith.constant dense<0.000000e+00> : vector<128x128xf32>
    %58 = tpu.matmul %55, %57, %cst_83 {dimension_numbers = #tpu.dot_dimension_numbers<[1], [0], [0], [1], [0, 0, 1, 1], [], []>} : vector<128x8xf32>, vector<8x128xf32>, vector<128x128xf32> -> vector<128x128xf32>
    %59 = arith.addf %53, %58 : vector<128x128xf32>
    %c0_84 = arith.constant 0 : index
    %c2_85 = arith.constant 2 : index
    %c0_86 = arith.constant 0 : index
    %c0_87 = arith.constant 0 : index
    %60 = vector.load %arg6[%c0_84, %c2_85, %c0_86, %c0_87] : memref<2x10x16x8xf32, #tpu.memory_space<vmem>>, vector<2x8x8x8xf32>
    %61 = vector.shape_cast %60 : vector<2x8x8x8xf32> to vector<128x8xf32>
    %c6 = arith.constant 6 : index
    %c0_88 = arith.constant 0 : index
    %c0_89 = arith.constant 0 : index
    %62 = vector.load %arg2[%c6, %c0_88, %c0_89] : memref<9x8x128xf32, #tpu.memory_space<vmem>>, vector<1x8x128xf32>
    %63 = vector.shape_cast %62 : vector<1x8x128xf32> to vector<8x128xf32>
    %cst_90 = arith.constant dense<0.000000e+00> : vector<128x128xf32>
    %64 = tpu.matmul %61, %63, %cst_90 {dimension_numbers = #tpu.dot_dimension_numbers<[1], [0], [0], [1], [0, 0, 1, 1], [], []>} : vector<128x8xf32>, vector<8x128xf32>, vector<128x128xf32> -> vector<128x128xf32>
    %65 = arith.addf %59, %64 : vector<128x128xf32>
    %c0_91 = arith.constant 0 : index
    %c2_92 = arith.constant 2 : index
    %c1_93 = arith.constant 1 : index
    %c0_94 = arith.constant 0 : index
    %66 = vector.load %arg6[%c0_91, %c2_92, %c1_93, %c0_94] : memref<2x10x16x8xf32, #tpu.memory_space<vmem>>, vector<2x8x8x8xf32>
    %67 = vector.shape_cast %66 : vector<2x8x8x8xf32> to vector<128x8xf32>
    %c7 = arith.constant 7 : index
    %c0_95 = arith.constant 0 : index
    %c0_96 = arith.constant 0 : index
    %68 = vector.load %arg2[%c7, %c0_95, %c0_96] : memref<9x8x128xf32, #tpu.memory_space<vmem>>, vector<1x8x128xf32>
    %69 = vector.shape_cast %68 : vector<1x8x128xf32> to vector<8x128xf32>
    %cst_97 = arith.constant dense<0.000000e+00> : vector<128x128xf32>
    %70 = tpu.matmul %67, %69, %cst_97 {dimension_numbers = #tpu.dot_dimension_numbers<[1], [0], [0], [1], [0, 0, 1, 1], [], []>} : vector<128x8xf32>, vector<8x128xf32>, vector<128x128xf32> -> vector<128x128xf32>
    %71 = arith.addf %65, %70 : vector<128x128xf32>
    %c0_98 = arith.constant 0 : index
    %c2_99 = arith.constant 2 : index
    %c2_100 = arith.constant 2 : index
    %c0_101 = arith.constant 0 : index
    %72 = vector.load %arg6[%c0_98, %c2_99, %c2_100, %c0_101] : memref<2x10x16x8xf32, #tpu.memory_space<vmem>>, vector<2x8x8x8xf32>
    %73 = vector.shape_cast %72 : vector<2x8x8x8xf32> to vector<128x8xf32>
    %c8 = arith.constant 8 : index
    %c0_102 = arith.constant 0 : index
    %c0_103 = arith.constant 0 : index
    %74 = vector.load %arg2[%c8, %c0_102, %c0_103] : memref<9x8x128xf32, #tpu.memory_space<vmem>>, vector<1x8x128xf32>
    %75 = vector.shape_cast %74 : vector<1x8x128xf32> to vector<8x128xf32>
    %cst_104 = arith.constant dense<0.000000e+00> : vector<128x128xf32>
    %76 = tpu.matmul %73, %75, %cst_104 {dimension_numbers = #tpu.dot_dimension_numbers<[1], [0], [0], [1], [0, 0, 1, 1], [], []>} : vector<128x8xf32>, vector<8x128xf32>, vector<128x128xf32> -> vector<128x128xf32>
    %77 = arith.addf %71, %76 : vector<128x128xf32>
    %78 = vector.broadcast %12 : vector<1x128xf32> to vector<128x128xf32>
    %79 = arith.addf %77, %78 : vector<128x128xf32>
    %cst_105 = arith.constant dense<0.000000e+00> : vector<128xf32>
    %80 = vector.multi_reduction <add>, %79, %cst_105 [0] : vector<128x128xf32> to vector<128xf32>
    %81 = vector.shape_cast %80 : vector<128xf32> to vector<1x128xf32>
    %cst_106 = arith.constant 1.280000e+02 : f32
    %82 = vector.broadcast %cst_106 : f32 to vector<1x128xf32>
    %83 = arith.divf %81, %82 : vector<1x128xf32>
    %84 = vector.broadcast %83 : vector<1x128xf32> to vector<128x128xf32>
    %85 = arith.subf %79, %84 : vector<128x128xf32>
    %86 = arith.mulf %85, %85 : vector<128x128xf32>
    %cst_107 = arith.constant dense<0.000000e+00> : vector<128xf32>
    %87 = vector.multi_reduction <add>, %86, %cst_107 [0] : vector<128x128xf32> to vector<128xf32>
    %88 = vector.shape_cast %87 : vector<128xf32> to vector<1x128xf32>
    %cst_108 = arith.constant 1.280000e+02 : f32
    %89 = vector.broadcast %cst_108 : f32 to vector<1x128xf32>
    %90 = arith.divf %88, %89 : vector<1x128xf32>
    %91 = vector.broadcast %83 : vector<1x128xf32> to vector<128x128xf32>
    %92 = arith.subf %79, %91 : vector<128x128xf32>
    %cst_109 = arith.constant 9.99999974E-6 : f32
    %93 = vector.broadcast %cst_109 : f32 to vector<1x128xf32>
    %94 = arith.addf %90, %93 : vector<1x128xf32>
    %95 = math.rsqrt %94 : vector<1x128xf32>
    %96 = vector.broadcast %95 : vector<1x128xf32> to vector<128x128xf32>
    %97 = arith.mulf %92, %96 : vector<128x128xf32>
    %98 = vector.broadcast %13 : vector<1x128xf32> to vector<128x128xf32>
    %99 = arith.mulf %97, %98 : vector<128x128xf32>
    %100 = vector.broadcast %14 : vector<1x128xf32> to vector<128x128xf32>
    %101 = arith.addf %99, %100 : vector<128x128xf32>
    %cst_110 = arith.constant 0.000000e+00 : f32
    %102 = vector.broadcast %cst_110 : f32 to vector<128x128xf32>
    %103 = arith.cmpf oge, %101, %102 : vector<128x128xf32>
    %cst_111 = arith.constant 0.00999999977 : f32
    %104 = vector.broadcast %cst_111 : f32 to vector<128x128xf32>
    %105 = arith.mulf %104, %101 : vector<128x128xf32>
    %106 = arith.select %103, %101, %105 : vector<128x128xi1>, vector<128x128xf32>
    %cst_112 = arith.constant 0.000000e+00 : f32
    %107 = vector.broadcast %cst_112 : f32 to vector<2x1x16x8xf32>
    %c0_113 = arith.constant 0 : index
    %c0_114 = arith.constant 0 : index
    %c0_115 = arith.constant 0 : index
    %c0_116 = arith.constant 0 : index
    %108 = vector.load %arg7[%c0_113, %c0_114, %c0_115, %c0_116] : memref<2x10x16x8xf32, #tpu.memory_space<vmem>>, vector<2x1x16x8xf32>
    tpu.vector_store %arg7[%c0_113, %c0_114, %c0_115, %c0_116], %107 {strides = array<i32>} : memref<2x10x16x8xf32, #tpu.memory_space<vmem>>, vector<2x1x16x8xf32>,
    %c0_117 = arith.constant 0 : index
    %c9_118 = arith.constant 9 : index
    %c0_119 = arith.constant 0 : index
    %c0_120 = arith.constant 0 : index
    %109 = vector.load %arg7[%c0_117, %c9_118, %c0_119, %c0_120] : memref<2x10x16x8xf32, #tpu.memory_space<vmem>>, vector<2x1x16x8xf32>
    tpu.vector_store %arg7[%c0_117, %c9_118, %c0_119, %c0_120], %107 {strides = array<i32>} : memref<2x10x16x8xf32, #tpu.memory_space<vmem>>, vector<2x1x16x8xf32>,
    %cst_121 = arith.constant 0.000000e+00 : f32
    %110 = vector.broadcast %cst_121 : f32 to vector<2x10x1x8xf32>
    %c0_122 = arith.constant 0 : index
    %c0_123 = arith.constant 0 : index
    %c0_124 = arith.constant 0 : index
    %c0_125 = arith.constant 0 : index
    %111 = vector.load %arg7[%c0_122, %c0_123, %c0_124, %c0_125] : memref<2x10x16x8xf32, #tpu.memory_space<vmem>>, vector<2x10x1x8xf32>
    tpu.vector_store %arg7[%c0_122, %c0_123, %c0_124, %c0_125], %110 {strides = array<i32>} : memref<2x10x16x8xf32, #tpu.memory_space<vmem>>, vector<2x10x1x8xf32>,
    %c0_126 = arith.constant 0 : index
    %c0_127 = arith.constant 0 : index
    %c9_128 = arith.constant 9 : index
    %c0_129 = arith.constant 0 : index
    %112 = vector.load %arg7[%c0_126, %c0_127, %c9_128, %c0_129] : memref<2x10x16x8xf32, #tpu.memory_space<vmem>>, vector<2x10x1x8xf32>
    tpu.vector_store %arg7[%c0_126, %c0_127, %c9_128, %c0_129], %110 {strides = array<i32>} : memref<2x10x16x8xf32, #tpu.memory_space<vmem>>, vector<2x10x1x8xf32>,
    %113 = vector.extract_strided_slice %106 {offsets = [0, 0], sizes = [128, 8], strides = [1, 1]} : vector<128x128xf32> to vector<128x8xf32>
    %114 = vector.shape_cast %113 : vector<128x8xf32> to vector<2x8x8x8xf32>
    %c0_130 = arith.constant 0 : index
    %c1_131 = arith.constant 1 : index
    %c1_132 = arith.constant 1 : index
    %c0_133 = arith.constant 0 : index
    %115 = vector.load %arg7[%c0_130, %c1_131, %c1_132, %c0_133] : memref<2x10x16x8xf32, #tpu.memory_space<vmem>>, vector<2x8x8x8xf32>
    tpu.vector_store %arg7[%c0_130, %c1_131, %c1_132, %c0_133], %114 {strides = array<i32>} : memref<2x10x16x8xf32, #tpu.memory_space<vmem>>, vector<2x8x8x8xf32>,
    %c0_134 = arith.constant 0 : index
    %c0_135 = arith.constant 0 : index
    %c0_136 = arith.constant 0 : index
    %c0_137 = arith.constant 0 : index
    %116 = vector.load %arg7[%c0_134, %c0_135, %c0_136, %c0_137] : memref<2x10x16x8xf32, #tpu.memory_space<vmem>>, vector<2x8x8x8xf32>
    %117 = vector.shape_cast %116 : vector<2x8x8x8xf32> to vector<128x8xf32>
    %c0_138 = arith.constant 0 : index
    %c0_139 = arith.constant 0 : index
    %c0_140 = arith.constant 0 : index
    %118 = vector.load %arg3[%c0_138, %c0_139, %c0_140] : memref<9x8x128xf32, #tpu.memory_space<vmem>>, vector<1x8x128xf32>
    %119 = vector.shape_cast %118 : vector<1x8x128xf32> to vector<8x128xf32>
    %cst_141 = arith.constant dense<0.000000e+00> : vector<128x128xf32>
    %120 = tpu.matmul %117, %119, %cst_141 {dimension_numbers = #tpu.dot_dimension_numbers<[1], [0], [0], [1], [0, 0, 1, 1], [], []>} : vector<128x8xf32>, vector<8x128xf32>, vector<128x128xf32> -> vector<128x128xf32>
    %c0_142 = arith.constant 0 : index
    %c0_143 = arith.constant 0 : index
    %c1_144 = arith.constant 1 : index
    %c0_145 = arith.constant 0 : index
    %121 = vector.load %arg7[%c0_142, %c0_143, %c1_144, %c0_145] : memref<2x10x16x8xf32, #tpu.memory_space<vmem>>, vector<2x8x8x8xf32>
    %122 = vector.shape_cast %121 : vector<2x8x8x8xf32> to vector<128x8xf32>
    %c1_146 = arith.constant 1 : index
    %c0_147 = arith.constant 0 : index
    %c0_148 = arith.constant 0 : index
    %123 = vector.load %arg3[%c1_146, %c0_147, %c0_148] : memref<9x8x128xf32, #tpu.memory_space<vmem>>, vector<1x8x128xf32>
    %124 = vector.shape_cast %123 : vector<1x8x128xf32> to vector<8x128xf32>
    %cst_149 = arith.constant dense<0.000000e+00> : vector<128x128xf32>
    %125 = tpu.matmul %122, %124, %cst_149 {dimension_numbers = #tpu.dot_dimension_numbers<[1], [0], [0], [1], [0, 0, 1, 1], [], []>} : vector<128x8xf32>, vector<8x128xf32>, vector<128x128xf32> -> vector<128x128xf32>
    %126 = arith.addf %120, %125 : vector<128x128xf32>
    %c0_150 = arith.constant 0 : index
    %c0_151 = arith.constant 0 : index
    %c2_152 = arith.constant 2 : index
    %c0_153 = arith.constant 0 : index
    %127 = vector.load %arg7[%c0_150, %c0_151, %c2_152, %c0_153] : memref<2x10x16x8xf32, #tpu.memory_space<vmem>>, vector<2x8x8x8xf32>
    %128 = vector.shape_cast %127 : vector<2x8x8x8xf32> to vector<128x8xf32>
    %c2_154 = arith.constant 2 : index
    %c0_155 = arith.constant 0 : index
    %c0_156 = arith.constant 0 : index
    %129 = vector.load %arg3[%c2_154, %c0_155, %c0_156] : memref<9x8x128xf32, #tpu.memory_space<vmem>>, vector<1x8x128xf32>
    %130 = vector.shape_cast %129 : vector<1x8x128xf32> to vector<8x128xf32>
    %cst_157 = arith.constant dense<0.000000e+00> : vector<128x128xf32>
    %131 = tpu.matmul %128, %130, %cst_157 {dimension_numbers = #tpu.dot_dimension_numbers<[1], [0], [0], [1], [0, 0, 1, 1], [], []>} : vector<128x8xf32>, vector<8x128xf32>, vector<128x128xf32> -> vector<128x128xf32>
    %132 = arith.addf %126, %131 : vector<128x128xf32>
    %c0_158 = arith.constant 0 : index
    %c1_159 = arith.constant 1 : index
    %c0_160 = arith.constant 0 : index
    %c0_161 = arith.constant 0 : index
    %133 = vector.load %arg7[%c0_158, %c1_159, %c0_160, %c0_161] : memref<2x10x16x8xf32, #tpu.memory_space<vmem>>, vector<2x8x8x8xf32>
    %134 = vector.shape_cast %133 : vector<2x8x8x8xf32> to vector<128x8xf32>
    %c3_162 = arith.constant 3 : index
    %c0_163 = arith.constant 0 : index
    %c0_164 = arith.constant 0 : index
    %135 = vector.load %arg3[%c3_162, %c0_163, %c0_164] : memref<9x8x128xf32, #tpu.memory_space<vmem>>, vector<1x8x128xf32>
    %136 = vector.shape_cast %135 : vector<1x8x128xf32> to vector<8x128xf32>
    %cst_165 = arith.constant dense<0.000000e+00> : vector<128x128xf32>
    %137 = tpu.matmul %134, %136, %cst_165 {dimension_numbers = #tpu.dot_dimension_numbers<[1], [0], [0], [1], [0, 0, 1, 1], [], []>} : vector<128x8xf32>, vector<8x128xf32>, vector<128x128xf32> -> vector<128x128xf32>
    %138 = arith.addf %132, %137 : vector<128x128xf32>
    %c0_166 = arith.constant 0 : index
    %c1_167 = arith.constant 1 : index
    %c1_168 = arith.constant 1 : index
    %c0_169 = arith.constant 0 : index
    %139 = vector.load %arg7[%c0_166, %c1_167, %c1_168, %c0_169] : memref<2x10x16x8xf32, #tpu.memory_space<vmem>>, vector<2x8x8x8xf32>
    %140 = vector.shape_cast %139 : vector<2x8x8x8xf32> to vector<128x8xf32>
    %c4_170 = arith.constant 4 : index
    %c0_171 = arith.constant 0 : index
    %c0_172 = arith.constant 0 : index
    %141 = vector.load %arg3[%c4_170, %c0_171, %c0_172] : memref<9x8x128xf32, #tpu.memory_space<vmem>>, vector<1x8x128xf32>
    %142 = vector.shape_cast %141 : vector<1x8x128xf32> to vector<8x128xf32>
    %cst_173 = arith.constant dense<0.000000e+00> : vector<128x128xf32>
    %143 = tpu.matmul %140, %142, %cst_173 {dimension_numbers = #tpu.dot_dimension_numbers<[1], [0], [0], [1], [0, 0, 1, 1], [], []>} : vector<128x8xf32>, vector<8x128xf32>, vector<128x128xf32> -> vector<128x128xf32>
    %144 = arith.addf %138, %143 : vector<128x128xf32>
    %c0_174 = arith.constant 0 : index
    %c1_175 = arith.constant 1 : index
    %c2_176 = arith.constant 2 : index
    %c0_177 = arith.constant 0 : index
    %145 = vector.load %arg7[%c0_174, %c1_175, %c2_176, %c0_177] : memref<2x10x16x8xf32, #tpu.memory_space<vmem>>, vector<2x8x8x8xf32>
    %146 = vector.shape_cast %145 : vector<2x8x8x8xf32> to vector<128x8xf32>
    %c5_178 = arith.constant 5 : index
    %c0_179 = arith.constant 0 : index
    %c0_180 = arith.constant 0 : index
    %147 = vector.load %arg3[%c5_178, %c0_179, %c0_180] : memref<9x8x128xf32, #tpu.memory_space<vmem>>, vector<1x8x128xf32>
    %148 = vector.shape_cast %147 : vector<1x8x128xf32> to vector<8x128xf32>
    %cst_181 = arith.constant dense<0.000000e+00> : vector<128x128xf32>
    %149 = tpu.matmul %146, %148, %cst_181 {dimension_numbers = #tpu.dot_dimension_numbers<[1], [0], [0], [1], [0, 0, 1, 1], [], []>} : vector<128x8xf32>, vector<8x128xf32>, vector<128x128xf32> -> vector<128x128xf32>
    %150 = arith.addf %144, %149 : vector<128x128xf32>
    %c0_182 = arith.constant 0 : index
    %c2_183 = arith.constant 2 : index
    %c0_184 = arith.constant 0 : index
    %c0_185 = arith.constant 0 : index
    %151 = vector.load %arg7[%c0_182, %c2_183, %c0_184, %c0_185] : memref<2x10x16x8xf32, #tpu.memory_space<vmem>>, vector<2x8x8x8xf32>
    %152 = vector.shape_cast %151 : vector<2x8x8x8xf32> to vector<128x8xf32>
    %c6_186 = arith.constant 6 : index
    %c0_187 = arith.constant 0 : index
    %c0_188 = arith.constant 0 : index
    %153 = vector.load %arg3[%c6_186, %c0_187, %c0_188] : memref<9x8x128xf32, #tpu.memory_space<vmem>>, vector<1x8x128xf32>
    %154 = vector.shape_cast %153 : vector<1x8x128xf32> to vector<8x128xf32>
    %cst_189 = arith.constant dense<0.000000e+00> : vector<128x128xf32>
    %155 = tpu.matmul %152, %154, %cst_189 {dimension_numbers = #tpu.dot_dimension_numbers<[1], [0], [0], [1], [0, 0, 1, 1], [], []>} : vector<128x8xf32>, vector<8x128xf32>, vector<128x128xf32> -> vector<128x128xf32>
    %156 = arith.addf %150, %155 : vector<128x128xf32>
    %c0_190 = arith.constant 0 : index
    %c2_191 = arith.constant 2 : index
    %c1_192 = arith.constant 1 : index
    %c0_193 = arith.constant 0 : index
    %157 = vector.load %arg7[%c0_190, %c2_191, %c1_192, %c0_193] : memref<2x10x16x8xf32, #tpu.memory_space<vmem>>, vector<2x8x8x8xf32>
    %158 = vector.shape_cast %157 : vector<2x8x8x8xf32> to vector<128x8xf32>
    %c7_194 = arith.constant 7 : index
    %c0_195 = arith.constant 0 : index
    %c0_196 = arith.constant 0 : index
    %159 = vector.load %arg3[%c7_194, %c0_195, %c0_196] : memref<9x8x128xf32, #tpu.memory_space<vmem>>, vector<1x8x128xf32>
    %160 = vector.shape_cast %159 : vector<1x8x128xf32> to vector<8x128xf32>
    %cst_197 = arith.constant dense<0.000000e+00> : vector<128x128xf32>
    %161 = tpu.matmul %158, %160, %cst_197 {dimension_numbers = #tpu.dot_dimension_numbers<[1], [0], [0], [1], [0, 0, 1, 1], [], []>} : vector<128x8xf32>, vector<8x128xf32>, vector<128x128xf32> -> vector<128x128xf32>
    %162 = arith.addf %156, %161 : vector<128x128xf32>
    %c0_198 = arith.constant 0 : index
    %c2_199 = arith.constant 2 : index
    %c2_200 = arith.constant 2 : index
    %c0_201 = arith.constant 0 : index
    %163 = vector.load %arg7[%c0_198, %c2_199, %c2_200, %c0_201] : memref<2x10x16x8xf32, #tpu.memory_space<vmem>>, vector<2x8x8x8xf32>
    %164 = vector.shape_cast %163 : vector<2x8x8x8xf32> to vector<128x8xf32>
    %c8_202 = arith.constant 8 : index
    %c0_203 = arith.constant 0 : index
    %c0_204 = arith.constant 0 : index
    %165 = vector.load %arg3[%c8_202, %c0_203, %c0_204] : memref<9x8x128xf32, #tpu.memory_space<vmem>>, vector<1x8x128xf32>
    %166 = vector.shape_cast %165 : vector<1x8x128xf32> to vector<8x128xf32>
    %cst_205 = arith.constant dense<0.000000e+00> : vector<128x128xf32>
    %167 = tpu.matmul %164, %166, %cst_205 {dimension_numbers = #tpu.dot_dimension_numbers<[1], [0], [0], [1], [0, 0, 1, 1], [], []>} : vector<128x8xf32>, vector<8x128xf32>, vector<128x128xf32> -> vector<128x128xf32>
    %168 = arith.addf %162, %167 : vector<128x128xf32>
    %169 = vector.broadcast %15 : vector<1x128xf32> to vector<128x128xf32>
    %170 = arith.addf %168, %169 : vector<128x128xf32>
    %cst_206 = arith.constant dense<0.000000e+00> : vector<128xf32>
    %171 = vector.multi_reduction <add>, %170, %cst_206 [0] : vector<128x128xf32> to vector<128xf32>
    %172 = vector.shape_cast %171 : vector<128xf32> to vector<1x128xf32>
    %cst_207 = arith.constant 1.280000e+02 : f32
    %173 = vector.broadcast %cst_207 : f32 to vector<1x128xf32>
    %174 = arith.divf %172, %173 : vector<1x128xf32>
    %175 = vector.broadcast %174 : vector<1x128xf32> to vector<128x128xf32>
    %176 = arith.subf %170, %175 : vector<128x128xf32>
    %177 = arith.mulf %176, %176 : vector<128x128xf32>
    %cst_208 = arith.constant dense<0.000000e+00> : vector<128xf32>
    %178 = vector.multi_reduction <add>, %177, %cst_208 [0] : vector<128x128xf32> to vector<128xf32>
    %179 = vector.shape_cast %178 : vector<128xf32> to vector<1x128xf32>
    %cst_209 = arith.constant 1.280000e+02 : f32
    %180 = vector.broadcast %cst_209 : f32 to vector<1x128xf32>
    %181 = arith.divf %179, %180 : vector<1x128xf32>
    %182 = vector.broadcast %174 : vector<1x128xf32> to vector<128x128xf32>
    %183 = arith.subf %170, %182 : vector<128x128xf32>
    %cst_210 = arith.constant 9.99999974E-6 : f32
    %184 = vector.broadcast %cst_210 : f32 to vector<1x128xf32>
    %185 = arith.addf %181, %184 : vector<1x128xf32>
    %186 = math.rsqrt %185 : vector<1x128xf32>
    %187 = vector.broadcast %186 : vector<1x128xf32> to vector<128x128xf32>
    %188 = arith.mulf %183, %187 : vector<128x128xf32>
    %189 = vector.broadcast %16 : vector<1x128xf32> to vector<128x128xf32>
    %190 = arith.mulf %188, %189 : vector<128x128xf32>
    %191 = vector.broadcast %17 : vector<1x128xf32> to vector<128x128xf32>
    %192 = arith.addf %190, %191 : vector<128x128xf32>
    %cst_211 = arith.constant 0.000000e+00 : f32
    %193 = vector.broadcast %cst_211 : f32 to vector<128x128xf32>
    %194 = arith.cmpf oge, %192, %193 : vector<128x128xf32>
    %cst_212 = arith.constant 0.00999999977 : f32
    %195 = vector.broadcast %cst_212 : f32 to vector<128x128xf32>
    %196 = arith.mulf %195, %192 : vector<128x128xf32>
    %197 = arith.select %194, %192, %196 : vector<128x128xi1>, vector<128x128xf32>
    %198 = vector.shape_cast %197 : vector<128x128xf32> to vector<2x8x8x128xf32>
    %c0_213 = arith.constant 0 : index
    %c0_214 = arith.constant 0 : index
    %c0_215 = arith.constant 0 : index
    %c0_216 = arith.constant 0 : index
    %199 = vector.load %arg5[%c0_213, %c0_214, %c0_215, %c0_216] : memref<2x8x8x128xf32, #tpu.memory_space<vmem>>, vector<2x8x8x128xf32>
    tpu.vector_store %arg5[%c0_213, %c0_214, %c0_215, %c0_216], %198 {strides = array<i32>} : memref<2x8x8x128xf32, #tpu.memory_space<vmem>>, vector<2x8x8x128xf32>,
    return
  }
  func.func @transform_0(%arg0: i32) -> (i32, i32, i32, i32, i32) {
    %c0_i32 = arith.constant 0 : i32
    %c0_i32_0 = arith.constant 0 : i32
    %c0_i32_1 = arith.constant 0 : i32
    %c0_i32_2 = arith.constant 0 : i32
    %c0_i32_3 = arith.constant 0 : i32
    %c0_i32_4 = arith.constant 0 : i32
    return %c0_i32, %c0_i32_0, %c0_i32_1, %c0_i32_2, %c0_i32_3 : i32, i32, i32, i32, i32
  }
  func.func @transform_1(%arg0: i32) -> (i32, i32, i32) {
    %c0_i32 = arith.constant 0 : i32
    %c0_i32_0 = arith.constant 0 : i32
    %c0_i32_1 = arith.constant 0 : i32
    %c0_i32_2 = arith.constant 0 : i32
    return %c0_i32, %c0_i32_0, %c0_i32_1 : i32, i32, i32
  }
  func.func @transform_2(%arg0: i32) -> (i32, i32, i32) {
    %c0_i32 = arith.constant 0 : i32
    %c0_i32_0 = arith.constant 0 : i32
    %c0_i32_1 = arith.constant 0 : i32
    %c0_i32_2 = arith.constant 0 : i32
    return %c0_i32, %c0_i32_0, %c0_i32_1 : i32, i32, i32
  }
  func.func @transform_3(%arg0: i32) -> (i32, i32) {
    %c0_i32 = arith.constant 0 : i32
    %c0_i32_0 = arith.constant 0 : i32
    %c0_i32_1 = arith.constant 0 : i32
    return %c0_i32, %c0_i32_0 : i32, i32
  }
  func.func @transform_4(%arg0: i32) -> (i32, i32, i32, i32) {
    %c0_i32 = arith.constant 0 : i32
    %c0_i32_0 = arith.constant 0 : i32
    %c0_i32_1 = arith.constant 0 : i32
    %c0_i32_2 = arith.constant 0 : i32
    %c0_i32_3 = arith.constant 0 : i32
    return %c0_i32, %c0_i32_0, %c0_i32_1, %c0_i32_2 : i32, i32, i32, i32
  }
}

</mosaic_0001>

<llo_original>
// kernel: tpu_custom_call.1
$region0: #{tpu_custom_call.1}
  #allocation0 [shape = 'u32[]', space=smem, size = 0x4, offset = 0x4, fixed_abs, tag = 'smem constant byte address 0x4 - core index']
  #allocation1 [shape = 'u32[144,128]{1,0:T(1,128)}', space=vmem, size = 0x12000, scoped, tag = 'internal scratch']
  #allocation2 [shape = 'f32[2,10,16,8]{3,2,1,0:T(8,128)}', space=vmem, size = 0x28000, scoped, tag = 'scratch operand']
  #allocation3 [shape = 'f32[2,10,16,8]{3,2,1,0:T(8,128)}', space=vmem, size = 0x28000, scoped, tag = 'scratch operand']
  %s0 = inlined_call_operand.hbm [shape: f32[4,2,8,8,8], index: 0, kind: input, shape index: {}]
  %s1 = inlined_call_operand.hbm [shape: f32[9,8,128], index: 1, kind: input, shape index: {}]
  %s2 = inlined_call_operand.hbm [shape: f32[9,8,128], index: 2, kind: input, shape index: {}]
  %s3 = inlined_call_operand.vmem [shape: f32[8,128], index: 3, kind: input, shape index: {}]
  %s4 = inlined_call_operand.hbm [shape: f32[2,8,8,128], index: 4, kind: output, shape index: {}]
  %s5 = sld [smem:[#allocation0]]
  $region38: #{tpu_custom_call.1} parent=0
    _
  %s7 = ssub.s32 1, %s5
  %s8 = scalar_select 0, %s7, %s5
  $region1: #{tpu_custom_call.1} parent=0
    #allocation4 [shape = 'u8[262144]{0}', space=vmem, size = 0x40000, scoped, tag = 'input window, operand 0, single buffered']
    #allocation5 [shape = 's32[1]{0}', space=sflag, size = 0x4, scoped, tag = 'scoped memory for tpu_custom_call.1']
    #allocation6 [shape = 's32[1]{0}', space=sflag, size = 0x4, scoped, tag = 'scoped memory for tpu_custom_call.1']
    #allocation7 [shape = 'u8[36864]{0}', space=vmem, size = 0x9000, scoped, tag = 'input window, operand 1, single buffered']
    #allocation8 [shape = 's32[1]{0}', space=sflag, size = 0x4, scoped, tag = 'scoped memory for tpu_custom_call.1']
    #allocation9 [shape = 'u8[36864]{0}', space=vmem, size = 0x9000, scoped, tag = 'input window, operand 2, single buffered']
    #allocation10 [shape = 'u8[65536]{0}', space=vmem, size = 0x10000, scoped, tag = 'output window, operand 0, single buffered']
    %9 = vsyncpa [#allocation5], 0
    %10 = vsyncpa [#allocation8], 0
    %11 = vsyncpa [#allocation6], 0
    // Predicated region
    $region2: #{tpu_custom_call.1} parent=1 // pred_check
      _
    $region3: #{tpu_custom_call.1} parent=1 // pred_check_branch
      %13 = sbr.rel (0) target = $region5
    $region4: #{tpu_custom_call.1} parent=1 // pred_region
      %s15 = ssub.s32 8192, 8192
      %16 = vsyncadd [#allocation5], %s15
      %s17 = sshll.u32 [#allocation4], 4
      %s18 = int_to_ptr.vmem [resolvable:$true] %s17
      %23 = dma.hbm_to_vmem [thread:$0]  %s0, 8192, %s18, [#allocation5], 128, 128, 8
    $region5: #{tpu_custom_call.1} parent=1 // pred_fallthru
      _
    // Predicated region
    $region6: #{tpu_custom_call.1} parent=1 // pred_check
      _
    $region7: #{tpu_custom_call.1} parent=1 // pred_check_branch
      %25 = sbr.rel (0) target = $region9
    $region8: #{tpu_custom_call.1} parent=1 // pred_region
      %s27 = ssub.s32 1152, 1152
      %28 = vsyncadd [#allocation8], %s27
      %s29 = sshll.u32 [#allocation7], 4
      %s30 = int_to_ptr.vmem [resolvable:$true] %s29
      %35 = dma.hbm_to_vmem [thread:$0]  %s1, 1152, %s30, [#allocation8], 128, 128, 8
    $region9: #{tpu_custom_call.1} parent=1 // pred_fallthru
      _
    // Predicated region
    $region10: #{tpu_custom_call.1} parent=1 // pred_check
      _
    $region11: #{tpu_custom_call.1} parent=1 // pred_check_branch
      %37 = sbr.rel (0) target = $region13
    $region12: #{tpu_custom_call.1} parent=1 // pred_region
      %s39 = ssub.s32 1152, 1152
      %40 = vsyncadd [#allocation8], %s39
      %s41 = sshll.u32 [#allocation9], 4
      %s42 = int_to_ptr.vmem [resolvable:$true] %s41
      %47 = dma.hbm_to_vmem [thread:$0]  %s2, 1152, %s42, [#allocation8], 128, 128, 8
    $region13: #{tpu_custom_call.1} parent=1 // pred_fallthru
      _
    // Predicated region
    $region14: #{tpu_custom_call.1} parent=1 // pred_check
      _
    $region15: #{tpu_custom_call.1} parent=1 // pred_check_branch
      %49 = sbr.rel (0) target = $region17
    $region16: #{tpu_custom_call.1} parent=1 // pred_region
      _
    $region17: #{tpu_custom_call.1} parent=1 // pred_fallthru
      _
    // Predicated region
    $region18: #{tpu_custom_call.1} parent=1 // pred_check
      _
    $region19: #{tpu_custom_call.1} parent=1 // pred_check_branch
      %51 = sbr.rel (0) target = $region21
    $region20: #{tpu_custom_call.1} parent=1 // pred_region
      %52 = dma.done [#allocation5], 8192
    $region21: #{tpu_custom_call.1} parent=1 // pred_fallthru
      _
    // Predicated region
    $region22: #{tpu_custom_call.1} parent=1 // pred_check
      _
    $region23: #{tpu_custom_call.1} parent=1 // pred_check_branch
      %54 = sbr.rel (0) target = $region25
    $region24: #{tpu_custom_call.1} parent=1 // pred_region
      %55 = dma.done [#allocation8], 1152
    $region25: #{tpu_custom_call.1} parent=1 // pred_fallthru
      _
    // Predicated region
    $region26: #{tpu_custom_call.1} parent=1 // pred_check
      _
    $region27: #{tpu_custom_call.1} parent=1 // pred_check_branch
      %57 = sbr.rel (0) target = $region29
    $region28: #{tpu_custom_call.1} parent=1 // pred_region
      %58 = dma.done [#allocation8], 1152
    $region29: #{tpu_custom_call.1} parent=1 // pred_fallthru
      _
    %v59 = vld [vmem:[#allocation4] sm:$0xff]
    %v60 = vld [vmem:[#allocation4 + $0x8] sm:$0xff]
    %v61 = vld [vmem:[#allocation4 + $0x10] sm:$0xff]
    %v62 = vld [vmem:[#allocation4 + $0x18] sm:$0xff]
    %v63 = vld [vmem:[#allocation4 + $0x20] sm:$0xff]
    %v64 = vld [vmem:[#allocation4 + $0x28] sm:$0xff]
    %v65 = vld [vmem:[#allocation4 + $0x30] sm:$0xff]
    %v66 = vld [vmem:[#allocation4 + $0x38] sm:$0xff]
    %v67 = vld [vmem:[#allocation4 + $0x40] sm:$0xff]
    %v68 = vld [vmem:[#allocation4 + $0x48] sm:$0xff]
    %v69 = vld [vmem:[#allocation4 + $0x50] sm:$0xff]
    %v70 = vld [vmem:[#allocation4 + $0x58] sm:$0xff]
    %v71 = vld [vmem:[#allocation4 + $0x60] sm:$0xff]
    %v72 = vld [vmem:[#allocation4 + $0x68] sm:$0xff]
    %v73 = vld [vmem:[#allocation4 + $0x70] sm:$0xff]
    %v74 = vld [vmem:[#allocation4 + $0x78] sm:$0xff]
    %s75 = scalar_lea.vmem [#allocation4], 128
    %v76 = vld [vmem:[%s75] sm:$0xff]
    %v77 = vld [vmem:[%s75 + $0x8] sm:$0xff]
    %v78 = vld [vmem:[%s75 + $0x10] sm:$0xff]
    %v79 = vld [vmem:[%s75 + $0x18] sm:$0xff]
    %v80 = vld [vmem:[%s75 + $0x20] sm:$0xff]
    %v81 = vld [vmem:[%s75 + $0x28] sm:$0xff]
    %v82 = vld [vmem:[%s75 + $0x30] sm:$0xff]
    %v83 = vld [vmem:[%s75 + $0x38] sm:$0xff]
    %v84 = vld [vmem:[%s75 + $0x40] sm:$0xff]
    %v85 = vld [vmem:[%s75 + $0x48] sm:$0xff]
    %v86 = vld [vmem:[%s75 + $0x50] sm:$0xff]
    %v87 = vld [vmem:[%s75 + $0x58] sm:$0xff]
    %v88 = vld [vmem:[%s75 + $0x60] sm:$0xff]
    %v89 = vld [vmem:[%s75 + $0x68] sm:$0xff]
    %v90 = vld [vmem:[%s75 + $0x70] sm:$0xff]
    %v91 = vld [vmem:[%s75 + $0x78] sm:$0xff]
    %v92 = vmax.f32 %v59, %v76
    %v93 = vmax.f32 %v60, %v77
    %v94 = vmax.f32 %v61, %v78
    %v95 = vmax.f32 %v62, %v79
    %v96 = vmax.f32 %v63, %v80
    %v97 = vmax.f32 %v64, %v81
    %v98 = vmax.f32 %v65, %v82
    %v99 = vmax.f32 %v66, %v83
    %v100 = vmax.f32 %v67, %v84
    %v101 = vmax.f32 %v68, %v85
    %v102 = vmax.f32 %v69, %v86
    %v103 = vmax.f32 %v70, %v87
    %v104 = vmax.f32 %v71, %v88
    %v105 = vmax.f32 %v72, %v89
    %v106 = vmax.f32 %v73, %v90
    %v107 = vmax.f32 %v74, %v91
    %s108 = scalar_lea.vmem [#allocation4], 256
    %v109 = vld [vmem:[%s108] sm:$0xff]
    %v110 = vld [vmem:[%s108 + $0x8] sm:$0xff]
    %v111 = vld [vmem:[%s108 + $0x10] sm:$0xff]
    %v112 = vld [vmem:[%s108 + $0x18] sm:$0xff]
    %v113 = vld [vmem:[%s108 + $0x20] sm:$0xff]
    %v114 = vld [vmem:[%s108 + $0x28] sm:$0xff]
    %v115 = vld [vmem:[%s108 + $0x30] sm:$0xff]
    %v116 = vld [vmem:[%s108 + $0x38] sm:$0xff]
    %v117 = vld [vmem:[%s108 + $0x40] sm:$0xff]
    %v118 = vld [vmem:[%s108 + $0x48] sm:$0xff]
    %v119 = vld [vmem:[%s108 + $0x50] sm:$0xff]
    %v120 = vld [vmem:[%s108 + $0x58] sm:$0xff]
    %v121 = vld [vmem:[%s108 + $0x60] sm:$0xff]
    %v122 = vld [vmem:[%s108 + $0x68] sm:$0xff]
    %v123 = vld [vmem:[%s108 + $0x70] sm:$0xff]
    %v124 = vld [vmem:[%s108 + $0x78] sm:$0xff]
    %s125 = scalar_lea.vmem [#allocation4], 384
    %v126 = vld [vmem:[%s125] sm:$0xff]
    %v127 = vld [vmem:[%s125 + $0x8] sm:$0xff]
    %v128 = vld [vmem:[%s125 + $0x10] sm:$0xff]
    %v129 = vld [vmem:[%s125 + $0x18] sm:$0xff]
    %v130 = vld [vmem:[%s125 + $0x20] sm:$0xff]
    %v131 = vld [vmem:[%s125 + $0x28] sm:$0xff]
    %v132 = vld [vmem:[%s125 + $0x30] sm:$0xff]
    %v133 = vld [vmem:[%s125 + $0x38] sm:$0xff]
    %v134 = vld [vmem:[%s125 + $0x40] sm:$0xff]
    %v135 = vld [vmem:[%s125 + $0x48] sm:$0xff]
    %v136 = vld [vmem:[%s125 + $0x50] sm:$0xff]
    %v137 = vld [vmem:[%s125 + $0x58] sm:$0xff]
    %v138 = vld [vmem:[%s125 + $0x60] sm:$0xff]
    %v139 = vld [vmem:[%s125 + $0x68] sm:$0xff]
    %v140 = vld [vmem:[%s125 + $0x70] sm:$0xff]
    %v141 = vld [vmem:[%s125 + $0x78] sm:$0xff]
    %v142 = vmax.f32 %v109, %v126
    %v143 = vmax.f32 %v110, %v127
    %v144 = vmax.f32 %v111, %v128
    %v145 = vmax.f32 %v112, %v129
    %v146 = vmax.f32 %v113, %v130
    %v147 = vmax.f32 %v114, %v131
    %v148 = vmax.f32 %v115, %v132
    %v149 = vmax.f32 %v116, %v133
    %v150 = vmax.f32 %v117, %v134
    %v151 = vmax.f32 %v118, %v135
    %v152 = vmax.f32 %v119, %v136
    %v153 = vmax.f32 %v120, %v137
    %v154 = vmax.f32 %v121, %v138
    %v155 = vmax.f32 %v122, %v139
    %v156 = vmax.f32 %v123, %v140
    %v157 = vmax.f32 %v124, %v141
    %v158 = vmax.f32 %v92, %v142
    %v159 = vmax.f32 %v93, %v143
    %v160 = vmax.f32 %v94, %v144
    %v161 = vmax.f32 %v95, %v145
    %v162 = vmax.f32 %v96, %v146
    %v163 = vmax.f32 %v97, %v147
    %v164 = vmax.f32 %v98, %v148
    %v165 = vmax.f32 %v99, %v149
    %v166 = vmax.f32 %v100, %v150
    %v167 = vmax.f32 %v101, %v151
    %v168 = vmax.f32 %v102, %v152
    %v169 = vmax.f32 %v103, %v153
    %v170 = vmax.f32 %v104, %v154
    %v171 = vmax.f32 %v105, %v155
    %v172 = vmax.f32 %v106, %v156
    %v173 = vmax.f32 %v107, %v157
    %v174 = vld [vmem:[%s3] sm:$0xff]
    %vm175 = vcmask 64512
    %176 = vst.msk [vmem:[#allocation2] sm:$0xff] %vm175, 0.0
    %177 = vst.msk [vmem:[#allocation2 + $0x8] sm:$0xff] %vm175, 0.0
    %178 = vst.msk [vmem:[#allocation2 + $0xa0] sm:$0xff] %vm175, 0.0
    %179 = vst.msk [vmem:[#allocation2 + $0xa8] sm:$0xff] %vm175, 0.0
    %s180 = scalar_lea.vmem [#allocation2], 144
    %181 = vst.msk [vmem:[%s180] sm:$0xff] %vm175, 0.0
    %182 = vst.msk [vmem:[%s180 + $0x8] sm:$0xff] %vm175, 0.0
    %183 = vst.msk [vmem:[%s180 + $0xa0] sm:$0xff] %vm175, 0.0
    %184 = vst.msk [vmem:[%s180 + $0xa8] sm:$0xff] %vm175, 0.0
    %vm185 = vcmask 57344
    %186 = vst.msk [vmem:[#allocation2] sm:$0x1] %vm185, 0.0
    %187 = vst.msk [vmem:[#allocation2 + $0x10] sm:$0x1] %vm185, 0.0
    %188 = vst.msk [vmem:[#allocation2 + $0x20] sm:$0x1] %vm185, 0.0
    %189 = vst.msk [vmem:[#allocation2 + $0x30] sm:$0x1] %vm185, 0.0
    %190 = vst.msk [vmem:[#allocation2 + $0x40] sm:$0x1] %vm185, 0.0
    %191 = vst.msk [vmem:[#allocation2 + $0x50] sm:$0x1] %vm185, 0.0
    %192 = vst.msk [vmem:[#allocation2 + $0x60] sm:$0x1] %vm185, 0.0
    %193 = vst.msk [vmem:[#allocation2 + $0x70] sm:$0x1] %vm185, 0.0
    %194 = vst.msk [vmem:[#allocation2 + $0x80] sm:$0x1] %vm185, 0.0
    %195 = vst.msk [vmem:[#allocation2 + $0x90] sm:$0x1] %vm185, 0.0
    %196 = vst.msk [vmem:[#allocation2 + $0xa0] sm:$0x1] %vm185, 0.0
    %197 = vst.msk [vmem:[#allocation2 + $0xb0] sm:$0x1] %vm185, 0.0
    %198 = vst.msk [vmem:[#allocation2 + $0xc0] sm:$0x1] %vm185, 0.0
    %199 = vst.msk [vmem:[#allocation2 + $0xd0] sm:$0x1] %vm185, 0.0
    %200 = vst.msk [vmem:[#allocation2 + $0xe0] sm:$0x1] %vm185, 0.0
    %201 = vst.msk [vmem:[#allocation2 + $0xf0] sm:$0x1] %vm185, 0.0
    %202 = vst.msk [vmem:[#allocation2 + $0x100] sm:$0x1] %vm185, 0.0
    %203 = vst.msk [vmem:[#allocation2 + $0x110] sm:$0x1] %vm185, 0.0
    %204 = vst.msk [vmem:[#allocation2 + $0x120] sm:$0x1] %vm185, 0.0
    %205 = vst.msk [vmem:[#allocation2 + $0x130] sm:$0x1] %vm185, 0.0
    %206 = vst.msk [vmem:[#allocation2 + $0x9] sm:$0x1] %vm185, 0.0
    %207 = vst.msk [vmem:[#allocation2 + $0x19] sm:$0x1] %vm185, 0.0
    %208 = vst.msk [vmem:[#allocation2 + $0x29] sm:$0x1] %vm185, 0.0
    %209 = vst.msk [vmem:[#allocation2 + $0x39] sm:$0x1] %vm185, 0.0
    %210 = vst.msk [vmem:[#allocation2 + $0x49] sm:$0x1] %vm185, 0.0
    %211 = vst.msk [vmem:[#allocation2 + $0x59] sm:$0x1] %vm185, 0.0
    %212 = vst.msk [vmem:[#allocation2 + $0x69] sm:$0x1] %vm185, 0.0
    %213 = vst.msk [vmem:[#allocation2 + $0x79] sm:$0x1] %vm185, 0.0
    %214 = vst.msk [vmem:[#allocation2 + $0x89] sm:$0x1] %vm185, 0.0
    %215 = vst.msk [vmem:[#allocation2 + $0x99] sm:$0x1] %vm185, 0.0
    %216 = vst.msk [vmem:[#allocation2 + $0xa9] sm:$0x1] %vm185, 0.0
    %217 = vst.msk [vmem:[#allocation2 + $0xb9] sm:$0x1] %vm185, 0.0
    %218 = vst.msk [vmem:[#allocation2 + $0xc9] sm:$0x1] %vm185, 0.0
    %219 = vst.msk [vmem:[#allocation2 + $0xd9] sm:$0x1] %vm185, 0.0
    %220 = vst.msk [vmem:[#allocation2 + $0xe9] sm:$0x1] %vm185, 0.0
    %221 = vst.msk [vmem:[#allocation2 + $0xf9] sm:$0x1] %vm185, 0.0
    %222 = vst.msk [vmem:[#allocation2 + $0x109] sm:$0x1] %vm185, 0.0
    %223 = vst.msk [vmem:[#allocation2 + $0x119] sm:$0x1] %vm185, 0.0
    %224 = vst.msk [vmem:[#allocation2 + $0x129] sm:$0x1] %vm185, 0.0
    %225 = vst.msk [vmem:[#allocation2 + $0x139] sm:$0x1] %vm185, 0.0
    %s226 = scalar_lea.vmem [#allocation2], 16
    %227 = vst.msk [vmem:[%s226 + $0x1] sm:$0xff] %vm175, %v158
    %228 = vst.msk [vmem:[%s226 + $0x11] sm:$0xff] %vm175, %v159
    %229 = vst.msk [vmem:[%s226 + $0x21] sm:$0xff] %vm175, %v160
    %230 = vst.msk [vmem:[%s226 + $0x31] sm:$0xff] %vm175, %v161
    %231 = vst.msk [vmem:[%s226 + $0x41] sm:$0xff] %vm175, %v162
    %232 = vst.msk [vmem:[%s226 + $0x51] sm:$0xff] %vm175, %v163
    %233 = vst.msk [vmem:[%s226 + $0x61] sm:$0xff] %vm175, %v164
    %234 = vst.msk [vmem:[%s226 + $0x71] sm:$0xff] %vm175, %v165
    %235 = vst.msk [vmem:[%s226 + $0xa1] sm:$0xff] %vm175, %v166
    %236 = vst.msk [vmem:[%s226 + $0xb1] sm:$0xff] %vm175, %v167
    %237 = vst.msk [vmem:[%s226 + $0xc1] sm:$0xff] %vm175, %v168
    %238 = vst.msk [vmem:[%s226 + $0xd1] sm:$0xff] %vm175, %v169
    %239 = vst.msk [vmem:[%s226 + $0xe1] sm:$0xff] %vm175, %v170
    %240 = vst.msk [vmem:[%s226 + $0xf1] sm:$0xff] %vm175, %v171
    %241 = vst.msk [vmem:[%s226 + $0x101] sm:$0xff] %vm175, %v172
    %242 = vst.msk [vmem:[%s226 + $0x111] sm:$0xff] %vm175, %v173
    %v243 = vld [vmem:[#allocation2] sm:$0xff]
    %v244 = vld [vmem:[#allocation2 + $0x10] sm:$0xff]
    %v245 = vld [vmem:[#allocation2 + $0x20] sm:$0xff]
    %v246 = vld [vmem:[#allocation2 + $0x30] sm:$0xff]
    %v247 = vld [vmem:[#allocation2 + $0x40] sm:$0xff]
    %v248 = vld [vmem:[#allocation2 + $0x50] sm:$0xff]
    %v249 = vld [vmem:[#allocation2 + $0x60] sm:$0xff]
    %v250 = vld [vmem:[#allocation2 + $0x70] sm:$0xff]
    %v251 = vld [vmem:[#allocation2 + $0xa0] sm:$0xff]
    %v252 = vld [vmem:[#allocation2 + $0xb0] sm:$0xff]
    %v253 = vld [vmem:[#allocation2 + $0xc0] sm:$0xff]
    %v254 = vld [vmem:[#allocation2 + $0xd0] sm:$0xff]
    %v255 = vld [vmem:[#allocation2 + $0xe0] sm:$0xff]
    %v256 = vld [vmem:[#allocation2 + $0xf0] sm:$0xff]
    %v257 = vld [vmem:[#allocation2 + $0x100] sm:$0xff]
    %v258 = vld [vmem:[#allocation2 + $0x110] sm:$0xff]
    %v259 = vld [vmem:[#allocation7] sm:$0xff]
    %v260 = vld [vmem:[#allocation2 + $0x1] sm:$0xff]
    %v261 = vld [vmem:[#allocation2 + $0x11] sm:$0xff]
    %v262 = vld [vmem:[#allocation2 + $0x21] sm:$0xff]
    %v263 = vld [vmem:[#allocation2 + $0x31] sm:$0xff]
    %v264 = vld [vmem:[#allocation2 + $0x41] sm:$0xff]
    %v265 = vld [vmem:[#allocation2 + $0x51] sm:$0xff]
    %v266 = vld [vmem:[#allocation2 + $0x61] sm:$0xff]
    %v267 = vld [vmem:[#allocation2 + $0x71] sm:$0xff]
    %v268 = vld [vmem:[#allocation2 + $0xa1] sm:$0xff]
    %v269 = vld [vmem:[#allocation2 + $0xb1] sm:$0xff]
    %v270 = vld [vmem:[#allocation2 + $0xc1] sm:$0xff]
    %v271 = vld [vmem:[#allocation2 + $0xd1] sm:$0xff]
    %v272 = vld [vmem:[#allocation2 + $0xe1] sm:$0xff]
    %v273 = vld [vmem:[#allocation2 + $0xf1] sm:$0xff]
    %v274 = vld [vmem:[#allocation2 + $0x101] sm:$0xff]
    %v275 = vld [vmem:[#allocation2 + $0x111] sm:$0xff]
    %s276 = scalar_lea.vmem [#allocation7], 8
    %v277 = vld [vmem:[%s276] sm:$0xff]
    %v279 = vsel %vm175, %v260, 0
    %v282 = vsel %vm175, %v261, 0
    %v285 = vsel %vm175, %v262, 0
    %v288 = vsel %vm175, %v263, 0
    %v291 = vsel %vm175, %v264, 0
    %v294 = vsel %vm175, %v265, 0
    %v297 = vsel %vm175, %v266, 0
    %v300 = vsel %vm175, %v267, 0
    %v303 = vsel %vm175, %v268, 0
    %v306 = vsel %vm175, %v269, 0
    %v309 = vsel %vm175, %v270, 0
    %v312 = vsel %vm175, %v271, 0
    %v315 = vsel %vm175, %v272, 0
    %v318 = vsel %vm175, %v273, 0
    %v321 = vsel %vm175, %v274, 0
    %v324 = vsel %vm175, %v275, 0
    %326 = vmatprep.subr.mxu0 0.0
    %327 = vmatpush1.msra.mxu0 %v277
    %328 = vmatprep.subr.mxu0 0.0
    %329 = vmatpush1.msra.mxu0 0.0
    %330 = vmatprep.subr.mxu0 0.0
    %331 = vmatpush1.msra.mxu0 0.0
    %332 = vmatprep.subr.mxu0 0.0
    %333 = vmatpush1.msra.mxu0 0.0
    %334 = vmatprep.subr.mxu0 0.0
    %335 = vmatpush1.msra.mxu0 0.0
    %336 = vmatprep.subr.mxu0 0.0
    %337 = vmatpush1.msra.mxu0 0.0
    %338 = vmatprep.subr.mxu0 0.0
    %339 = vmatpush1.msra.mxu0 0.0
    %340 = vmatprep.subr.mxu0 0.0
    %341 = vmatpush1.msra.mxu0 0.0
    %342 = vmatprep.subr.mxu0 0.0
    %343 = vmatpush1.msra.mxu0 0.0
    %344 = vmatprep.subr.mxu0 0.0
    %345 = vmatpush1.msra.mxu0 0.0
    %346 = vmatprep.subr.mxu0 0.0
    %347 = vmatpush1.msra.mxu0 0.0
    %348 = vmatprep.subr.mxu0 0.0
    %349 = vmatpush1.msra.mxu0 0.0
    %350 = vmatprep.subr.mxu0 0.0
    %351 = vmatpush1.msra.mxu0 0.0
    %352 = vmatprep.subr.mxu0 0.0
    %353 = vmatpush1.msra.mxu0 0.0
    %354 = vmatprep.subr.mxu0 0.0
    %355 = vmatpush1.msra.mxu0 0.0
    %356 = vmatprep.subr.mxu0 0.0
    %357 = vmatpush1.msra.mxu0 0.0
    %358 = vmatprep.subr.mxu0 0.0
    %359 = vmatpush1.msra.mxu0 0.0
    %360 = vmatprep.subr.mxu0 0.0
    %361 = vmatpush1.msra.mxu0 0.0
    %362 = vmatprep.subr.mxu0 0.0
    %363 = vmatpush1.msra.mxu0 0.0
    %364 = vmatprep.subr.mxu0 0.0
    %365 = vmatpush1.msra.mxu0 0.0
    %366 = vmatprep.subr.mxu0 0.0
    %367 = vmatpush1.msra.mxu0 0.0
    %368 = vmatprep.subr.mxu0 0.0
    %369 = vmatpush1.msra.mxu0 0.0
    %370 = vmatprep.subr.mxu0 0.0
    %371 = vmatpush1.msra.mxu0 0.0
    %372 = vmatprep.subr.mxu0 0.0
    %373 = vmatpush1.msra.mxu0 0.0
    %374 = vmatprep.subr.mxu0 0.0
    %375 = vmatpush1.msra.mxu0 0.0
    %376 = vmatprep.subr.mxu0 0.0
    %377 = vmatpush1.msra.mxu0 0.0
    %378 = vmatprep.subr.mxu0 0.0
    %379 = vmatpush1.msra.mxu0 0.0
    %380 = vmatprep.subr.mxu0 0.0
    %381 = vmatpush1.msra.mxu0 0.0
    %382 = vmatprep.subr.mxu0 0.0
    %383 = vmatpush1.msra.mxu0 0.0
    %384 = vmatprep.subr.mxu0 0.0
    %385 = vmatpush1.msra.mxu0 0.0
    %386 = vmatprep.subr.mxu0 0.0
    %387 = vmatpush1.msra.mxu0 0.0
    %388 = vmatprep.subr.mxu0 0.0
    %389 = vmatpush1.msra.mxu0 0.0
    %390 = vmatprep.mubr.f32.mxu0 0.0
    %391 = vmatmul.mubr.f32.gmra.mrb[0].mxu0 %v279
    %v392 = vpop.f32.mrb[0].mxu0
    %v393 = vadd.f32 0.0, %v392
    %v394 = vpop.f32.mrb[0].mxu0
    %395 = vmatprep.mubr.f32.mxu0 0.0
    %396 = vmatmul.mubr.f32.gmra.mrb[0].mxu0 %v282
    %v397 = vpop.f32.mrb[0].mxu0
    %v398 = vadd.f32 0.0, %v397
    %v399 = vpop.f32.mrb[0].mxu0
    %400 = vmatprep.mubr.f32.mxu0 0.0
    %401 = vmatmul.mubr.f32.gmra.mrb[0].mxu0 %v285
    %v402 = vpop.f32.mrb[0].mxu0
    %v403 = vadd.f32 0.0, %v402
    %v404 = vpop.f32.mrb[0].mxu0
    %405 = vmatprep.mubr.f32.mxu0 0.0
    %406 = vmatmul.mubr.f32.gmra.mrb[0].mxu0 %v288
    %v407 = vpop.f32.mrb[0].mxu0
    %v408 = vadd.f32 0.0, %v407
    %v409 = vpop.f32.mrb[0].mxu0
    %410 = vmatprep.mubr.f32.mxu0 0.0
    %411 = vmatmul.mubr.f32.gmra.mrb[0].mxu0 %v291
    %v412 = vpop.f32.mrb[0].mxu0
    %v413 = vadd.f32 0.0, %v412
    %v414 = vpop.f32.mrb[0].mxu0
    %415 = vmatprep.mubr.f32.mxu0 0.0
    %416 = vmatmul.mubr.f32.gmra.mrb[0].mxu0 %v294
    %v417 = vpop.f32.mrb[0].mxu0
    %v418 = vadd.f32 0.0, %v417
    %v419 = vpop.f32.mrb[0].mxu0
    %420 = vmatprep.mubr.f32.mxu0 0.0
    %421 = vmatmul.mubr.f32.gmra.mrb[0].mxu0 %v297
    %v422 = vpop.f32.mrb[0].mxu0
    %v423 = vadd.f32 0.0, %v422
    %v424 = vpop.f32.mrb[0].mxu0
    %425 = vmatprep.mubr.f32.mxu0 0.0
    %426 = vmatmul.mubr.f32.gmra.mrb[0].mxu0 %v300
    %v427 = vpop.f32.mrb[0].mxu0
    %v428 = vadd.f32 0.0, %v427
    %v429 = vpop.f32.mrb[0].mxu0
    %430 = vmatprep.mubr.f32.mxu0 0.0
    %431 = vmatmul.mubr.f32.gmra.mrb[0].mxu0 %v303
    %v432 = vpop.f32.mrb[0].mxu0
    %v433 = vadd.f32 0.0, %v432
    %v434 = vpop.f32.mrb[0].mxu0
    %435 = vmatprep.mubr.f32.mxu0 0.0
    %436 = vmatmul.mubr.f32.gmra.mrb[0].mxu0 %v306
    %v437 = vpop.f32.mrb[0].mxu0
    %v438 = vadd.f32 0.0, %v437
    %v439 = vpop.f32.mrb[0].mxu0
    %440 = vmatprep.mubr.f32.mxu0 0.0
    %441 = vmatmul.mubr.f32.gmra.mrb[0].mxu0 %v309
    %v442 = vpop.f32.mrb[0].mxu0
    %v443 = vadd.f32 0.0, %v442
    %v444 = vpop.f32.mrb[0].mxu0
    %445 = vmatprep.mubr.f32.mxu0 0.0
    %446 = vmatmul.mubr.f32.gmra.mrb[0].mxu0 %v312
    %v447 = vpop.f32.mrb[0].mxu0
    %v448 = vadd.f32 0.0, %v447
    %v449 = vpop.f32.mrb[0].mxu0
    %450 = vmatprep.mubr.f32.mxu0 0.0
    %451 = vmatmul.mubr.f32.gmra.mrb[0].mxu0 %v315
    %v452 = vpop.f32.mrb[0].mxu0
    %v453 = vadd.f32 0.0, %v452
    %v454 = vpop.f32.mrb[0].mxu0
    %455 = vmatprep.mubr.f32.mxu0 0.0
    %456 = vmatmul.mubr.f32.gmra.mrb[0].mxu0 %v318
    %v457 = vpop.f32.mrb[0].mxu0
    %v458 = vadd.f32 0.0, %v457
    %v459 = vpop.f32.mrb[0].mxu0
    %460 = vmatprep.mubr.f32.mxu0 0.0
    %461 = vmatmul.mubr.f32.gmra.mrb[0].mxu0 %v321
    %v462 = vpop.f32.mrb[0].mxu0
    %v463 = vadd.f32 0.0, %v462
    %v464 = vpop.f32.mrb[0].mxu0
    %465 = vmatprep.mubr.f32.mxu0 0.0
    %466 = vmatmul.mubr.f32.gmra.mrb[0].mxu0 %v324
    %v467 = vpop.f32.mrb[0].mxu0
    %v468 = vadd.f32 0.0, %v467
    %v469 = vpop.f32.mrb[0].mxu0
    %470 = vdwg.mxu0
    %v472 = vsel %vm175, %v243, 0
    %v475 = vsel %vm175, %v244, 0
    %v478 = vsel %vm175, %v245, 0
    %v481 = vsel %vm175, %v246, 0
    %v484 = vsel %vm175, %v247, 0
    %v487 = vsel %vm175, %v248, 0
    %v490 = vsel %vm175, %v249, 0
    %v493 = vsel %vm175, %v250, 0
    %v496 = vsel %vm175, %v251, 0
    %v499 = vsel %vm175, %v252, 0
    %v502 = vsel %vm175, %v253, 0
    %v505 = vsel %vm175, %v254, 0
    %v508 = vsel %vm175, %v255, 0
    %v511 = vsel %vm175, %v256, 0
    %v514 = vsel %vm175, %v257, 0
    %v517 = vsel %vm175, %v258, 0
    %519 = vmatprep.subr.mxu0 0.0
    %520 = vmatpush1.msra.mxu0 %v259
    %521 = vmatprep.subr.mxu0 0.0
    %522 = vmatpush1.msra.mxu0 0.0
    %523 = vmatprep.subr.mxu0 0.0
    %524 = vmatpush1.msra.mxu0 0.0
    %525 = vmatprep.subr.mxu0 0.0
    %526 = vmatpush1.msra.mxu0 0.0
    %527 = vmatprep.subr.mxu0 0.0
    %528 = vmatpush1.msra.mxu0 0.0
    %529 = vmatprep.subr.mxu0 0.0
    %530 = vmatpush1.msra.mxu0 0.0
    %531 = vmatprep.subr.mxu0 0.0
    %532 = vmatpush1.msra.mxu0 0.0
    %533 = vmatprep.subr.mxu0 0.0
    %534 = vmatpush1.msra.mxu0 0.0
    %535 = vmatprep.subr.mxu0 0.0
    %536 = vmatpush1.msra.mxu0 0.0
    %537 = vmatprep.subr.mxu0 0.0
    %538 = vmatpush1.msra.mxu0 0.0
    %539 = vmatprep.subr.mxu0 0.0
    %540 = vmatpush1.msra.mxu0 0.0
    %541 = vmatprep.subr.mxu0 0.0
    %542 = vmatpush1.msra.mxu0 0.0
    %543 = vmatprep.subr.mxu0 0.0
    %544 = vmatpush1.msra.mxu0 0.0
    %545 = vmatprep.subr.mxu0 0.0
    %546 = vmatpush1.msra.mxu0 0.0
    %547 = vmatprep.subr.mxu0 0.0
    %548 = vmatpush1.msra.mxu0 0.0
    %549 = vmatprep.subr.mxu0 0.0
    %550 = vmatpush1.msra.mxu0 0.0
    %551 = vmatprep.subr.mxu0 0.0
    %552 = vmatpush1.msra.mxu0 0.0
    %553 = vmatprep.subr.mxu0 0.0
    %554 = vmatpush1.msra.mxu0 0.0
    %555 = vmatprep.subr.mxu0 0.0
    %556 = vmatpush1.msra.mxu0 0.0
    %557 = vmatprep.subr.mxu0 0.0
    %558 = vmatpush1.msra.mxu0 0.0
    %559 = vmatprep.subr.mxu0 0.0
    %560 = vmatpush1.msra.mxu0 0.0
    %561 = vmatprep.subr.mxu0 0.0
    %562 = vmatpush1.msra.mxu0 0.0
    %563 = vmatprep.subr.mxu0 0.0
    %564 = vmatpush1.msra.mxu0 0.0
    %565 = vmatprep.subr.mxu0 0.0
    %566 = vmatpush1.msra.mxu0 0.0
    %567 = vmatprep.subr.mxu0 0.0
    %568 = vmatpush1.msra.mxu0 0.0
    %569 = vmatprep.subr.mxu0 0.0
    %570 = vmatpush1.msra.mxu0 0.0
    %571 = vmatprep.subr.mxu0 0.0
    %572 = vmatpush1.msra.mxu0 0.0
    %573 = vmatprep.subr.mxu0 0.0
    %574 = vmatpush1.msra.mxu0 0.0
    %575 = vmatprep.subr.mxu0 0.0
    %576 = vmatpush1.msra.mxu0 0.0
    %577 = vmatprep.subr.mxu0 0.0
    %578 = vmatpush1.msra.mxu0 0.0
    %579 = vmatprep.subr.mxu0 0.0
    %580 = vmatpush1.msra.mxu0 0.0
    %581 = vmatprep.subr.mxu0 0.0
    %582 = vmatpush1.msra.mxu0 0.0
    %583 = vmatprep.mubr.f32.mxu0 0.0
    %584 = vmatmul.mubr.f32.gmra.mrb[0].mxu0 %v472
    %v585 = vpop.f32.mrb[0].mxu0
    %v586 = vadd.f32 %v393, %v585
    %v587 = vpop.f32.mrb[0].mxu0
    %588 = vmatprep.mubr.f32.mxu0 0.0
    %589 = vmatmul.mubr.f32.gmra.mrb[0].mxu0 %v475
    %v590 = vpop.f32.mrb[0].mxu0
    %v591 = vadd.f32 %v398, %v590
    %v592 = vpop.f32.mrb[0].mxu0
    %593 = vmatprep.mubr.f32.mxu0 0.0
    %594 = vmatmul.mubr.f32.gmra.mrb[0].mxu0 %v478
    %v595 = vpop.f32.mrb[0].mxu0
    %v596 = vadd.f32 %v403, %v595
    %v597 = vpop.f32.mrb[0].mxu0
    %598 = vmatprep.mubr.f32.mxu0 0.0
    %599 = vmatmul.mubr.f32.gmra.mrb[0].mxu0 %v481
    %v600 = vpop.f32.mrb[0].mxu0
    %v601 = vadd.f32 %v408, %v600
    %v602 = vpop.f32.mrb[0].mxu0
    %603 = vmatprep.mubr.f32.mxu0 0.0
    %604 = vmatmul.mubr.f32.gmra.mrb[0].mxu0 %v484
    %v605 = vpop.f32.mrb[0].mxu0
    %v606 = vadd.f32 %v413, %v605
    %v607 = vpop.f32.mrb[0].mxu0
    %608 = vmatprep.mubr.f32.mxu0 0.0
    %609 = vmatmul.mubr.f32.gmra.mrb[0].mxu0 %v487
    %v610 = vpop.f32.mrb[0].mxu0
    %v611 = vadd.f32 %v418, %v610
    %v612 = vpop.f32.mrb[0].mxu0
    %613 = vmatprep.mubr.f32.mxu0 0.0
    %614 = vmatmul.mubr.f32.gmra.mrb[0].mxu0 %v490
    %v615 = vpop.f32.mrb[0].mxu0
    %v616 = vadd.f32 %v423, %v615
    %v617 = vpop.f32.mrb[0].mxu0
    %618 = vmatprep.mubr.f32.mxu0 0.0
    %619 = vmatmul.mubr.f32.gmra.mrb[0].mxu0 %v493
    %v620 = vpop.f32.mrb[0].mxu0
    %v621 = vadd.f32 %v428, %v620
    %v622 = vpop.f32.mrb[0].mxu0
    %623 = vmatprep.mubr.f32.mxu0 0.0
    %624 = vmatmul.mubr.f32.gmra.mrb[0].mxu0 %v496
    %v625 = vpop.f32.mrb[0].mxu0
    %v626 = vadd.f32 %v433, %v625
    %v627 = vpop.f32.mrb[0].mxu0
    %628 = vmatprep.mubr.f32.mxu0 0.0
    %629 = vmatmul.mubr.f32.gmra.mrb[0].mxu0 %v499
    %v630 = vpop.f32.mrb[0].mxu0
    %v631 = vadd.f32 %v438, %v630
    %v632 = vpop.f32.mrb[0].mxu0
    %633 = vmatprep.mubr.f32.mxu0 0.0
    %634 = vmatmul.mubr.f32.gmra.mrb[0].mxu0 %v502
    %v635 = vpop.f32.mrb[0].mxu0
    %v636 = vadd.f32 %v443, %v635
    %v637 = vpop.f32.mrb[0].mxu0
    %638 = vmatprep.mubr.f32.mxu0 0.0
    %639 = vmatmul.mubr.f32.gmra.mrb[0].mxu0 %v505
    %v640 = vpop.f32.mrb[0].mxu0
    %v641 = vadd.f32 %v448, %v640
    %v642 = vpop.f32.mrb[0].mxu0
    %643 = vmatprep.mubr.f32.mxu0 0.0
    %644 = vmatmul.mubr.f32.gmra.mrb[0].mxu0 %v508
    %v645 = vpop.f32.mrb[0].mxu0
    %v646 = vadd.f32 %v453, %v645
    %v647 = vpop.f32.mrb[0].mxu0
    %648 = vmatprep.mubr.f32.mxu0 0.0
    %649 = vmatmul.mubr.f32.gmra.mrb[0].mxu0 %v511
    %v650 = vpop.f32.mrb[0].mxu0
    %v651 = vadd.f32 %v458, %v650
    %v652 = vpop.f32.mrb[0].mxu0
    %653 = vmatprep.mubr.f32.mxu0 0.0
    %654 = vmatmul.mubr.f32.gmra.mrb[0].mxu0 %v514
    %v655 = vpop.f32.mrb[0].mxu0
    %v656 = vadd.f32 %v463, %v655
    %v657 = vpop.f32.mrb[0].mxu0
    %658 = vmatprep.mubr.f32.mxu0 0.0
    %659 = vmatmul.mubr.f32.gmra.mrb[0].mxu0 %v517
    %v660 = vpop.f32.mrb[0].mxu0
    %v661 = vadd.f32 %v468, %v660
    %v662 = vpop.f32.mrb[0].mxu0
    %663 = vdwg.mxu0
    %v664 = vld [vmem:[#allocation2 + $0x2] sm:$0xff]
    %v665 = vld [vmem:[#allocation2 + $0x12] sm:$0xff]
    %v666 = vld [vmem:[#allocation2 + $0x22] sm:$0xff]
    %v667 = vld [vmem:[#allocation2 + $0x32] sm:$0xff]
    %v668 = vld [vmem:[#allocation2 + $0x42] sm:$0xff]
    %v669 = vld [vmem:[#allocation2 + $0x52] sm:$0xff]
    %v670 = vld [vmem:[#allocation2 + $0x62] sm:$0xff]
    %v671 = vld [vmem:[#allocation2 + $0x72] sm:$0xff]
    %v672 = vld [vmem:[#allocation2 + $0xa2] sm:$0xff]
    %v673 = vld [vmem:[#allocation2 + $0xb2] sm:$0xff]
    %v674 = vld [vmem:[#allocation2 + $0xc2] sm:$0xff]
    %v675 = vld [vmem:[#allocation2 + $0xd2] sm:$0xff]
    %v676 = vld [vmem:[#allocation2 + $0xe2] sm:$0xff]
    %v677 = vld [vmem:[#allocation2 + $0xf2] sm:$0xff]
    %v678 = vld [vmem:[#allocation2 + $0x102] sm:$0xff]
    %v679 = vld [vmem:[#allocation2 + $0x112] sm:$0xff]
    %s680 = scalar_lea.vmem [#allocation7], 16
    %v681 = vld [vmem:[%s680] sm:$0xff]
    %v683 = vsel %vm175, %v664, 0
    %v686 = vsel %vm175, %v665, 0
    %v689 = vsel %vm175, %v666, 0
    %v692 = vsel %vm175, %v667, 0
    %v695 = vsel %vm175, %v668, 0
    %v698 = vsel %vm175, %v669, 0
    %v701 = vsel %vm175, %v670, 0
    %v704 = vsel %vm175, %v671, 0
    %v707 = vsel %vm175, %v672, 0
    %v710 = vsel %vm175, %v673, 0
    %v713 = vsel %vm175, %v674, 0
    %v716 = vsel %vm175, %v675, 0
    %v719 = vsel %vm175, %v676, 0
    %v722 = vsel %vm175, %v677, 0
    %v725 = vsel %vm175, %v678, 0
    %v728 = vsel %vm175, %v679, 0
    %730 = vmatprep.subr.mxu0 0.0
    %731 = vmatpush1.msra.mxu0 %v681
    %732 = vmatprep.subr.mxu0 0.0
    %733 = vmatpush1.msra.mxu0 0.0
    %734 = vmatprep.subr.mxu0 0.0
    %735 = vmatpush1.msra.mxu0 0.0
    %736 = vmatprep.subr.mxu0 0.0
    %737 = vmatpush1.msra.mxu0 0.0
    %738 = vmatprep.subr.mxu0 0.0
    %739 = vmatpush1.msra.mxu0 0.0
    %740 = vmatprep.subr.mxu0 0.0
    %741 = vmatpush1.msra.mxu0 0.0
    %742 = vmatprep.subr.mxu0 0.0
    %743 = vmatpush1.msra.mxu0 0.0
    %744 = vmatprep.subr.mxu0 0.0
    %745 = vmatpush1.msra.mxu0 0.0
    %746 = vmatprep.subr.mxu0 0.0
    %747 = vmatpush1.msra.mxu0 0.0
    %748 = vmatprep.subr.mxu0 0.0
    %749 = vmatpush1.msra.mxu0 0.0
    %750 = vmatprep.subr.mxu0 0.0
    %751 = vmatpush1.msra.mxu0 0.0
    %752 = vmatprep.subr.mxu0 0.0
    %753 = vmatpush1.msra.mxu0 0.0
    %754 = vmatprep.subr.mxu0 0.0
    %755 = vmatpush1.msra.mxu0 0.0
    %756 = vmatprep.subr.mxu0 0.0
    %757 = vmatpush1.msra.mxu0 0.0
    %758 = vmatprep.subr.mxu0 0.0
    %759 = vmatpush1.msra.mxu0 0.0
    %760 = vmatprep.subr.mxu0 0.0
    %761 = vmatpush1.msra.mxu0 0.0
    %762 = vmatprep.subr.mxu0 0.0
    %763 = vmatpush1.msra.mxu0 0.0
    %764 = vmatprep.subr.mxu0 0.0
    %765 = vmatpush1.msra.mxu0 0.0
    %766 = vmatprep.subr.mxu0 0.0
    %767 = vmatpush1.msra.mxu0 0.0
    %768 = vmatprep.subr.mxu0 0.0
    %769 = vmatpush1.msra.mxu0 0.0
    %770 = vmatprep.subr.mxu0 0.0
    %771 = vmatpush1.msra.mxu0 0.0
    %772 = vmatprep.subr.mxu0 0.0
    %773 = vmatpush1.msra.mxu0 0.0
    %774 = vmatprep.subr.mxu0 0.0
    %775 = vmatpush1.msra.mxu0 0.0
    %776 = vmatprep.subr.mxu0 0.0
    %777 = vmatpush1.msra.mxu0 0.0
    %778 = vmatprep.subr.mxu0 0.0
    %779 = vmatpush1.msra.mxu0 0.0
    %780 = vmatprep.subr.mxu0 0.0
    %781 = vmatpush1.msra.mxu0 0.0
    %782 = vmatprep.subr.mxu0 0.0
    %783 = vmatpush1.msra.mxu0 0.0
    %784 = vmatprep.subr.mxu0 0.0
    %785 = vmatpush1.msra.mxu0 0.0
    %786 = vmatprep.subr.mxu0 0.0
    %787 = vmatpush1.msra.mxu0 0.0
    %788 = vmatprep.subr.mxu0 0.0
    %789 = vmatpush1.msra.mxu0 0.0
    %790 = vmatprep.subr.mxu0 0.0
    %791 = vmatpush1.msra.mxu0 0.0
    %792 = vmatprep.subr.mxu0 0.0
    %793 = vmatpush1.msra.mxu0 0.0
    %794 = vmatprep.mubr.f32.mxu0 0.0
    %795 = vmatmul.mubr.f32.gmra.mrb[0].mxu0 %v683
    %v796 = vpop.f32.mrb[0].mxu0
    %v797 = vadd.f32 0.0, %v796
    %v798 = vpop.f32.mrb[0].mxu0
    %799 = vmatprep.mubr.f32.mxu0 0.0
    %800 = vmatmul.mubr.f32.gmra.mrb[0].mxu0 %v686
    %v801 = vpop.f32.mrb[0].mxu0
    %v802 = vadd.f32 0.0, %v801
    %v803 = vpop.f32.mrb[0].mxu0
    %804 = vmatprep.mubr.f32.mxu0 0.0
    %805 = vmatmul.mubr.f32.gmra.mrb[0].mxu0 %v689
    %v806 = vpop.f32.mrb[0].mxu0
    %v807 = vadd.f32 0.0, %v806
    %v808 = vpop.f32.mrb[0].mxu0
    %809 = vmatprep.mubr.f32.mxu0 0.0
    %810 = vmatmul.mubr.f32.gmra.mrb[0].mxu0 %v692
    %v811 = vpop.f32.mrb[0].mxu0
    %v812 = vadd.f32 0.0, %v811
    %v813 = vpop.f32.mrb[0].mxu0
    %814 = vmatprep.mubr.f32.mxu0 0.0
    %815 = vmatmul.mubr.f32.gmra.mrb[0].mxu0 %v695
    %v816 = vpop.f32.mrb[0].mxu0
    %v817 = vadd.f32 0.0, %v816
    %v818 = vpop.f32.mrb[0].mxu0
    %819 = vmatprep.mubr.f32.mxu0 0.0
    %820 = vmatmul.mubr.f32.gmra.mrb[0].mxu0 %v698
    %v821 = vpop.f32.mrb[0].mxu0
    %v822 = vadd.f32 0.0, %v821
    %v823 = vpop.f32.mrb[0].mxu0
    %824 = vmatprep.mubr.f32.mxu0 0.0
    %825 = vmatmul.mubr.f32.gmra.mrb[0].mxu0 %v701
    %v826 = vpop.f32.mrb[0].mxu0
    %v827 = vadd.f32 0.0, %v826
    %v828 = vpop.f32.mrb[0].mxu0
    %829 = vmatprep.mubr.f32.mxu0 0.0
    %830 = vmatmul.mubr.f32.gmra.mrb[0].mxu0 %v704
    %v831 = vpop.f32.mrb[0].mxu0
    %v832 = vadd.f32 0.0, %v831
    %v833 = vpop.f32.mrb[0].mxu0
    %834 = vmatprep.mubr.f32.mxu0 0.0
    %835 = vmatmul.mubr.f32.gmra.mrb[0].mxu0 %v707
    %v836 = vpop.f32.mrb[0].mxu0
    %v837 = vadd.f32 0.0, %v836
    %v838 = vpop.f32.mrb[0].mxu0
    %839 = vmatprep.mubr.f32.mxu0 0.0
    %840 = vmatmul.mubr.f32.gmra.mrb[0].mxu0 %v710
    %v841 = vpop.f32.mrb[0].mxu0
    %v842 = vadd.f32 0.0, %v841
    %v843 = vpop.f32.mrb[0].mxu0
    %844 = vmatprep.mubr.f32.mxu0 0.0
    %845 = vmatmul.mubr.f32.gmra.mrb[0].mxu0 %v713
    %v846 = vpop.f32.mrb[0].mxu0
    %v847 = vadd.f32 0.0, %v846
    %v848 = vpop.f32.mrb[0].mxu0
    %849 = vmatprep.mubr.f32.mxu0 0.0
    %850 = vmatmul.mubr.f32.gmra.mrb[0].mxu0 %v716
    %v851 = vpop.f32.mrb[0].mxu0
    %v852 = vadd.f32 0.0, %v851
    %v853 = vpop.f32.mrb[0].mxu0
    %854 = vmatprep.mubr.f32.mxu0 0.0
    %855 = vmatmul.mubr.f32.gmra.mrb[0].mxu0 %v719
    %v856 = vpop.f32.mrb[0].mxu0
    %v857 = vadd.f32 0.0, %v856
    %v858 = vpop.f32.mrb[0].mxu0
    %859 = vmatprep.mubr.f32.mxu0 0.0
    %860 = vmatmul.mubr.f32.gmra.mrb[0].mxu0 %v722
    %v861 = vpop.f32.mrb[0].mxu0
    %v862 = vadd.f32 0.0, %v861
    %v863 = vpop.f32.mrb[0].mxu0
    %864 = vmatprep.mubr.f32.mxu0 0.0
    %865 = vmatmul.mubr.f32.gmra.mrb[0].mxu0 %v725
    %v866 = vpop.f32.mrb[0].mxu0
    %v867 = vadd.f32 0.0, %v866
    %v868 = vpop.f32.mrb[0].mxu0
    %869 = vmatprep.mubr.f32.mxu0 0.0
    %870 = vmatmul.mubr.f32.gmra.mrb[0].mxu0 %v728
    %v871 = vpop.f32.mrb[0].mxu0
    %v872 = vadd.f32 0.0, %v871
    %v873 = vpop.f32.mrb[0].mxu0
    %874 = vdwg.mxu0
    %v875 = vadd.f32 %v586, %v797
    %v876 = vadd.f32 %v591, %v802
    %v877 = vadd.f32 %v596, %v807
    %v878 = vadd.f32 %v601, %v812
    %v879 = vadd.f32 %v606, %v817
    %v880 = vadd.f32 %v611, %v822
    %v881 = vadd.f32 %v616, %v827
    %v882 = vadd.f32 %v621, %v832
    %v883 = vadd.f32 %v626, %v837
    %v884 = vadd.f32 %v631, %v842
    %v885 = vadd.f32 %v636, %v847
    %v886 = vadd.f32 %v641, %v852
    %v887 = vadd.f32 %v646, %v857
    %v888 = vadd.f32 %v651, %v862
    %v889 = vadd.f32 %v656, %v867
    %v890 = vadd.f32 %v661, %v872
    %v891 = vld [vmem:[%s226] sm:$0xff]
    %v892 = vld [vmem:[%s226 + $0x10] sm:$0xff]
    %v893 = vld [vmem:[%s226 + $0x20] sm:$0xff]
    %v894 = vld [vmem:[%s226 + $0x30] sm:$0xff]
    %v895 = vld [vmem:[%s226 + $0x40] sm:$0xff]
    %v896 = vld [vmem:[%s226 + $0x50] sm:$0xff]
    %v897 = vld [vmem:[%s226 + $0x60] sm:$0xff]
    %v898 = vld [vmem:[%s226 + $0x70] sm:$0xff]
    %v899 = vld [vmem:[%s226 + $0xa0] sm:$0xff]
    %v900 = vld [vmem:[%s226 + $0xb0] sm:$0xff]
    %v901 = vld [vmem:[%s226 + $0xc0] sm:$0xff]
    %v902 = vld [vmem:[%s226 + $0xd0] sm:$0xff]
    %v903 = vld [vmem:[%s226 + $0xe0] sm:$0xff]
    %v904 = vld [vmem:[%s226 + $0xf0] sm:$0xff]
    %v905 = vld [vmem:[%s226 + $0x100] sm:$0xff]
    %v906 = vld [vmem:[%s226 + $0x110] sm:$0xff]
    %s907 = scalar_lea.vmem [#allocation7], 24
    %v908 = vld [vmem:[%s907] sm:$0xff]
    %v910 = vsel %vm175, %v891, 0
    %v913 = vsel %vm175, %v892, 0
    %v916 = vsel %vm175, %v893, 0
    %v919 = vsel %vm175, %v894, 0
    %v922 = vsel %vm175, %v895, 0
    %v925 = vsel %vm175, %v896, 0
    %v928 = vsel %vm175, %v897, 0
    %v931 = vsel %vm175, %v898, 0
    %v934 = vsel %vm175, %v899, 0
    %v937 = vsel %vm175, %v900, 0
    %v940 = vsel %vm175, %v901, 0
    %v943 = vsel %vm175, %v902, 0
    %v946 = vsel %vm175, %v903, 0
    %v949 = vsel %vm175, %v904, 0
    %v952 = vsel %vm175, %v905, 0
    %v955 = vsel %vm175, %v906, 0
    %957 = vmatprep.subr.mxu0 0.0
    %958 = vmatpush1.msra.mxu0 %v908
    %959 = vmatprep.subr.mxu0 0.0
    %960 = vmatpush1.msra.mxu0 0.0
    %961 = vmatprep.subr.mxu0 0.0
    %962 = vmatpush1.msra.mxu0 0.0
    %963 = vmatprep.subr.mxu0 0.0
    %964 = vmatpush1.msra.mxu0 0.0
    %965 = vmatprep.subr.mxu0 0.0
    %966 = vmatpush1.msra.mxu0 0.0
    %967 = vmatprep.subr.mxu0 0.0
    %968 = vmatpush1.msra.mxu0 0.0
    %969 = vmatprep.subr.mxu0 0.0
    %970 = vmatpush1.msra.mxu0 0.0
    %971 = vmatprep.subr.mxu0 0.0
    %972 = vmatpush1.msra.mxu0 0.0
    %973 = vmatprep.subr.mxu0 0.0
    %974 = vmatpush1.msra.mxu0 0.0
    %975 = vmatprep.subr.mxu0 0.0
    %976 = vmatpush1.msra.mxu0 0.0
    %977 = vmatprep.subr.mxu0 0.0
    %978 = vmatpush1.msra.mxu0 0.0
    %979 = vmatprep.subr.mxu0 0.0
    %980 = vmatpush1.msra.mxu0 0.0
    %981 = vmatprep.subr.mxu0 0.0
    %982 = vmatpush1.msra.mxu0 0.0
    %983 = vmatprep.subr.mxu0 0.0
    %984 = vmatpush1.msra.mxu0 0.0
    %985 = vmatprep.subr.mxu0 0.0
    %986 = vmatpush1.msra.mxu0 0.0
    %987 = vmatprep.subr.mxu0 0.0
    %988 = vmatpush1.msra.mxu0 0.0
    %989 = vmatprep.subr.mxu0 0.0
    %990 = vmatpush1.msra.mxu0 0.0
    %991 = vmatprep.subr.mxu0 0.0
    %992 = vmatpush1.msra.mxu0 0.0
    %993 = vmatprep.subr.mxu0 0.0
    %994 = vmatpush1.msra.mxu0 0.0
    %995 = vmatprep.subr.mxu0 0.0
    %996 = vmatpush1.msra.mxu0 0.0
    %997 = vmatprep.subr.mxu0 0.0
    %998 = vmatpush1.msra.mxu0 0.0
    %999 = vmatprep.subr.mxu0 0.0
    %1000 = vmatpush1.msra.mxu0 0.0
    %1001 = vmatprep.subr.mxu0 0.0
    %1002 = vmatpush1.msra.mxu0 0.0
    %1003 = vmatprep.subr.mxu0 0.0
    %1004 = vmatpush1.msra.mxu0 0.0
    %1005 = vmatprep.subr.mxu0 0.0
    %1006 = vmatpush1.msra.mxu0 0.0
    %1007 = vmatprep.subr.mxu0 0.0
    %1008 = vmatpush1.msra.mxu0 0.0
    %1009 = vmatprep.subr.mxu0 0.0
    %1010 = vmatpush1.msra.mxu0 0.0
    %1011 = vmatprep.subr.mxu0 0.0
    %1012 = vmatpush1.msra.mxu0 0.0
    %1013 = vmatprep.subr.mxu0 0.0
    %1014 = vmatpush1.msra.mxu0 0.0
    %1015 = vmatprep.subr.mxu0 0.0
    %1016 = vmatpush1.msra.mxu0 0.0
    %1017 = vmatprep.subr.mxu0 0.0
    %1018 = vmatpush1.msra.mxu0 0.0
    %1019 = vmatprep.subr.mxu0 0.0
    %1020 = vmatpush1.msra.mxu0 0.0
    %1021 = vmatprep.mubr.f32.mxu0 0.0
    %1022 = vmatmul.mubr.f32.gmra.mrb[0].mxu0 %v910
    %v1023 = vpop.f32.mrb[0].mxu0
    %v1024 = vadd.f32 0.0, %v1023
    %v1025 = vpop.f32.mrb[0].mxu0
    %1026 = vmatprep.mubr.f32.mxu0 0.0
    %1027 = vmatmul.mubr.f32.gmra.mrb[0].mxu0 %v913
    %v1028 = vpop.f32.mrb[0].mxu0
    %v1029 = vadd.f32 0.0, %v1028
    %v1030 = vpop.f32.mrb[0].mxu0
    %1031 = vmatprep.mubr.f32.mxu0 0.0
    %1032 = vmatmul.mubr.f32.gmra.mrb[0].mxu0 %v916
    %v1033 = vpop.f32.mrb[0].mxu0
    %v1034 = vadd.f32 0.0, %v1033
    %v1035 = vpop.f32.mrb[0].mxu0
    %1036 = vmatprep.mubr.f32.mxu0 0.0
    %1037 = vmatmul.mubr.f32.gmra.mrb[0].mxu0 %v919
    %v1038 = vpop.f32.mrb[0].mxu0
    %v1039 = vadd.f32 0.0, %v1038
    %v1040 = vpop.f32.mrb[0].mxu0
    %1041 = vmatprep.mubr.f32.mxu0 0.0
    %1042 = vmatmul.mubr.f32.gmra.mrb[0].mxu0 %v922
    %v1043 = vpop.f32.mrb[0].mxu0
    %v1044 = vadd.f32 0.0, %v1043
    %v1045 = vpop.f32.mrb[0].mxu0
    %1046 = vmatprep.mubr.f32.mxu0 0.0
    %1047 = vmatmul.mubr.f32.gmra.mrb[0].mxu0 %v925
    %v1048 = vpop.f32.mrb[0].mxu0
    %v1049 = vadd.f32 0.0, %v1048
    %v1050 = vpop.f32.mrb[0].mxu0
    %1051 = vmatprep.mubr.f32.mxu0 0.0
    %1052 = vmatmul.mubr.f32.gmra.mrb[0].mxu0 %v928
    %v1053 = vpop.f32.mrb[0].mxu0
    %v1054 = vadd.f32 0.0, %v1053
    %v1055 = vpop.f32.mrb[0].mxu0
    %1056 = vmatprep.mubr.f32.mxu0 0.0
    %1057 = vmatmul.mubr.f32.gmra.mrb[0].mxu0 %v931
    %v1058 = vpop.f32.mrb[0].mxu0
    %v1059 = vadd.f32 0.0, %v1058
    %v1060 = vpop.f32.mrb[0].mxu0
    %1061 = vmatprep.mubr.f32.mxu0 0.0
    %1062 = vmatmul.mubr.f32.gmra.mrb[0].mxu0 %v934
    %v1063 = vpop.f32.mrb[0].mxu0
    %v1064 = vadd.f32 0.0, %v1063
    %v1065 = vpop.f32.mrb[0].mxu0
    %1066 = vmatprep.mubr.f32.mxu0 0.0
    %1067 = vmatmul.mubr.f32.gmra.mrb[0].mxu0 %v937
    %v1068 = vpop.f32.mrb[0].mxu0
    %v1069 = vadd.f32 0.0, %v1068
    %v1070 = vpop.f32.mrb[0].mxu0
    %1071 = vmatprep.mubr.f32.mxu0 0.0
    %1072 = vmatmul.mubr.f32.gmra.mrb[0].mxu0 %v940
    %v1073 = vpop.f32.mrb[0].mxu0
    %v1074 = vadd.f32 0.0, %v1073
    %v1075 = vpop.f32.mrb[0].mxu0
    %1076 = vmatprep.mubr.f32.mxu0 0.0
    %1077 = vmatmul.mubr.f32.gmra.mrb[0].mxu0 %v943
    %v1078 = vpop.f32.mrb[0].mxu0
    %v1079 = vadd.f32 0.0, %v1078
    %v1080 = vpop.f32.mrb[0].mxu0
    %1081 = vmatprep.mubr.f32.mxu0 0.0
    %1082 = vmatmul.mubr.f32.gmra.mrb[0].mxu0 %v946
    %v1083 = vpop.f32.mrb[0].mxu0
    %v1084 = vadd.f32 0.0, %v1083
    %v1085 = vpop.f32.mrb[0].mxu0
    %1086 = vmatprep.mubr.f32.mxu0 0.0
    %1087 = vmatmul.mubr.f32.gmra.mrb[0].mxu0 %v949
    %v1088 = vpop.f32.mrb[0].mxu0
    %v1089 = vadd.f32 0.0, %v1088
    %v1090 = vpop.f32.mrb[0].mxu0
    %1091 = vmatprep.mubr.f32.mxu0 0.0
    %1092 = vmatmul.mubr.f32.gmra.mrb[0].mxu0 %v952
    %v1093 = vpop.f32.mrb[0].mxu0
    %v1094 = vadd.f32 0.0, %v1093
    %v1095 = vpop.f32.mrb[0].mxu0
    %1096 = vmatprep.mubr.f32.mxu0 0.0
    %1097 = vmatmul.mubr.f32.gmra.mrb[0].mxu0 %v955
    %v1098 = vpop.f32.mrb[0].mxu0
    %v1099 = vadd.f32 0.0, %v1098
    %v1100 = vpop.f32.mrb[0].mxu0
    %1101 = vdwg.mxu0
    %v1102 = vadd.f32 %v875, %v1024
    %v1103 = vadd.f32 %v876, %v1029
    %v1104 = vadd.f32 %v877, %v1034
    %v1105 = vadd.f32 %v878, %v1039
    %v1106 = vadd.f32 %v879, %v1044
    %v1107 = vadd.f32 %v880, %v1049
    %v1108 = vadd.f32 %v881, %v1054
    %v1109 = vadd.f32 %v882, %v1059
    %v1110 = vadd.f32 %v883, %v1064
    %v1111 = vadd.f32 %v884, %v1069
    %v1112 = vadd.f32 %v885, %v1074
    %v1113 = vadd.f32 %v886, %v1079
    %v1114 = vadd.f32 %v887, %v1084
    %v1115 = vadd.f32 %v888, %v1089
    %v1116 = vadd.f32 %v889, %v1094
    %v1117 = vadd.f32 %v890, %v1099
    %v1118 = vld [vmem:[%s226 + $0x1] sm:$0xff]
    %v1119 = vld [vmem:[%s226 + $0x11] sm:$0xff]
    %v1120 = vld [vmem:[%s226 + $0x21] sm:$0xff]
    %v1121 = vld [vmem:[%s226 + $0x31] sm:$0xff]
    %v1122 = vld [vmem:[%s226 + $0x41] sm:$0xff]
    %v1123 = vld [vmem:[%s226 + $0x51] sm:$0xff]
    %v1124 = vld [vmem:[%s226 + $0x61] sm:$0xff]
    %v1125 = vld [vmem:[%s226 + $0x71] sm:$0xff]
    %v1126 = vld [vmem:[%s226 + $0xa1] sm:$0xff]
    %v1127 = vld [vmem:[%s226 + $0xb1] sm:$0xff]
    %v1128 = vld [vmem:[%s226 + $0xc1] sm:$0xff]
    %v1129 = vld [vmem:[%s226 + $0xd1] sm:$0xff]
    %v1130 = vld [vmem:[%s226 + $0xe1] sm:$0xff]
    %v1131 = vld [vmem:[%s226 + $0xf1] sm:$0xff]
    %v1132 = vld [vmem:[%s226 + $0x101] sm:$0xff]
    %v1133 = vld [vmem:[%s226 + $0x111] sm:$0xff]
    %s1134 = scalar_lea.vmem [#allocation7], 32
    %v1135 = vld [vmem:[%s1134] sm:$0xff]
    %v1137 = vsel %vm175, %v1118, 0
    %v1140 = vsel %vm175, %v1119, 0
    %v1143 = vsel %vm175, %v1120, 0
    %v1146 = vsel %vm175, %v1121, 0
    %v1149 = vsel %vm175, %v1122, 0
    %v1152 = vsel %vm175, %v1123, 0
    %v1155 = vsel %vm175, %v1124, 0
    %v1158 = vsel %vm175, %v1125, 0
    %v1161 = vsel %vm175, %v1126, 0
    %v1164 = vsel %vm175, %v1127, 0
    %v1167 = vsel %vm175, %v1128, 0
    %v1170 = vsel %vm175, %v1129, 0
    %v1173 = vsel %vm175, %v1130, 0
    %v1176 = vsel %vm175, %v1131, 0
    %v1179 = vsel %vm175, %v1132, 0
    %v1182 = vsel %vm175, %v1133, 0
    %1184 = vmatprep.subr.mxu0 0.0
    %1185 = vmatpush1.msra.mxu0 %v1135
    %1186 = vmatprep.subr.mxu0 0.0
    %1187 = vmatpush1.msra.mxu0 0.0
    %1188 = vmatprep.subr.mxu0 0.0
    %1189 = vmatpush1.msra.mxu0 0.0
    %1190 = vmatprep.subr.mxu0 0.0
    %1191 = vmatpush1.msra.mxu0 0.0
    %1192 = vmatprep.subr.mxu0 0.0
    %1193 = vmatpush1.msra.mxu0 0.0
    %1194 = vmatprep.subr.mxu0 0.0
    %1195 = vmatpush1.msra.mxu0 0.0
    %1196 = vmatprep.subr.mxu0 0.0
    %1197 = vmatpush1.msra.mxu0 0.0
    %1198 = vmatprep.subr.mxu0 0.0
    %1199 = vmatpush1.msra.mxu0 0.0
    %1200 = vmatprep.subr.mxu0 0.0
    %1201 = vmatpush1.msra.mxu0 0.0
    %1202 = vmatprep.subr.mxu0 0.0
    %1203 = vmatpush1.msra.mxu0 0.0
    %1204 = vmatprep.subr.mxu0 0.0
    %1205 = vmatpush1.msra.mxu0 0.0
    %1206 = vmatprep.subr.mxu0 0.0
    %1207 = vmatpush1.msra.mxu0 0.0
    %1208 = vmatprep.subr.mxu0 0.0
    %1209 = vmatpush1.msra.mxu0 0.0
    %1210 = vmatprep.subr.mxu0 0.0
    %1211 = vmatpush1.msra.mxu0 0.0
    %1212 = vmatprep.subr.mxu0 0.0
    %1213 = vmatpush1.msra.mxu0 0.0
    %1214 = vmatprep.subr.mxu0 0.0
    %1215 = vmatpush1.msra.mxu0 0.0
    %1216 = vmatprep.subr.mxu0 0.0
    %1217 = vmatpush1.msra.mxu0 0.0
    %1218 = vmatprep.subr.mxu0 0.0
    %1219 = vmatpush1.msra.mxu0 0.0
    %1220 = vmatprep.subr.mxu0 0.0
    %1221 = vmatpush1.msra.mxu0 0.0
    %1222 = vmatprep.subr.mxu0 0.0
    %1223 = vmatpush1.msra.mxu0 0.0
    %1224 = vmatprep.subr.mxu0 0.0
    %1225 = vmatpush1.msra.mxu0 0.0
    %1226 = vmatprep.subr.mxu0 0.0
    %1227 = vmatpush1.msra.mxu0 0.0
    %1228 = vmatprep.subr.mxu0 0.0
    %1229 = vmatpush1.msra.mxu0 0.0
    %1230 = vmatprep.subr.mxu0 0.0
    %1231 = vmatpush1.msra.mxu0 0.0
    %1232 = vmatprep.subr.mxu0 0.0
    %1233 = vmatpush1.msra.mxu0 0.0
    %1234 = vmatprep.subr.mxu0 0.0
    %1235 = vmatpush1.msra.mxu0 0.0
    %1236 = vmatprep.subr.mxu0 0.0
    %1237 = vmatpush1.msra.mxu0 0.0
    %1238 = vmatprep.subr.mxu0 0.0
    %1239 = vmatpush1.msra.mxu0 0.0
    %1240 = vmatprep.subr.mxu0 0.0
    %1241 = vmatpush1.msra.mxu0 0.0
    %1242 = vmatprep.subr.mxu0 0.0
    %1243 = vmatpush1.msra.mxu0 0.0
    %1244 = vmatprep.subr.mxu0 0.0
    %1245 = vmatpush1.msra.mxu0 0.0
    %1246 = vmatprep.subr.mxu0 0.0
    %1247 = vmatpush1.msra.mxu0 0.0
    %1248 = vmatprep.mubr.f32.mxu0 0.0
    %1249 = vmatmul.mubr.f32.gmra.mrb[0].mxu0 %v1137
    %v1250 = vpop.f32.mrb[0].mxu0
    %v1251 = vadd.f32 0.0, %v1250
    %v1252 = vpop.f32.mrb[0].mxu0
    %1253 = vmatprep.mubr.f32.mxu0 0.0
    %1254 = vmatmul.mubr.f32.gmra.mrb[0].mxu0 %v1140
    %v1255 = vpop.f32.mrb[0].mxu0
    %v1256 = vadd.f32 0.0, %v1255
    %v1257 = vpop.f32.mrb[0].mxu0
    %1258 = vmatprep.mubr.f32.mxu0 0.0
    %1259 = vmatmul.mubr.f32.gmra.mrb[0].mxu0 %v1143
    %v1260 = vpop.f32.mrb[0].mxu0
    %v1261 = vadd.f32 0.0, %v1260
    %v1262 = vpop.f32.mrb[0].mxu0
    %1263 = vmatprep.mubr.f32.mxu0 0.0
    %1264 = vmatmul.mubr.f32.gmra.mrb[0].mxu0 %v1146
    %v1265 = vpop.f32.mrb[0].mxu0
    %v1266 = vadd.f32 0.0, %v1265
    %v1267 = vpop.f32.mrb[0].mxu0
    %1268 = vmatprep.mubr.f32.mxu0 0.0
    %1269 = vmatmul.mubr.f32.gmra.mrb[0].mxu0 %v1149
    %v1270 = vpop.f32.mrb[0].mxu0
    %v1271 = vadd.f32 0.0, %v1270
    %v1272 = vpop.f32.mrb[0].mxu0
    %1273 = vmatprep.mubr.f32.mxu0 0.0
    %1274 = vmatmul.mubr.f32.gmra.mrb[0].mxu0 %v1152
    %v1275 = vpop.f32.mrb[0].mxu0
    %v1276 = vadd.f32 0.0, %v1275
    %v1277 = vpop.f32.mrb[0].mxu0
    %1278 = vmatprep.mubr.f32.mxu0 0.0
    %1279 = vmatmul.mubr.f32.gmra.mrb[0].mxu0 %v1155
    %v1280 = vpop.f32.mrb[0].mxu0
    %v1281 = vadd.f32 0.0, %v1280
    %v1282 = vpop.f32.mrb[0].mxu0
    %1283 = vmatprep.mubr.f32.mxu0 0.0
    %1284 = vmatmul.mubr.f32.gmra.mrb[0].mxu0 %v1158
    %v1285 = vpop.f32.mrb[0].mxu0
    %v1286 = vadd.f32 0.0, %v1285
    %v1287 = vpop.f32.mrb[0].mxu0
    %1288 = vmatprep.mubr.f32.mxu0 0.0
    %1289 = vmatmul.mubr.f32.gmra.mrb[0].mxu0 %v1161
    %v1290 = vpop.f32.mrb[0].mxu0
    %v1291 = vadd.f32 0.0, %v1290
    %v1292 = vpop.f32.mrb[0].mxu0
    %1293 = vmatprep.mubr.f32.mxu0 0.0
    %1294 = vmatmul.mubr.f32.gmra.mrb[0].mxu0 %v1164
    %v1295 = vpop.f32.mrb[0].mxu0
    %v1296 = vadd.f32 0.0, %v1295
    %v1297 = vpop.f32.mrb[0].mxu0
    %1298 = vmatprep.mubr.f32.mxu0 0.0
    %1299 = vmatmul.mubr.f32.gmra.mrb[0].mxu0 %v1167
    %v1300 = vpop.f32.mrb[0].mxu0
    %v1301 = vadd.f32 0.0, %v1300
    %v1302 = vpop.f32.mrb[0].mxu0
    %1303 = vmatprep.mubr.f32.mxu0 0.0
    %1304 = vmatmul.mubr.f32.gmra.mrb[0].mxu0 %v1170
    %v1305 = vpop.f32.mrb[0].mxu0
    %v1306 = vadd.f32 0.0, %v1305
    %v1307 = vpop.f32.mrb[0].mxu0
    %1308 = vmatprep.mubr.f32.mxu0 0.0
    %1309 = vmatmul.mubr.f32.gmra.mrb[0].mxu0 %v1173
    %v1310 = vpop.f32.mrb[0].mxu0
    %v1311 = vadd.f32 0.0, %v1310
    %v1312 = vpop.f32.mrb[0].mxu0
    %1313 = vmatprep.mubr.f32.mxu0 0.0
    %1314 = vmatmul.mubr.f32.gmra.mrb[0].mxu0 %v1176
    %v1315 = vpop.f32.mrb[0].mxu0
    %v1316 = vadd.f32 0.0, %v1315
    %v1317 = vpop.f32.mrb[0].mxu0
    %1318 = vmatprep.mubr.f32.mxu0 0.0
    %1319 = vmatmul.mubr.f32.gmra.mrb[0].mxu0 %v1179
    %v1320 = vpop.f32.mrb[0].mxu0
    %v1321 = vadd.f32 0.0, %v1320
    %v1322 = vpop.f32.mrb[0].mxu0
    %1323 = vmatprep.mubr.f32.mxu0 0.0
    %1324 = vmatmul.mubr.f32.gmra.mrb[0].mxu0 %v1182
    %v1325 = vpop.f32.mrb[0].mxu0
    %v1326 = vadd.f32 0.0, %v1325
    %v1327 = vpop.f32.mrb[0].mxu0
    %1328 = vdwg.mxu0
    %v1329 = vadd.f32 %v1102, %v1251
    %v1330 = vadd.f32 %v1103, %v1256
    %v1331 = vadd.f32 %v1104, %v1261
    %v1332 = vadd.f32 %v1105, %v1266
    %v1333 = vadd.f32 %v1106, %v1271
    %v1334 = vadd.f32 %v1107, %v1276
    %v1335 = vadd.f32 %v1108, %v1281
    %v1336 = vadd.f32 %v1109, %v1286
    %v1337 = vadd.f32 %v1110, %v1291
    %v1338 = vadd.f32 %v1111, %v1296
    %v1339 = vadd.f32 %v1112, %v1301
    %v1340 = vadd.f32 %v1113, %v1306
    %v1341 = vadd.f32 %v1114, %v1311
    %v1342 = vadd.f32 %v1115, %v1316
    %v1343 = vadd.f32 %v1116, %v1321
    %v1344 = vadd.f32 %v1117, %v1326
    %v1345 = vld [vmem:[%s226 + $0x2] sm:$0xff]
    %v1346 = vld [vmem:[%s226 + $0x12] sm:$0xff]
    %v1347 = vld [vmem:[%s226 + $0x22] sm:$0xff]
    %v1348 = vld [vmem:[%s226 + $0x32] sm:$0xff]
    %v1349 = vld [vmem:[%s226 + $0x42] sm:$0xff]
    %v1350 = vld [vmem:[%s226 + $0x52] sm:$0xff]
    %v1351 = vld [vmem:[%s226 + $0x62] sm:$0xff]
    %v1352 = vld [vmem:[%s226 + $0x72] sm:$0xff]
    %v1353 = vld [vmem:[%s226 + $0xa2] sm:$0xff]
    %v1354 = vld [vmem:[%s226 + $0xb2] sm:$0xff]
    %v1355 = vld [vmem:[%s226 + $0xc2] sm:$0xff]
    %v1356 = vld [vmem:[%s226 + $0xd2] sm:$0xff]
    %v1357 = vld [vmem:[%s226 + $0xe2] sm:$0xff]
    %v1358 = vld [vmem:[%s226 + $0xf2] sm:$0xff]
    %v1359 = vld [vmem:[%s226 + $0x102] sm:$0xff]
    %v1360 = vld [vmem:[%s226 + $0x112] sm:$0xff]
    %s1361 = scalar_lea.vmem [#allocation7], 40
    %v1362 = vld [vmem:[%s1361] sm:$0xff]
    %v1364 = vsel %vm175, %v1345, 0
    %v1367 = vsel %vm175, %v1346, 0
    %v1370 = vsel %vm175, %v1347, 0
    %v1373 = vsel %vm175, %v1348, 0
    %v1376 = vsel %vm175, %v1349, 0
    %v1379 = vsel %vm175, %v1350, 0
    %v1382 = vsel %vm175, %v1351, 0
    %v1385 = vsel %vm175, %v1352, 0
    %v1388 = vsel %vm175, %v1353, 0
    %v1391 = vsel %vm175, %v1354, 0
    %v1394 = vsel %vm175, %v1355, 0
    %v1397 = vsel %vm175, %v1356, 0
    %v1400 = vsel %vm175, %v1357, 0
    %v1403 = vsel %vm175, %v1358, 0
    %v1406 = vsel %vm175, %v1359, 0
    %v1409 = vsel %vm175, %v1360, 0
    %1411 = vmatprep.subr.mxu0 0.0
    %1412 = vmatpush1.msra.mxu0 %v1362
    %1413 = vmatprep.subr.mxu0 0.0
    %1414 = vmatpush1.msra.mxu0 0.0
    %1415 = vmatprep.subr.mxu0 0.0
    %1416 = vmatpush1.msra.mxu0 0.0
    %1417 = vmatprep.subr.mxu0 0.0
    %1418 = vmatpush1.msra.mxu0 0.0
    %1419 = vmatprep.subr.mxu0 0.0
    %1420 = vmatpush1.msra.mxu0 0.0
    %1421 = vmatprep.subr.mxu0 0.0
    %1422 = vmatpush1.msra.mxu0 0.0
    %1423 = vmatprep.subr.mxu0 0.0
    %1424 = vmatpush1.msra.mxu0 0.0
    %1425 = vmatprep.subr.mxu0 0.0
    %1426 = vmatpush1.msra.mxu0 0.0
    %1427 = vmatprep.subr.mxu0 0.0
    %1428 = vmatpush1.msra.mxu0 0.0
    %1429 = vmatprep.subr.mxu0 0.0
    %1430 = vmatpush1.msra.mxu0 0.0
    %1431 = vmatprep.subr.mxu0 0.0
    %1432 = vmatpush1.msra.mxu0 0.0
    %1433 = vmatprep.subr.mxu0 0.0
    %1434 = vmatpush1.msra.mxu0 0.0
    %1435 = vmatprep.subr.mxu0 0.0
    %1436 = vmatpush1.msra.mxu0 0.0
    %1437 = vmatprep.subr.mxu0 0.0
    %1438 = vmatpush1.msra.mxu0 0.0
    %1439 = vmatprep.subr.mxu0 0.0
    %1440 = vmatpush1.msra.mxu0 0.0
    %1441 = vmatprep.subr.mxu0 0.0
    %1442 = vmatpush1.msra.mxu0 0.0
    %1443 = vmatprep.subr.mxu0 0.0
    %1444 = vmatpush1.msra.mxu0 0.0
    %1445 = vmatprep.subr.mxu0 0.0
    %1446 = vmatpush1.msra.mxu0 0.0
    %1447 = vmatprep.subr.mxu0 0.0
    %1448 = vmatpush1.msra.mxu0 0.0
    %1449 = vmatprep.subr.mxu0 0.0
    %1450 = vmatpush1.msra.mxu0 0.0
    %1451 = vmatprep.subr.mxu0 0.0
    %1452 = vmatpush1.msra.mxu0 0.0
    %1453 = vmatprep.subr.mxu0 0.0
    %1454 = vmatpush1.msra.mxu0 0.0
    %1455 = vmatprep.subr.mxu0 0.0
    %1456 = vmatpush1.msra.mxu0 0.0
    %1457 = vmatprep.subr.mxu0 0.0
    %1458 = vmatpush1.msra.mxu0 0.0
    %1459 = vmatprep.subr.mxu0 0.0
    %1460 = vmatpush1.msra.mxu0 0.0
    %1461 = vmatprep.subr.mxu0 0.0
    %1462 = vmatpush1.msra.mxu0 0.0
    %1463 = vmatprep.subr.mxu0 0.0
    %1464 = vmatpush1.msra.mxu0 0.0
    %1465 = vmatprep.subr.mxu0 0.0
    %1466 = vmatpush1.msra.mxu0 0.0
    %1467 = vmatprep.subr.mxu0 0.0
    %1468 = vmatpush1.msra.mxu0 0.0
    %1469 = vmatprep.subr.mxu0 0.0
    %1470 = vmatpush1.msra.mxu0 0.0
    %1471 = vmatprep.subr.mxu0 0.0
    %1472 = vmatpush1.msra.mxu0 0.0
    %1473 = vmatprep.subr.mxu0 0.0
    %1474 = vmatpush1.msra.mxu0 0.0
    %1475 = vmatprep.mubr.f32.mxu0 0.0
    %1476 = vmatmul.mubr.f32.gmra.mrb[0].mxu0 %v1364
    %v1477 = vpop.f32.mrb[0].mxu0
    %v1478 = vadd.f32 0.0, %v1477
    %v1479 = vpop.f32.mrb[0].mxu0
    %1480 = vmatprep.mubr.f32.mxu0 0.0
    %1481 = vmatmul.mubr.f32.gmra.mrb[0].mxu0 %v1367
    %v1482 = vpop.f32.mrb[0].mxu0
    %v1483 = vadd.f32 0.0, %v1482
    %v1484 = vpop.f32.mrb[0].mxu0
    %1485 = vmatprep.mubr.f32.mxu0 0.0
    %1486 = vmatmul.mubr.f32.gmra.mrb[0].mxu0 %v1370
    %v1487 = vpop.f32.mrb[0].mxu0
    %v1488 = vadd.f32 0.0, %v1487
    %v1489 = vpop.f32.mrb[0].mxu0
    %1490 = vmatprep.mubr.f32.mxu0 0.0
    %1491 = vmatmul.mubr.f32.gmra.mrb[0].mxu0 %v1373
    %v1492 = vpop.f32.mrb[0].mxu0
    %v1493 = vadd.f32 0.0, %v1492
    %v1494 = vpop.f32.mrb[0].mxu0
    %1495 = vmatprep.mubr.f32.mxu0 0.0
    %1496 = vmatmul.mubr.f32.gmra.mrb[0].mxu0 %v1376
    %v1497 = vpop.f32.mrb[0].mxu0
    %v1498 = vadd.f32 0.0, %v1497
    %v1499 = vpop.f32.mrb[0].mxu0
    %1500 = vmatprep.mubr.f32.mxu0 0.0
    %1501 = vmatmul.mubr.f32.gmra.mrb[0].mxu0 %v1379
    %v1502 = vpop.f32.mrb[0].mxu0
    %v1503 = vadd.f32 0.0, %v1502
    %v1504 = vpop.f32.mrb[0].mxu0
    %1505 = vmatprep.mubr.f32.mxu0 0.0
    %1506 = vmatmul.mubr.f32.gmra.mrb[0].mxu0 %v1382
    %v1507 = vpop.f32.mrb[0].mxu0
    %v1508 = vadd.f32 0.0, %v1507
    %v1509 = vpop.f32.mrb[0].mxu0
    %1510 = vmatprep.mubr.f32.mxu0 0.0
    %1511 = vmatmul.mubr.f32.gmra.mrb[0].mxu0 %v1385
    %v1512 = vpop.f32.mrb[0].mxu0
    %v1513 = vadd.f32 0.0, %v1512
    %v1514 = vpop.f32.mrb[0].mxu0
    %1515 = vmatprep.mubr.f32.mxu0 0.0
    %1516 = vmatmul.mubr.f32.gmra.mrb[0].mxu0 %v1388
    %v1517 = vpop.f32.mrb[0].mxu0
    %v1518 = vadd.f32 0.0, %v1517
    %v1519 = vpop.f32.mrb[0].mxu0
    %1520 = vmatprep.mubr.f32.mxu0 0.0
    %1521 = vmatmul.mubr.f32.gmra.mrb[0].mxu0 %v1391
    %v1522 = vpop.f32.mrb[0].mxu0
    %v1523 = vadd.f32 0.0, %v1522
    %v1524 = vpop.f32.mrb[0].mxu0
    %1525 = vmatprep.mubr.f32.mxu0 0.0
    %1526 = vmatmul.mubr.f32.gmra.mrb[0].mxu0 %v1394
    %v1527 = vpop.f32.mrb[0].mxu0
    %v1528 = vadd.f32 0.0, %v1527
    %v1529 = vpop.f32.mrb[0].mxu0
    %1530 = vmatprep.mubr.f32.mxu0 0.0
    %1531 = vmatmul.mubr.f32.gmra.mrb[0].mxu0 %v1397
    %v1532 = vpop.f32.mrb[0].mxu0
    %v1533 = vadd.f32 0.0, %v1532
    %v1534 = vpop.f32.mrb[0].mxu0
    %1535 = vmatprep.mubr.f32.mxu0 0.0
    %1536 = vmatmul.mubr.f32.gmra.mrb[0].mxu0 %v1400
    %v1537 = vpop.f32.mrb[0].mxu0
    %v1538 = vadd.f32 0.0, %v1537
    %v1539 = vpop.f32.mrb[0].mxu0
    %1540 = vmatprep.mubr.f32.mxu0 0.0
    %1541 = vmatmul.mubr.f32.gmra.mrb[0].mxu0 %v1403
    %v1542 = vpop.f32.mrb[0].mxu0
    %v1543 = vadd.f32 0.0, %v1542
    %v1544 = vpop.f32.mrb[0].mxu0
    %1545 = vmatprep.mubr.f32.mxu0 0.0
    %1546 = vmatmul.mubr.f32.gmra.mrb[0].mxu0 %v1406
    %v1547 = vpop.f32.mrb[0].mxu0
    %v1548 = vadd.f32 0.0, %v1547
    %v1549 = vpop.f32.mrb[0].mxu0
    %1550 = vmatprep.mubr.f32.mxu0 0.0
    %1551 = vmatmul.mubr.f32.gmra.mrb[0].mxu0 %v1409
    %v1552 = vpop.f32.mrb[0].mxu0
    %v1553 = vadd.f32 0.0, %v1552
    %v1554 = vpop.f32.mrb[0].mxu0
    %1555 = vdwg.mxu0
    %v1556 = vadd.f32 %v1329, %v1478
    %v1557 = vadd.f32 %v1330, %v1483
    %v1558 = vadd.f32 %v1331, %v1488
    %v1559 = vadd.f32 %v1332, %v1493
    %v1560 = vadd.f32 %v1333, %v1498
    %v1561 = vadd.f32 %v1334, %v1503
    %v1562 = vadd.f32 %v1335, %v1508
    %v1563 = vadd.f32 %v1336, %v1513
    %v1564 = vadd.f32 %v1337, %v1518
    %v1565 = vadd.f32 %v1338, %v1523
    %v1566 = vadd.f32 %v1339, %v1528
    %v1567 = vadd.f32 %v1340, %v1533
    %v1568 = vadd.f32 %v1341, %v1538
    %v1569 = vadd.f32 %v1342, %v1543
    %v1570 = vadd.f32 %v1343, %v1548
    %v1571 = vadd.f32 %v1344, %v1553
    %s1572 = scalar_lea.vmem [#allocation2], 32
    %v1573 = vld [vmem:[%s1572] sm:$0xff]
    %v1574 = vld [vmem:[%s1572 + $0x10] sm:$0xff]
    %v1575 = vld [vmem:[%s1572 + $0x20] sm:$0xff]
    %v1576 = vld [vmem:[%s1572 + $0x30] sm:$0xff]
    %v1577 = vld [vmem:[%s1572 + $0x40] sm:$0xff]
    %v1578 = vld [vmem:[%s1572 + $0x50] sm:$0xff]
    %v1579 = vld [vmem:[%s1572 + $0x60] sm:$0xff]
    %v1580 = vld [vmem:[%s1572 + $0x70] sm:$0xff]
    %v1581 = vld [vmem:[%s1572 + $0xa0] sm:$0xff]
    %v1582 = vld [vmem:[%s1572 + $0xb0] sm:$0xff]
    %v1583 = vld [vmem:[%s1572 + $0xc0] sm:$0xff]
    %v1584 = vld [vmem:[%s1572 + $0xd0] sm:$0xff]
    %v1585 = vld [vmem:[%s1572 + $0xe0] sm:$0xff]
    %v1586 = vld [vmem:[%s1572 + $0xf0] sm:$0xff]
    %v1587 = vld [vmem:[%s1572 + $0x100] sm:$0xff]
    %v1588 = vld [vmem:[%s1572 + $0x110] sm:$0xff]
    %s1589 = scalar_lea.vmem [#allocation7], 48
    %v1590 = vld [vmem:[%s1589] sm:$0xff]
    %v1592 = vsel %vm175, %v1573, 0
    %v1595 = vsel %vm175, %v1574, 0
    %v1598 = vsel %vm175, %v1575, 0
    %v1601 = vsel %vm175, %v1576, 0
    %v1604 = vsel %vm175, %v1577, 0
    %v1607 = vsel %vm175, %v1578, 0
    %v1610 = vsel %vm175, %v1579, 0
    %v1613 = vsel %vm175, %v1580, 0
    %v1616 = vsel %vm175, %v1581, 0
    %v1619 = vsel %vm175, %v1582, 0
    %v1622 = vsel %vm175, %v1583, 0
    %v1625 = vsel %vm175, %v1584, 0
    %v1628 = vsel %vm175, %v1585, 0
    %v1631 = vsel %vm175, %v1586, 0
    %v1634 = vsel %vm175, %v1587, 0
    %v1637 = vsel %vm175, %v1588, 0
    %1639 = vmatprep.subr.mxu0 0.0
    %1640 = vmatpush1.msra.mxu0 %v1590
    %1641 = vmatprep.subr.mxu0 0.0
    %1642 = vmatpush1.msra.mxu0 0.0
    %1643 = vmatprep.subr.mxu0 0.0
    %1644 = vmatpush1.msra.mxu0 0.0
    %1645 = vmatprep.subr.mxu0 0.0
    %1646 = vmatpush1.msra.mxu0 0.0
    %1647 = vmatprep.subr.mxu0 0.0
    %1648 = vmatpush1.msra.mxu0 0.0
    %1649 = vmatprep.subr.mxu0 0.0
    %1650 = vmatpush1.msra.mxu0 0.0
    %1651 = vmatprep.subr.mxu0 0.0
    %1652 = vmatpush1.msra.mxu0 0.0
    %1653 = vmatprep.subr.mxu0 0.0
    %1654 = vmatpush1.msra.mxu0 0.0
    %1655 = vmatprep.subr.mxu0 0.0
    %1656 = vmatpush1.msra.mxu0 0.0
    %1657 = vmatprep.subr.mxu0 0.0
    %1658 = vmatpush1.msra.mxu0 0.0
    %1659 = vmatprep.subr.mxu0 0.0
    %1660 = vmatpush1.msra.mxu0 0.0
    %1661 = vmatprep.subr.mxu0 0.0
    %1662 = vmatpush1.msra.mxu0 0.0
    %1663 = vmatprep.subr.mxu0 0.0
    %1664 = vmatpush1.msra.mxu0 0.0
    %1665 = vmatprep.subr.mxu0 0.0
    %1666 = vmatpush1.msra.mxu0 0.0
    %1667 = vmatprep.subr.mxu0 0.0
    %1668 = vmatpush1.msra.mxu0 0.0
    %1669 = vmatprep.subr.mxu0 0.0
    %1670 = vmatpush1.msra.mxu0 0.0
    %1671 = vmatprep.subr.mxu0 0.0
    %1672 = vmatpush1.msra.mxu0 0.0
    %1673 = vmatprep.subr.mxu0 0.0
    %1674 = vmatpush1.msra.mxu0 0.0
    %1675 = vmatprep.subr.mxu0 0.0
    %1676 = vmatpush1.msra.mxu0 0.0
    %1677 = vmatprep.subr.mxu0 0.0
    %1678 = vmatpush1.msra.mxu0 0.0
    %1679 = vmatprep.subr.mxu0 0.0
    %1680 = vmatpush1.msra.mxu0 0.0
    %1681 = vmatprep.subr.mxu0 0.0
    %1682 = vmatpush1.msra.mxu0 0.0
    %1683 = vmatprep.subr.mxu0 0.0
    %1684 = vmatpush1.msra.mxu0 0.0
    %1685 = vmatprep.subr.mxu0 0.0
    %1686 = vmatpush1.msra.mxu0 0.0
    %1687 = vmatprep.subr.mxu0 0.0
    %1688 = vmatpush1.msra.mxu0 0.0
    %1689 = vmatprep.subr.mxu0 0.0
    %1690 = vmatpush1.msra.mxu0 0.0
    %1691 = vmatprep.subr.mxu0 0.0
    %1692 = vmatpush1.msra.mxu0 0.0
    %1693 = vmatprep.subr.mxu0 0.0
    %1694 = vmatpush1.msra.mxu0 0.0
    %1695 = vmatprep.subr.mxu0 0.0
    %1696 = vmatpush1.msra.mxu0 0.0
    %1697 = vmatprep.subr.mxu0 0.0
    %1698 = vmatpush1.msra.mxu0 0.0
    %1699 = vmatprep.subr.mxu0 0.0
    %1700 = vmatpush1.msra.mxu0 0.0
    %1701 = vmatprep.subr.mxu0 0.0
    %1702 = vmatpush1.msra.mxu0 0.0
    %1703 = vmatprep.mubr.f32.mxu0 0.0
    %1704 = vmatmul.mubr.f32.gmra.mrb[0].mxu0 %v1592
    %v1705 = vpop.f32.mrb[0].mxu0
    %v1706 = vadd.f32 0.0, %v1705
    %v1707 = vpop.f32.mrb[0].mxu0
    %1708 = vmatprep.mubr.f32.mxu0 0.0
    %1709 = vmatmul.mubr.f32.gmra.mrb[0].mxu0 %v1595
    %v1710 = vpop.f32.mrb[0].mxu0
    %v1711 = vadd.f32 0.0, %v1710
    %v1712 = vpop.f32.mrb[0].mxu0
    %1713 = vmatprep.mubr.f32.mxu0 0.0
    %1714 = vmatmul.mubr.f32.gmra.mrb[0].mxu0 %v1598
    %v1715 = vpop.f32.mrb[0].mxu0
    %v1716 = vadd.f32 0.0, %v1715
    %v1717 = vpop.f32.mrb[0].mxu0
    %1718 = vmatprep.mubr.f32.mxu0 0.0
    %1719 = vmatmul.mubr.f32.gmra.mrb[0].mxu0 %v1601
    %v1720 = vpop.f32.mrb[0].mxu0
    %v1721 = vadd.f32 0.0, %v1720
    %v1722 = vpop.f32.mrb[0].mxu0
    %1723 = vmatprep.mubr.f32.mxu0 0.0
    %1724 = vmatmul.mubr.f32.gmra.mrb[0].mxu0 %v1604
    %v1725 = vpop.f32.mrb[0].mxu0
    %v1726 = vadd.f32 0.0, %v1725
    %v1727 = vpop.f32.mrb[0].mxu0
    %1728 = vmatprep.mubr.f32.mxu0 0.0
    %1729 = vmatmul.mubr.f32.gmra.mrb[0].mxu0 %v1607
    %v1730 = vpop.f32.mrb[0].mxu0
    %v1731 = vadd.f32 0.0, %v1730
    %v1732 = vpop.f32.mrb[0].mxu0
    %1733 = vmatprep.mubr.f32.mxu0 0.0
    %1734 = vmatmul.mubr.f32.gmra.mrb[0].mxu0 %v1610
    %v1735 = vpop.f32.mrb[0].mxu0
    %v1736 = vadd.f32 0.0, %v1735
    %v1737 = vpop.f32.mrb[0].mxu0
    %1738 = vmatprep.mubr.f32.mxu0 0.0
    %1739 = vmatmul.mubr.f32.gmra.mrb[0].mxu0 %v1613
    %v1740 = vpop.f32.mrb[0].mxu0
    %v1741 = vadd.f32 0.0, %v1740
    %v1742 = vpop.f32.mrb[0].mxu0
    %1743 = vmatprep.mubr.f32.mxu0 0.0
    %1744 = vmatmul.mubr.f32.gmra.mrb[0].mxu0 %v1616
    %v1745 = vpop.f32.mrb[0].mxu0
    %v1746 = vadd.f32 0.0, %v1745
    %v1747 = vpop.f32.mrb[0].mxu0
    %1748 = vmatprep.mubr.f32.mxu0 0.0
    %1749 = vmatmul.mubr.f32.gmra.mrb[0].mxu0 %v1619
    %v1750 = vpop.f32.mrb[0].mxu0
    %v1751 = vadd.f32 0.0, %v1750
    %v1752 = vpop.f32.mrb[0].mxu0
    %1753 = vmatprep.mubr.f32.mxu0 0.0
    %1754 = vmatmul.mubr.f32.gmra.mrb[0].mxu0 %v1622
    %v1755 = vpop.f32.mrb[0].mxu0
    %v1756 = vadd.f32 0.0, %v1755
    %v1757 = vpop.f32.mrb[0].mxu0
    %1758 = vmatprep.mubr.f32.mxu0 0.0
    %1759 = vmatmul.mubr.f32.gmra.mrb[0].mxu0 %v1625
    %v1760 = vpop.f32.mrb[0].mxu0
    %v1761 = vadd.f32 0.0, %v1760
    %v1762 = vpop.f32.mrb[0].mxu0
    %1763 = vmatprep.mubr.f32.mxu0 0.0
    %1764 = vmatmul.mubr.f32.gmra.mrb[0].mxu0 %v1628
    %v1765 = vpop.f32.mrb[0].mxu0
    %v1766 = vadd.f32 0.0, %v1765
    %v1767 = vpop.f32.mrb[0].mxu0
    %1768 = vmatprep.mubr.f32.mxu0 0.0
    %1769 = vmatmul.mubr.f32.gmra.mrb[0].mxu0 %v1631
    %v1770 = vpop.f32.mrb[0].mxu0
    %v1771 = vadd.f32 0.0, %v1770
    %v1772 = vpop.f32.mrb[0].mxu0
    %1773 = vmatprep.mubr.f32.mxu0 0.0
    %1774 = vmatmul.mubr.f32.gmra.mrb[0].mxu0 %v1634
    %v1775 = vpop.f32.mrb[0].mxu0
    %v1776 = vadd.f32 0.0, %v1775
    %v1777 = vpop.f32.mrb[0].mxu0
    %1778 = vmatprep.mubr.f32.mxu0 0.0
    %1779 = vmatmul.mubr.f32.gmra.mrb[0].mxu0 %v1637
    %v1780 = vpop.f32.mrb[0].mxu0
    %v1781 = vadd.f32 0.0, %v1780
    %v1782 = vpop.f32.mrb[0].mxu0
    %1783 = vdwg.mxu0
    %v1784 = vadd.f32 %v1556, %v1706
    %v1785 = vadd.f32 %v1557, %v1711
    %v1786 = vadd.f32 %v1558, %v1716
    %v1787 = vadd.f32 %v1559, %v1721
    %v1788 = vadd.f32 %v1560, %v1726
    %v1789 = vadd.f32 %v1561, %v1731
    %v1790 = vadd.f32 %v1562, %v1736
    %v1791 = vadd.f32 %v1563, %v1741
    %v1792 = vadd.f32 %v1564, %v1746
    %v1793 = vadd.f32 %v1565, %v1751
    %v1794 = vadd.f32 %v1566, %v1756
    %v1795 = vadd.f32 %v1567, %v1761
    %v1796 = vadd.f32 %v1568, %v1766
    %v1797 = vadd.f32 %v1569, %v1771
    %v1798 = vadd.f32 %v1570, %v1776
    %v1799 = vadd.f32 %v1571, %v1781
    %v1800 = vld [vmem:[%s1572 + $0x1] sm:$0xff]
    %v1801 = vld [vmem:[%s1572 + $0x11] sm:$0xff]
    %v1802 = vld [vmem:[%s1572 + $0x21] sm:$0xff]
    %v1803 = vld [vmem:[%s1572 + $0x31] sm:$0xff]
    %v1804 = vld [vmem:[%s1572 + $0x41] sm:$0xff]
    %v1805 = vld [vmem:[%s1572 + $0x51] sm:$0xff]
    %v1806 = vld [vmem:[%s1572 + $0x61] sm:$0xff]
    %v1807 = vld [vmem:[%s1572 + $0x71] sm:$0xff]
    %v1808 = vld [vmem:[%s1572 + $0xa1] sm:$0xff]
    %v1809 = vld [vmem:[%s1572 + $0xb1] sm:$0xff]
    %v1810 = vld [vmem:[%s1572 + $0xc1] sm:$0xff]
    %v1811 = vld [vmem:[%s1572 + $0xd1] sm:$0xff]
    %v1812 = vld [vmem:[%s1572 + $0xe1] sm:$0xff]
    %v1813 = vld [vmem:[%s1572 + $0xf1] sm:$0xff]
    %v1814 = vld [vmem:[%s1572 + $0x101] sm:$0xff]
    %v1815 = vld [vmem:[%s1572 + $0x111] sm:$0xff]
    %s1816 = scalar_lea.vmem [#allocation7], 56
    %v1817 = vld [vmem:[%s1816] sm:$0xff]
    %v1819 = vsel %vm175, %v1800, 0
    %v1822 = vsel %vm175, %v1801, 0
    %v1825 = vsel %vm175, %v1802, 0
    %v1828 = vsel %vm175, %v1803, 0
    %v1831 = vsel %vm175, %v1804, 0
    %v1834 = vsel %vm175, %v1805, 0
    %v1837 = vsel %vm175, %v1806, 0
    %v1840 = vsel %vm175, %v1807, 0
    %v1843 = vsel %vm175, %v1808, 0
    %v1846 = vsel %vm175, %v1809, 0
    %v1849 = vsel %vm175, %v1810, 0
    %v1852 = vsel %vm175, %v1811, 0
    %v1855 = vsel %vm175, %v1812, 0
    %v1858 = vsel %vm175, %v1813, 0
    %v1861 = vsel %vm175, %v1814, 0
    %v1864 = vsel %vm175, %v1815, 0
    %1866 = vmatprep.subr.mxu0 0.0
    %1867 = vmatpush1.msra.mxu0 %v1817
    %1868 = vmatprep.subr.mxu0 0.0
    %1869 = vmatpush1.msra.mxu0 0.0
    %1870 = vmatprep.subr.mxu0 0.0
    %1871 = vmatpush1.msra.mxu0 0.0
    %1872 = vmatprep.subr.mxu0 0.0
    %1873 = vmatpush1.msra.mxu0 0.0
    %1874 = vmatprep.subr.mxu0 0.0
    %1875 = vmatpush1.msra.mxu0 0.0
    %1876 = vmatprep.subr.mxu0 0.0
    %1877 = vmatpush1.msra.mxu0 0.0
    %1878 = vmatprep.subr.mxu0 0.0
    %1879 = vmatpush1.msra.mxu0 0.0
    %1880 = vmatprep.subr.mxu0 0.0
    %1881 = vmatpush1.msra.mxu0 0.0
    %1882 = vmatprep.subr.mxu0 0.0
    %1883 = vmatpush1.msra.mxu0 0.0
    %1884 = vmatprep.subr.mxu0 0.0
    %1885 = vmatpush1.msra.mxu0 0.0
    %1886 = vmatprep.subr.mxu0 0.0
    %1887 = vmatpush1.msra.mxu0 0.0
    %1888 = vmatprep.subr.mxu0 0.0
    %1889 = vmatpush1.msra.mxu0 0.0
    %1890 = vmatprep.subr.mxu0 0.0
    %1891 = vmatpush1.msra.mxu0 0.0
    %1892 = vmatprep.subr.mxu0 0.0
    %1893 = vmatpush1.msra.mxu0 0.0
    %1894 = vmatprep.subr.mxu0 0.0
    %1895 = vmatpush1.msra.mxu0 0.0
    %1896 = vmatprep.subr.mxu0 0.0
    %1897 = vmatpush1.msra.mxu0 0.0
    %1898 = vmatprep.subr.mxu0 0.0
    %1899 = vmatpush1.msra.mxu0 0.0
    %1900 = vmatprep.subr.mxu0 0.0
    %1901 = vmatpush1.msra.mxu0 0.0
    %1902 = vmatprep.subr.mxu0 0.0
    %1903 = vmatpush1.msra.mxu0 0.0
    %1904 = vmatprep.subr.mxu0 0.0
    %1905 = vmatpush1.msra.mxu0 0.0
    %1906 = vmatprep.subr.mxu0 0.0
    %1907 = vmatpush1.msra.mxu0 0.0
    %1908 = vmatprep.subr.mxu0 0.0
    %1909 = vmatpush1.msra.mxu0 0.0
    %1910 = vmatprep.subr.mxu0 0.0
    %1911 = vmatpush1.msra.mxu0 0.0
    %1912 = vmatprep.subr.mxu0 0.0
    %1913 = vmatpush1.msra.mxu0 0.0
    %1914 = vmatprep.subr.mxu0 0.0
    %1915 = vmatpush1.msra.mxu0 0.0
    %1916 = vmatprep.subr.mxu0 0.0
    %1917 = vmatpush1.msra.mxu0 0.0
    %1918 = vmatprep.subr.mxu0 0.0
    %1919 = vmatpush1.msra.mxu0 0.0
    %1920 = vmatprep.subr.mxu0 0.0
    %1921 = vmatpush1.msra.mxu0 0.0
    %1922 = vmatprep.subr.mxu0 0.0
    %1923 = vmatpush1.msra.mxu0 0.0
    %1924 = vmatprep.subr.mxu0 0.0
    %1925 = vmatpush1.msra.mxu0 0.0
    %1926 = vmatprep.subr.mxu0 0.0
    %1927 = vmatpush1.msra.mxu0 0.0
    %1928 = vmatprep.subr.mxu0 0.0
    %1929 = vmatpush1.msra.mxu0 0.0
    %1930 = vmatprep.mubr.f32.mxu0 0.0
    %1931 = vmatmul.mubr.f32.gmra.mrb[0].mxu0 %v1819
    %v1932 = vpop.f32.mrb[0].mxu0
    %v1933 = vadd.f32 0.0, %v1932
    %v1934 = vpop.f32.mrb[0].mxu0
    %1935 = vmatprep.mubr.f32.mxu0 0.0
    %1936 = vmatmul.mubr.f32.gmra.mrb[0].mxu0 %v1822
    %v1937 = vpop.f32.mrb[0].mxu0
    %v1938 = vadd.f32 0.0, %v1937
    %v1939 = vpop.f32.mrb[0].mxu0
    %1940 = vmatprep.mubr.f32.mxu0 0.0
    %1941 = vmatmul.mubr.f32.gmra.mrb[0].mxu0 %v1825
    %v1942 = vpop.f32.mrb[0].mxu0
    %v1943 = vadd.f32 0.0, %v1942
    %v1944 = vpop.f32.mrb[0].mxu0
    %1945 = vmatprep.mubr.f32.mxu0 0.0
    %1946 = vmatmul.mubr.f32.gmra.mrb[0].mxu0 %v1828
    %v1947 = vpop.f32.mrb[0].mxu0
    %v1948 = vadd.f32 0.0, %v1947
    %v1949 = vpop.f32.mrb[0].mxu0
    %1950 = vmatprep.mubr.f32.mxu0 0.0
    %1951 = vmatmul.mubr.f32.gmra.mrb[0].mxu0 %v1831
    %v1952 = vpop.f32.mrb[0].mxu0
    %v1953 = vadd.f32 0.0, %v1952
    %v1954 = vpop.f32.mrb[0].mxu0
    %1955 = vmatprep.mubr.f32.mxu0 0.0
    %1956 = vmatmul.mubr.f32.gmra.mrb[0].mxu0 %v1834
    %v1957 = vpop.f32.mrb[0].mxu0
    %v1958 = vadd.f32 0.0, %v1957
    %v1959 = vpop.f32.mrb[0].mxu0
    %1960 = vmatprep.mubr.f32.mxu0 0.0
    %1961 = vmatmul.mubr.f32.gmra.mrb[0].mxu0 %v1837
    %v1962 = vpop.f32.mrb[0].mxu0
    %v1963 = vadd.f32 0.0, %v1962
    %v1964 = vpop.f32.mrb[0].mxu0
    %1965 = vmatprep.mubr.f32.mxu0 0.0
    %1966 = vmatmul.mubr.f32.gmra.mrb[0].mxu0 %v1840
    %v1967 = vpop.f32.mrb[0].mxu0
    %v1968 = vadd.f32 0.0, %v1967
    %v1969 = vpop.f32.mrb[0].mxu0
    %1970 = vmatprep.mubr.f32.mxu0 0.0
    %1971 = vmatmul.mubr.f32.gmra.mrb[0].mxu0 %v1843
    %v1972 = vpop.f32.mrb[0].mxu0
    %v1973 = vadd.f32 0.0, %v1972
    %v1974 = vpop.f32.mrb[0].mxu0
    %1975 = vmatprep.mubr.f32.mxu0 0.0
    %1976 = vmatmul.mubr.f32.gmra.mrb[0].mxu0 %v1846
    %v1977 = vpop.f32.mrb[0].mxu0
    %v1978 = vadd.f32 0.0, %v1977
    %v1979 = vpop.f32.mrb[0].mxu0
    %1980 = vmatprep.mubr.f32.mxu0 0.0
    %1981 = vmatmul.mubr.f32.gmra.mrb[0].mxu0 %v1849
    %v1982 = vpop.f32.mrb[0].mxu0
    %v1983 = vadd.f32 0.0, %v1982
    %v1984 = vpop.f32.mrb[0].mxu0
    %1985 = vmatprep.mubr.f32.mxu0 0.0
    %1986 = vmatmul.mubr.f32.gmra.mrb[0].mxu0 %v1852
    %v1987 = vpop.f32.mrb[0].mxu0
    %v1988 = vadd.f32 0.0, %v1987
    %v1989 = vpop.f32.mrb[0].mxu0
    %1990 = vmatprep.mubr.f32.mxu0 0.0
    %1991 = vmatmul.mubr.f32.gmra.mrb[0].mxu0 %v1855
    %v1992 = vpop.f32.mrb[0].mxu0
    %v1993 = vadd.f32 0.0, %v1992
    %v1994 = vpop.f32.mrb[0].mxu0
    %1995 = vmatprep.mubr.f32.mxu0 0.0
    %1996 = vmatmul.mubr.f32.gmra.mrb[0].mxu0 %v1858
    %v1997 = vpop.f32.mrb[0].mxu0
    %v1998 = vadd.f32 0.0, %v1997
    %v1999 = vpop.f32.mrb[0].mxu0
    %2000 = vmatprep.mubr.f32.mxu0 0.0
    %2001 = vmatmul.mubr.f32.gmra.mrb[0].mxu0 %v1861
    %v2002 = vpop.f32.mrb[0].mxu0
    %v2003 = vadd.f32 0.0, %v2002
    %v2004 = vpop.f32.mrb[0].mxu0
    %2005 = vmatprep.mubr.f32.mxu0 0.0
    %2006 = vmatmul.mubr.f32.gmra.mrb[0].mxu0 %v1864
    %v2007 = vpop.f32.mrb[0].mxu0
    %v2008 = vadd.f32 0.0, %v2007
    %v2009 = vpop.f32.mrb[0].mxu0
    %2010 = vdwg.mxu0
    %v2011 = vadd.f32 %v1784, %v1933
    %v2012 = vadd.f32 %v1785, %v1938
    %v2013 = vadd.f32 %v1786, %v1943
    %v2014 = vadd.f32 %v1787, %v1948
    %v2015 = vadd.f32 %v1788, %v1953
    %v2016 = vadd.f32 %v1789, %v1958
    %v2017 = vadd.f32 %v1790, %v1963
    %v2018 = vadd.f32 %v1791, %v1968
    %v2019 = vadd.f32 %v1792, %v1973
    %v2020 = vadd.f32 %v1793, %v1978
    %v2021 = vadd.f32 %v1794, %v1983
    %v2022 = vadd.f32 %v1795, %v1988
    %v2023 = vadd.f32 %v1796, %v1993
    %v2024 = vadd.f32 %v1797, %v1998
    %v2025 = vadd.f32 %v1798, %v2003
    %v2026 = vadd.f32 %v1799, %v2008
    %v2027 = vld [vmem:[%s1572 + $0x2] sm:$0xff]
    %v2028 = vld [vmem:[%s1572 + $0x12] sm:$0xff]
    %v2029 = vld [vmem:[%s1572 + $0x22] sm:$0xff]
    %v2030 = vld [vmem:[%s1572 + $0x32] sm:$0xff]
    %v2031 = vld [vmem:[%s1572 + $0x42] sm:$0xff]
    %v2032 = vld [vmem:[%s1572 + $0x52] sm:$0xff]
    %v2033 = vld [vmem:[%s1572 + $0x62] sm:$0xff]
    %v2034 = vld [vmem:[%s1572 + $0x72] sm:$0xff]
    %v2035 = vld [vmem:[%s1572 + $0xa2] sm:$0xff]
    %v2036 = vld [vmem:[%s1572 + $0xb2] sm:$0xff]
    %v2037 = vld [vmem:[%s1572 + $0xc2] sm:$0xff]
    %v2038 = vld [vmem:[%s1572 + $0xd2] sm:$0xff]
    %v2039 = vld [vmem:[%s1572 + $0xe2] sm:$0xff]
    %v2040 = vld [vmem:[%s1572 + $0xf2] sm:$0xff]
    %v2041 = vld [vmem:[%s1572 + $0x102] sm:$0xff]
    %v2042 = vld [vmem:[%s1572 + $0x112] sm:$0xff]
    %s2043 = scalar_lea.vmem [#allocation7], 64
    %v2044 = vld [vmem:[%s2043] sm:$0xff]
    %v2046 = vsel %vm175, %v2027, 0
    %v2049 = vsel %vm175, %v2028, 0
    %v2052 = vsel %vm175, %v2029, 0
    %v2055 = vsel %vm175, %v2030, 0
    %v2058 = vsel %vm175, %v2031, 0
    %v2061 = vsel %vm175, %v2032, 0
    %v2064 = vsel %vm175, %v2033, 0
    %v2067 = vsel %vm175, %v2034, 0
    %v2070 = vsel %vm175, %v2035, 0
    %v2073 = vsel %vm175, %v2036, 0
    %v2076 = vsel %vm175, %v2037, 0
    %v2079 = vsel %vm175, %v2038, 0
    %v2082 = vsel %vm175, %v2039, 0
    %v2085 = vsel %vm175, %v2040, 0
    %v2088 = vsel %vm175, %v2041, 0
    %v2091 = vsel %vm175, %v2042, 0
    %2093 = vmatprep.subr.mxu0 0.0
    %2094 = vmatpush1.msra.mxu0 %v2044
    %2095 = vmatprep.subr.mxu0 0.0
    %2096 = vmatpush1.msra.mxu0 0.0
    %2097 = vmatprep.subr.mxu0 0.0
    %2098 = vmatpush1.msra.mxu0 0.0
    %2099 = vmatprep.subr.mxu0 0.0
    %2100 = vmatpush1.msra.mxu0 0.0
    %2101 = vmatprep.subr.mxu0 0.0
    %2102 = vmatpush1.msra.mxu0 0.0
    %2103 = vmatprep.subr.mxu0 0.0
    %2104 = vmatpush1.msra.mxu0 0.0
    %2105 = vmatprep.subr.mxu0 0.0
    %2106 = vmatpush1.msra.mxu0 0.0
    %2107 = vmatprep.subr.mxu0 0.0
    %2108 = vmatpush1.msra.mxu0 0.0
    %2109 = vmatprep.subr.mxu0 0.0
    %2110 = vmatpush1.msra.mxu0 0.0
    %2111 = vmatprep.subr.mxu0 0.0
    %2112 = vmatpush1.msra.mxu0 0.0
    %2113 = vmatprep.subr.mxu0 0.0
    %2114 = vmatpush1.msra.mxu0 0.0
    %2115 = vmatprep.subr.mxu0 0.0
    %2116 = vmatpush1.msra.mxu0 0.0
    %2117 = vmatprep.subr.mxu0 0.0
    %2118 = vmatpush1.msra.mxu0 0.0
    %2119 = vmatprep.subr.mxu0 0.0
    %2120 = vmatpush1.msra.mxu0 0.0
    %2121 = vmatprep.subr.mxu0 0.0
    %2122 = vmatpush1.msra.mxu0 0.0
    %2123 = vmatprep.subr.mxu0 0.0
    %2124 = vmatpush1.msra.mxu0 0.0
    %2125 = vmatprep.subr.mxu0 0.0
    %2126 = vmatpush1.msra.mxu0 0.0
    %2127 = vmatprep.subr.mxu0 0.0
    %2128 = vmatpush1.msra.mxu0 0.0
    %2129 = vmatprep.subr.mxu0 0.0
    %2130 = vmatpush1.msra.mxu0 0.0
    %2131 = vmatprep.subr.mxu0 0.0
    %2132 = vmatpush1.msra.mxu0 0.0
    %2133 = vmatprep.subr.mxu0 0.0
    %2134 = vmatpush1.msra.mxu0 0.0
    %2135 = vmatprep.subr.mxu0 0.0
    %2136 = vmatpush1.msra.mxu0 0.0
    %2137 = vmatprep.subr.mxu0 0.0
    %2138 = vmatpush1.msra.mxu0 0.0
    %2139 = vmatprep.subr.mxu0 0.0
    %2140 = vmatpush1.msra.mxu0 0.0
    %2141 = vmatprep.subr.mxu0 0.0
    %2142 = vmatpush1.msra.mxu0 0.0
    %2143 = vmatprep.subr.mxu0 0.0
    %2144 = vmatpush1.msra.mxu0 0.0
    %2145 = vmatprep.subr.mxu0 0.0
    %2146 = vmatpush1.msra.mxu0 0.0
    %2147 = vmatprep.subr.mxu0 0.0
    %2148 = vmatpush1.msra.mxu0 0.0
    %2149 = vmatprep.subr.mxu0 0.0
    %2150 = vmatpush1.msra.mxu0 0.0
    %2151 = vmatprep.subr.mxu0 0.0
    %2152 = vmatpush1.msra.mxu0 0.0
    %2153 = vmatprep.subr.mxu0 0.0
    %2154 = vmatpush1.msra.mxu0 0.0
    %2155 = vmatprep.subr.mxu0 0.0
    %2156 = vmatpush1.msra.mxu0 0.0
    %2157 = vmatprep.mubr.f32.mxu0 0.0
    %2158 = vmatmul.mubr.f32.gmra.mrb[0].mxu0 %v2046
    %v2159 = vpop.f32.mrb[0].mxu0
    %v2160 = vadd.f32 0.0, %v2159
    %v2161 = vpop.f32.mrb[0].mxu0
    %2162 = vmatprep.mubr.f32.mxu0 0.0
    %2163 = vmatmul.mubr.f32.gmra.mrb[0].mxu0 %v2049
    %v2164 = vpop.f32.mrb[0].mxu0
    %v2165 = vadd.f32 0.0, %v2164
    %v2166 = vpop.f32.mrb[0].mxu0
    %2167 = vmatprep.mubr.f32.mxu0 0.0
    %2168 = vmatmul.mubr.f32.gmra.mrb[0].mxu0 %v2052
    %v2169 = vpop.f32.mrb[0].mxu0
    %v2170 = vadd.f32 0.0, %v2169
    %v2171 = vpop.f32.mrb[0].mxu0
    %2172 = vmatprep.mubr.f32.mxu0 0.0
    %2173 = vmatmul.mubr.f32.gmra.mrb[0].mxu0 %v2055
    %v2174 = vpop.f32.mrb[0].mxu0
    %v2175 = vadd.f32 0.0, %v2174
    %v2176 = vpop.f32.mrb[0].mxu0
    %2177 = vmatprep.mubr.f32.mxu0 0.0
    %2178 = vmatmul.mubr.f32.gmra.mrb[0].mxu0 %v2058
    %v2179 = vpop.f32.mrb[0].mxu0
    %v2180 = vadd.f32 0.0, %v2179
    %v2181 = vpop.f32.mrb[0].mxu0
    %2182 = vmatprep.mubr.f32.mxu0 0.0
    %2183 = vmatmul.mubr.f32.gmra.mrb[0].mxu0 %v2061
    %v2184 = vpop.f32.mrb[0].mxu0
    %v2185 = vadd.f32 0.0, %v2184
    %v2186 = vpop.f32.mrb[0].mxu0
    %2187 = vmatprep.mubr.f32.mxu0 0.0
    %2188 = vmatmul.mubr.f32.gmra.mrb[0].mxu0 %v2064
    %v2189 = vpop.f32.mrb[0].mxu0
    %v2190 = vadd.f32 0.0, %v2189
    %v2191 = vpop.f32.mrb[0].mxu0
    %2192 = vmatprep.mubr.f32.mxu0 0.0
    %2193 = vmatmul.mubr.f32.gmra.mrb[0].mxu0 %v2067
    %v2194 = vpop.f32.mrb[0].mxu0
    %v2195 = vadd.f32 0.0, %v2194
    %v2196 = vpop.f32.mrb[0].mxu0
    %2197 = vmatprep.mubr.f32.mxu0 0.0
    %2198 = vmatmul.mubr.f32.gmra.mrb[0].mxu0 %v2070
    %v2199 = vpop.f32.mrb[0].mxu0
    %v2200 = vadd.f32 0.0, %v2199
    %v2201 = vpop.f32.mrb[0].mxu0
    %2202 = vmatprep.mubr.f32.mxu0 0.0
    %2203 = vmatmul.mubr.f32.gmra.mrb[0].mxu0 %v2073
    %v2204 = vpop.f32.mrb[0].mxu0
    %v2205 = vadd.f32 0.0, %v2204
    %v2206 = vpop.f32.mrb[0].mxu0
    %2207 = vmatprep.mubr.f32.mxu0 0.0
    %2208 = vmatmul.mubr.f32.gmra.mrb[0].mxu0 %v2076
    %v2209 = vpop.f32.mrb[0].mxu0
    %v2210 = vadd.f32 0.0, %v2209
    %v2211 = vpop.f32.mrb[0].mxu0
    %2212 = vmatprep.mubr.f32.mxu0 0.0
    %2213 = vmatmul.mubr.f32.gmra.mrb[0].mxu0 %v2079
    %v2214 = vpop.f32.mrb[0].mxu0
    %v2215 = vadd.f32 0.0, %v2214
    %v2216 = vpop.f32.mrb[0].mxu0
    %2217 = vmatprep.mubr.f32.mxu0 0.0
    %2218 = vmatmul.mubr.f32.gmra.mrb[0].mxu0 %v2082
    %v2219 = vpop.f32.mrb[0].mxu0
    %v2220 = vadd.f32 0.0, %v2219
    %v2221 = vpop.f32.mrb[0].mxu0
    %2222 = vmatprep.mubr.f32.mxu0 0.0
    %2223 = vmatmul.mubr.f32.gmra.mrb[0].mxu0 %v2085
    %v2224 = vpop.f32.mrb[0].mxu0
    %v2225 = vadd.f32 0.0, %v2224
    %v2226 = vpop.f32.mrb[0].mxu0
    %2227 = vmatprep.mubr.f32.mxu0 0.0
    %2228 = vmatmul.mubr.f32.gmra.mrb[0].mxu0 %v2088
    %v2229 = vpop.f32.mrb[0].mxu0
    %v2230 = vadd.f32 0.0, %v2229
    %v2231 = vpop.f32.mrb[0].mxu0
    %2232 = vmatprep.mubr.f32.mxu0 0.0
    %2233 = vmatmul.mubr.f32.gmra.mrb[0].mxu0 %v2091
    %v2234 = vpop.f32.mrb[0].mxu0
    %v2235 = vadd.f32 0.0, %v2234
    %v2236 = vpop.f32.mrb[0].mxu0
    %2237 = vdwg.mxu0
    %v2238 = vadd.f32 %v2011, %v2160
    %v2239 = vadd.f32 %v2012, %v2165
    %v2240 = vadd.f32 %v2013, %v2170
    %v2241 = vadd.f32 %v2014, %v2175
    %v2242 = vadd.f32 %v2015, %v2180
    %v2243 = vadd.f32 %v2016, %v2185
    %v2244 = vadd.f32 %v2017, %v2190
    %v2245 = vadd.f32 %v2018, %v2195
    %v2246 = vadd.f32 %v2019, %v2200
    %v2247 = vadd.f32 %v2020, %v2205
    %v2248 = vadd.f32 %v2021, %v2210
    %v2249 = vadd.f32 %v2022, %v2215
    %v2250 = vadd.f32 %v2023, %v2220
    %v2251 = vadd.f32 %v2024, %v2225
    %v2252 = vadd.f32 %v2025, %v2230
    %v2253 = vadd.f32 %v2026, %v2235
    %v2254 = vlaneseq
    %v2255 = vshrl.u32 %v2254, 7
    %v2256 = vsub.s32 0, %v2255
    %v2257 = vrot.slane %v174, %v2256
    %v2258 = vadd.f32 %v2238, %v2257
    %v2259 = vadd.f32 %v2239, %v2257
    %v2260 = vadd.f32 %v2240, %v2257
    %v2261 = vadd.f32 %v2241, %v2257
    %v2262 = vadd.f32 %v2242, %v2257
    %v2263 = vadd.f32 %v2243, %v2257
    %v2264 = vadd.f32 %v2244, %v2257
    %v2265 = vadd.f32 %v2245, %v2257
    %v2266 = vadd.f32 %v2246, %v2257
    %v2267 = vadd.f32 %v2247, %v2257
    %v2268 = vadd.f32 %v2248, %v2257
    %v2269 = vadd.f32 %v2249, %v2257
    %v2270 = vadd.f32 %v2250, %v2257
    %v2271 = vadd.f32 %v2251, %v2257
    %v2272 = vadd.f32 %v2252, %v2257
    %v2273 = vadd.f32 %v2253, %v2257
    %v2274 = vadd.f32 %v2258, %v2259
    %v2275 = vadd.f32 %v2274, %v2260
    %v2276 = vadd.f32 %v2275, %v2261
    %v2277 = vadd.f32 %v2276, %v2262
    %v2278 = vadd.f32 %v2277, %v2263
    %v2279 = vadd.f32 %v2278, %v2264
    %v2280 = vadd.f32 %v2279, %v2265
    %v2281 = vadd.f32 %v2280, %v2266
    %v2282 = vadd.f32 %v2281, %v2267
    %v2283 = vadd.f32 %v2282, %v2268
    %v2284 = vadd.f32 %v2283, %v2269
    %v2285 = vadd.f32 %v2284, %v2270
    %v2286 = vadd.f32 %v2285, %v2271
    %v2287 = vadd.f32 %v2286, %v2272
    %v2288 = vadd.f32 %v2287, %v2273
    %v2289 = vrot.slane %v2288, 4
    %v2290 = vadd.f32 %v2288, %v2289
    %v2291 = vrot.slane %v2290, 2
    %v2292 = vadd.f32 %v2290, %v2291
    %v2293 = vrot.slane %v2292, 1
    %v2294 = vadd.f32 %v2292, %v2293
    %v2295 = vrcp.pop 128.0
    %v2296 = vmul.f32 %v2294, %v2295
    %v2297 = vsub.f32 %v2258, %v2296
    %v2298 = vsub.f32 %v2259, %v2296
    %v2299 = vsub.f32 %v2260, %v2296
    %v2300 = vsub.f32 %v2261, %v2296
    %v2301 = vsub.f32 %v2262, %v2296
    %v2302 = vsub.f32 %v2263, %v2296
    %v2303 = vsub.f32 %v2264, %v2296
    %v2304 = vsub.f32 %v2265, %v2296
    %v2305 = vsub.f32 %v2266, %v2296
    %v2306 = vsub.f32 %v2267, %v2296
    %v2307 = vsub.f32 %v2268, %v2296
    %v2308 = vsub.f32 %v2269, %v2296
    %v2309 = vsub.f32 %v2270, %v2296
    %v2310 = vsub.f32 %v2271, %v2296
    %v2311 = vsub.f32 %v2272, %v2296
    %v2312 = vsub.f32 %v2273, %v2296
    %v2313 = vmul.f32 %v2297, %v2297
    %v2314 = vmul.f32 %v2298, %v2298
    %v2315 = vmul.f32 %v2299, %v2299
    %v2316 = vmul.f32 %v2300, %v2300
    %v2317 = vmul.f32 %v2301, %v2301
    %v2318 = vmul.f32 %v2302, %v2302
    %v2319 = vmul.f32 %v2303, %v2303
    %v2320 = vmul.f32 %v2304, %v2304
    %v2321 = vmul.f32 %v2305, %v2305
    %v2322 = vmul.f32 %v2306, %v2306
    %v2323 = vmul.f32 %v2307, %v2307
    %v2324 = vmul.f32 %v2308, %v2308
    %v2325 = vmul.f32 %v2309, %v2309
    %v2326 = vmul.f32 %v2310, %v2310
    %v2327 = vmul.f32 %v2311, %v2311
    %v2328 = vmul.f32 %v2312, %v2312
    %v2329 = vadd.f32 %v2313, %v2314
    %v2330 = vadd.f32 %v2329, %v2315
    %v2331 = vadd.f32 %v2330, %v2316
    %v2332 = vadd.f32 %v2331, %v2317
    %v2333 = vadd.f32 %v2332, %v2318
    %v2334 = vadd.f32 %v2333, %v2319
    %v2335 = vadd.f32 %v2334, %v2320
    %v2336 = vadd.f32 %v2335, %v2321
    %v2337 = vadd.f32 %v2336, %v2322
    %v2338 = vadd.f32 %v2337, %v2323
    %v2339 = vadd.f32 %v2338, %v2324
    %v2340 = vadd.f32 %v2339, %v2325
    %v2341 = vadd.f32 %v2340, %v2326
    %v2342 = vadd.f32 %v2341, %v2327
    %v2343 = vadd.f32 %v2342, %v2328
    %v2344 = vrot.slane %v2343, 4
    %v2345 = vadd.f32 %v2343, %v2344
    %v2346 = vrot.slane %v2345, 2
    %v2347 = vadd.f32 %v2345, %v2346
    %v2348 = vrot.slane %v2347, 1
    %v2349 = vadd.f32 %v2347, %v2348
    %v2350 = vmul.f32 %v2349, %v2295
    %v2351 = vadd.f32 %v2350, 1e-05
    %v2352 = vrsqrt.pop %v2351
    %v2353 = vmul.f32 %v2297, %v2352
    %v2354 = vmul.f32 %v2298, %v2352
    %v2355 = vmul.f32 %v2299, %v2352
    %v2356 = vmul.f32 %v2300, %v2352
    %v2357 = vmul.f32 %v2301, %v2352
    %v2358 = vmul.f32 %v2302, %v2352
    %v2359 = vmul.f32 %v2303, %v2352
    %v2360 = vmul.f32 %v2304, %v2352
    %v2361 = vmul.f32 %v2305, %v2352
    %v2362 = vmul.f32 %v2306, %v2352
    %v2363 = vmul.f32 %v2307, %v2352
    %v2364 = vmul.f32 %v2308, %v2352
    %v2365 = vmul.f32 %v2309, %v2352
    %v2366 = vmul.f32 %v2310, %v2352
    %v2367 = vmul.f32 %v2311, %v2352
    %v2368 = vmul.f32 %v2312, %v2352
    %v2369 = vlaneseq
    %v2370 = vshrl.u32 %v2369, 7
    %v2371 = vsub.s32 1, %v2370
    %v2372 = vrot.slane %v174, %v2371
    %v2373 = vmul.f32 %v2353, %v2372
    %v2374 = vmul.f32 %v2354, %v2372
    %v2375 = vmul.f32 %v2355, %v2372
    %v2376 = vmul.f32 %v2356, %v2372
    %v2377 = vmul.f32 %v2357, %v2372
    %v2378 = vmul.f32 %v2358, %v2372
    %v2379 = vmul.f32 %v2359, %v2372
    %v2380 = vmul.f32 %v2360, %v2372
    %v2381 = vmul.f32 %v2361, %v2372
    %v2382 = vmul.f32 %v2362, %v2372
    %v2383 = vmul.f32 %v2363, %v2372
    %v2384 = vmul.f32 %v2364, %v2372
    %v2385 = vmul.f32 %v2365, %v2372
    %v2386 = vmul.f32 %v2366, %v2372
    %v2387 = vmul.f32 %v2367, %v2372
    %v2388 = vmul.f32 %v2368, %v2372
    %v2389 = vlaneseq
    %v2390 = vshrl.u32 %v2389, 7
    %v2391 = vsub.s32 2, %v2390
    %v2392 = vrot.slane %v174, %v2391
    %v2393 = vadd.f32 %v2373, %v2392
    %v2394 = vadd.f32 %v2374, %v2392
    %v2395 = vadd.f32 %v2375, %v2392
    %v2396 = vadd.f32 %v2376, %v2392
    %v2397 = vadd.f32 %v2377, %v2392
    %v2398 = vadd.f32 %v2378, %v2392
    %v2399 = vadd.f32 %v2379, %v2392
    %v2400 = vadd.f32 %v2380, %v2392
    %v2401 = vadd.f32 %v2381, %v2392
    %v2402 = vadd.f32 %v2382, %v2392
    %v2403 = vadd.f32 %v2383, %v2392
    %v2404 = vadd.f32 %v2384, %v2392
    %v2405 = vadd.f32 %v2385, %v2392
    %v2406 = vadd.f32 %v2386, %v2392
    %v2407 = vadd.f32 %v2387, %v2392
    %v2408 = vadd.f32 %v2388, %v2392
    %vm2409 = vcmp.ge.f32.partialorder %v2393, 0.0
    %vm2410 = vcmp.ge.f32.partialorder %v2394, 0.0
    %vm2411 = vcmp.ge.f32.partialorder %v2395, 0.0
    %vm2412 = vcmp.ge.f32.partialorder %v2396, 0.0
    %vm2413 = vcmp.ge.f32.partialorder %v2397, 0.0
    %vm2414 = vcmp.ge.f32.partialorder %v2398, 0.0
    %vm2415 = vcmp.ge.f32.partialorder %v2399, 0.0
    %vm2416 = vcmp.ge.f32.partialorder %v2400, 0.0
    %vm2417 = vcmp.ge.f32.partialorder %v2401, 0.0
    %vm2418 = vcmp.ge.f32.partialorder %v2402, 0.0
    %vm2419 = vcmp.ge.f32.partialorder %v2403, 0.0
    %vm2420 = vcmp.ge.f32.partialorder %v2404, 0.0
    %vm2421 = vcmp.ge.f32.partialorder %v2405, 0.0
    %vm2422 = vcmp.ge.f32.partialorder %v2406, 0.0
    %vm2423 = vcmp.ge.f32.partialorder %v2407, 0.0
    %vm2424 = vcmp.ge.f32.partialorder %v2408, 0.0
    %v2425 = vmul.f32 %v2393, 0.01
    %v2426 = vmul.f32 %v2394, 0.01
    %v2427 = vmul.f32 %v2395, 0.01
    %v2428 = vmul.f32 %v2396, 0.01
    %v2429 = vmul.f32 %v2397, 0.01
    %v2430 = vmul.f32 %v2398, 0.01
    %v2431 = vmul.f32 %v2399, 0.01
    %v2432 = vmul.f32 %v2400, 0.01
    %v2433 = vmul.f32 %v2401, 0.01
    %v2434 = vmul.f32 %v2402, 0.01
    %v2435 = vmul.f32 %v2403, 0.01
    %v2436 = vmul.f32 %v2404, 0.01
    %v2437 = vmul.f32 %v2405, 0.01
    %v2438 = vmul.f32 %v2406, 0.01
    %v2439 = vmul.f32 %v2407, 0.01
    %v2440 = vmul.f32 %v2408, 0.01
    %v2441 = vsel %vm2409, %v2393, %v2425
    %v2442 = vsel %vm2410, %v2394, %v2426
    %v2443 = vsel %vm2411, %v2395, %v2427
    %v2444 = vsel %vm2412, %v2396, %v2428
    %v2445 = vsel %vm2413, %v2397, %v2429
    %v2446 = vsel %vm2414, %v2398, %v2430
    %v2447 = vsel %vm2415, %v2399, %v2431
    %v2448 = vsel %vm2416, %v2400, %v2432
    %v2449 = vsel %vm2417, %v2401, %v2433
    %v2450 = vsel %vm2418, %v2402, %v2434
    %v2451 = vsel %vm2419, %v2403, %v2435
    %v2452 = vsel %vm2420, %v2404, %v2436
    %v2453 = vsel %vm2421, %v2405, %v2437
    %v2454 = vsel %vm2422, %v2406, %v2438
    %v2455 = vsel %vm2423, %v2407, %v2439
    %v2456 = vsel %vm2424, %v2408, %v2440
    %2457 = vst.msk [vmem:[#allocation3] sm:$0xff] %vm175, 0.0
    %2458 = vst.msk [vmem:[#allocation3 + $0x8] sm:$0xff] %vm175, 0.0
    %2459 = vst.msk [vmem:[#allocation3 + $0xa0] sm:$0xff] %vm175, 0.0
    %2460 = vst.msk [vmem:[#allocation3 + $0xa8] sm:$0xff] %vm175, 0.0
    %s2461 = scalar_lea.vmem [#allocation3], 144
    %2462 = vst.msk [vmem:[%s2461] sm:$0xff] %vm175, 0.0
    %2463 = vst.msk [vmem:[%s2461 + $0x8] sm:$0xff] %vm175, 0.0
    %2464 = vst.msk [vmem:[%s2461 + $0xa0] sm:$0xff] %vm175, 0.0
    %2465 = vst.msk [vmem:[%s2461 + $0xa8] sm:$0xff] %vm175, 0.0
    %2466 = vst.msk [vmem:[#allocation3] sm:$0x1] %vm185, 0.0
    %2467 = vst.msk [vmem:[#allocation3 + $0x10] sm:$0x1] %vm185, 0.0
    %2468 = vst.msk [vmem:[#allocation3 + $0x20] sm:$0x1] %vm185, 0.0
    %2469 = vst.msk [vmem:[#allocation3 + $0x30] sm:$0x1] %vm185, 0.0
    %2470 = vst.msk [vmem:[#allocation3 + $0x40] sm:$0x1] %vm185, 0.0
    %2471 = vst.msk [vmem:[#allocation3 + $0x50] sm:$0x1] %vm185, 0.0
    %2472 = vst.msk [vmem:[#allocation3 + $0x60] sm:$0x1] %vm185, 0.0
    %2473 = vst.msk [vmem:[#allocation3 + $0x70] sm:$0x1] %vm185, 0.0
    %2474 = vst.msk [vmem:[#allocation3 + $0x80] sm:$0x1] %vm185, 0.0
    %2475 = vst.msk [vmem:[#allocation3 + $0x90] sm:$0x1] %vm185, 0.0
    %2476 = vst.msk [vmem:[#allocation3 + $0xa0] sm:$0x1] %vm185, 0.0
    %2477 = vst.msk [vmem:[#allocation3 + $0xb0] sm:$0x1] %vm185, 0.0
    %2478 = vst.msk [vmem:[#allocation3 + $0xc0] sm:$0x1] %vm185, 0.0
    %2479 = vst.msk [vmem:[#allocation3 + $0xd0] sm:$0x1] %vm185, 0.0
    %2480 = vst.msk [vmem:[#allocation3 + $0xe0] sm:$0x1] %vm185, 0.0
    %2481 = vst.msk [vmem:[#allocation3 + $0xf0] sm:$0x1] %vm185, 0.0
    %2482 = vst.msk [vmem:[#allocation3 + $0x100] sm:$0x1] %vm185, 0.0
    %2483 = vst.msk [vmem:[#allocation3 + $0x110] sm:$0x1] %vm185, 0.0
    %2484 = vst.msk [vmem:[#allocation3 + $0x120] sm:$0x1] %vm185, 0.0
    %2485 = vst.msk [vmem:[#allocation3 + $0x130] sm:$0x1] %vm185, 0.0
    %2486 = vst.msk [vmem:[#allocation3 + $0x9] sm:$0x1] %vm185, 0.0
    %2487 = vst.msk [vmem:[#allocation3 + $0x19] sm:$0x1] %vm185, 0.0
    %2488 = vst.msk [vmem:[#allocation3 + $0x29] sm:$0x1] %vm185, 0.0
    %2489 = vst.msk [vmem:[#allocation3 + $0x39] sm:$0x1] %vm185, 0.0
    %2490 = vst.msk [vmem:[#allocation3 + $0x49] sm:$0x1] %vm185, 0.0
    %2491 = vst.msk [vmem:[#allocation3 + $0x59] sm:$0x1] %vm185, 0.0
    %2492 = vst.msk [vmem:[#allocation3 + $0x69] sm:$0x1] %vm185, 0.0
    %2493 = vst.msk [vmem:[#allocation3 + $0x79] sm:$0x1] %vm185, 0.0
    %2494 = vst.msk [vmem:[#allocation3 + $0x89] sm:$0x1] %vm185, 0.0
    %2495 = vst.msk [vmem:[#allocation3 + $0x99] sm:$0x1] %vm185, 0.0
    %2496 = vst.msk [vmem:[#allocation3 + $0xa9] sm:$0x1] %vm185, 0.0
    %2497 = vst.msk [vmem:[#allocation3 + $0xb9] sm:$0x1] %vm185, 0.0
    %2498 = vst.msk [vmem:[#allocation3 + $0xc9] sm:$0x1] %vm185, 0.0
    %2499 = vst.msk [vmem:[#allocation3 + $0xd9] sm:$0x1] %vm185, 0.0
    %2500 = vst.msk [vmem:[#allocation3 + $0xe9] sm:$0x1] %vm185, 0.0
    %2501 = vst.msk [vmem:[#allocation3 + $0xf9] sm:$0x1] %vm185, 0.0
    %2502 = vst.msk [vmem:[#allocation3 + $0x109] sm:$0x1] %vm185, 0.0
    %2503 = vst.msk [vmem:[#allocation3 + $0x119] sm:$0x1] %vm185, 0.0
    %2504 = vst.msk [vmem:[#allocation3 + $0x129] sm:$0x1] %vm185, 0.0
    %2505 = vst.msk [vmem:[#allocation3 + $0x139] sm:$0x1] %vm185, 0.0
    %s2506 = scalar_lea.vmem [#allocation3], 16
    %2507 = vst.msk [vmem:[%s2506 + $0x1] sm:$0xff] %vm175, %v2441
    %2508 = vst.msk [vmem:[%s2506 + $0x11] sm:$0xff] %vm175, %v2442
    %2509 = vst.msk [vmem:[%s2506 + $0x21] sm:$0xff] %vm175, %v2443
    %2510 = vst.msk [vmem:[%s2506 + $0x31] sm:$0xff] %vm175, %v2444
    %2511 = vst.msk [vmem:[%s2506 + $0x41] sm:$0xff] %vm175, %v2445
    %2512 = vst.msk [vmem:[%s2506 + $0x51] sm:$0xff] %vm175, %v2446
    %2513 = vst.msk [vmem:[%s2506 + $0x61] sm:$0xff] %vm175, %v2447
    %2514 = vst.msk [vmem:[%s2506 + $0x71] sm:$0xff] %vm175, %v2448
    %2515 = vst.msk [vmem:[%s2506 + $0xa1] sm:$0xff] %vm175, %v2449
    %2516 = vst.msk [vmem:[%s2506 + $0xb1] sm:$0xff] %vm175, %v2450
    %2517 = vst.msk [vmem:[%s2506 + $0xc1] sm:$0xff] %vm175, %v2451
    %2518 = vst.msk [vmem:[%s2506 + $0xd1] sm:$0xff] %vm175, %v2452
    %2519 = vst.msk [vmem:[%s2506 + $0xe1] sm:$0xff] %vm175, %v2453
    %2520 = vst.msk [vmem:[%s2506 + $0xf1] sm:$0xff] %vm175, %v2454
    %2521 = vst.msk [vmem:[%s2506 + $0x101] sm:$0xff] %vm175, %v2455
    %2522 = vst.msk [vmem:[%s2506 + $0x111] sm:$0xff] %vm175, %v2456
    %v2523 = vld [vmem:[#allocation3] sm:$0xff]
    %v2524 = vld [vmem:[#allocation3 + $0x10] sm:$0xff]
    %v2525 = vld [vmem:[#allocation3 + $0x20] sm:$0xff]
    %v2526 = vld [vmem:[#allocation3 + $0x30] sm:$0xff]
    %v2527 = vld [vmem:[#allocation3 + $0x40] sm:$0xff]
    %v2528 = vld [vmem:[#allocation3 + $0x50] sm:$0xff]
    %v2529 = vld [vmem:[#allocation3 + $0x60] sm:$0xff]
    %v2530 = vld [vmem:[#allocation3 + $0x70] sm:$0xff]
    %v2531 = vld [vmem:[#allocation3 + $0xa0] sm:$0xff]
    %v2532 = vld [vmem:[#allocation3 + $0xb0] sm:$0xff]
    %v2533 = vld [vmem:[#allocation3 + $0xc0] sm:$0xff]
    %v2534 = vld [vmem:[#allocation3 + $0xd0] sm:$0xff]
    %v2535 = vld [vmem:[#allocation3 + $0xe0] sm:$0xff]
    %v2536 = vld [vmem:[#allocation3 + $0xf0] sm:$0xff]
    %v2537 = vld [vmem:[#allocation3 + $0x100] sm:$0xff]
    %v2538 = vld [vmem:[#allocation3 + $0x110] sm:$0xff]
    %v2539 = vld [vmem:[#allocation9] sm:$0xff]
    %v2540 = vld [vmem:[#allocation3 + $0x1] sm:$0xff]
    %v2541 = vld [vmem:[#allocation3 + $0x11] sm:$0xff]
    %v2542 = vld [vmem:[#allocation3 + $0x21] sm:$0xff]
    %v2543 = vld [vmem:[#allocation3 + $0x31] sm:$0xff]
    %v2544 = vld [vmem:[#allocation3 + $0x41] sm:$0xff]
    %v2545 = vld [vmem:[#allocation3 + $0x51] sm:$0xff]
    %v2546 = vld [vmem:[#allocation3 + $0x61] sm:$0xff]
    %v2547 = vld [vmem:[#allocation3 + $0x71] sm:$0xff]
    %v2548 = vld [vmem:[#allocation3 + $0xa1] sm:$0xff]
    %v2549 = vld [vmem:[#allocation3 + $0xb1] sm:$0xff]
    %v2550 = vld [vmem:[#allocation3 + $0xc1] sm:$0xff]
    %v2551 = vld [vmem:[#allocation3 + $0xd1] sm:$0xff]
    %v2552 = vld [vmem:[#allocation3 + $0xe1] sm:$0xff]
    %v2553 = vld [vmem:[#allocation3 + $0xf1] sm:$0xff]
    %v2554 = vld [vmem:[#allocation3 + $0x101] sm:$0xff]
    %v2555 = vld [vmem:[#allocation3 + $0x111] sm:$0xff]
    %s2556 = scalar_lea.vmem [#allocation9], 8
    %v2557 = vld [vmem:[%s2556] sm:$0xff]
    %v2559 = vsel %vm175, %v2540, 0
    %v2562 = vsel %vm175, %v2541, 0
    %v2565 = vsel %vm175, %v2542, 0
    %v2568 = vsel %vm175, %v2543, 0
    %v2571 = vsel %vm175, %v2544, 0
    %v2574 = vsel %vm175, %v2545, 0
    %v2577 = vsel %vm175, %v2546, 0
    %v2580 = vsel %vm175, %v2547, 0
    %v2583 = vsel %vm175, %v2548, 0
    %v2586 = vsel %vm175, %v2549, 0
    %v2589 = vsel %vm175, %v2550, 0
    %v2592 = vsel %vm175, %v2551, 0
    %v2595 = vsel %vm175, %v2552, 0
    %v2598 = vsel %vm175, %v2553, 0
    %v2601 = vsel %vm175, %v2554, 0
    %v2604 = vsel %vm175, %v2555, 0
    %2606 = vmatprep.subr.mxu0 0.0
    %2607 = vmatpush1.msra.mxu0 %v2557
    %2608 = vmatprep.subr.mxu0 0.0
    %2609 = vmatpush1.msra.mxu0 0.0
    %2610 = vmatprep.subr.mxu0 0.0
    %2611 = vmatpush1.msra.mxu0 0.0
    %2612 = vmatprep.subr.mxu0 0.0
    %2613 = vmatpush1.msra.mxu0 0.0
    %2614 = vmatprep.subr.mxu0 0.0
    %2615 = vmatpush1.msra.mxu0 0.0
    %2616 = vmatprep.subr.mxu0 0.0
    %2617 = vmatpush1.msra.mxu0 0.0
    %2618 = vmatprep.subr.mxu0 0.0
    %2619 = vmatpush1.msra.mxu0 0.0
    %2620 = vmatprep.subr.mxu0 0.0
    %2621 = vmatpush1.msra.mxu0 0.0
    %2622 = vmatprep.subr.mxu0 0.0
    %2623 = vmatpush1.msra.mxu0 0.0
    %2624 = vmatprep.subr.mxu0 0.0
    %2625 = vmatpush1.msra.mxu0 0.0
    %2626 = vmatprep.subr.mxu0 0.0
    %2627 = vmatpush1.msra.mxu0 0.0
    %2628 = vmatprep.subr.mxu0 0.0
    %2629 = vmatpush1.msra.mxu0 0.0
    %2630 = vmatprep.subr.mxu0 0.0
    %2631 = vmatpush1.msra.mxu0 0.0
    %2632 = vmatprep.subr.mxu0 0.0
    %2633 = vmatpush1.msra.mxu0 0.0
    %2634 = vmatprep.subr.mxu0 0.0
    %2635 = vmatpush1.msra.mxu0 0.0
    %2636 = vmatprep.subr.mxu0 0.0
    %2637 = vmatpush1.msra.mxu0 0.0
    %2638 = vmatprep.subr.mxu0 0.0
    %2639 = vmatpush1.msra.mxu0 0.0
    %2640 = vmatprep.subr.mxu0 0.0
    %2641 = vmatpush1.msra.mxu0 0.0
    %2642 = vmatprep.subr.mxu0 0.0
    %2643 = vmatpush1.msra.mxu0 0.0
    %2644 = vmatprep.subr.mxu0 0.0
    %2645 = vmatpush1.msra.mxu0 0.0
    %2646 = vmatprep.subr.mxu0 0.0
    %2647 = vmatpush1.msra.mxu0 0.0
    %2648 = vmatprep.subr.mxu0 0.0
    %2649 = vmatpush1.msra.mxu0 0.0
    %2650 = vmatprep.subr.mxu0 0.0
    %2651 = vmatpush1.msra.mxu0 0.0
    %2652 = vmatprep.subr.mxu0 0.0
    %2653 = vmatpush1.msra.mxu0 0.0
    %2654 = vmatprep.subr.mxu0 0.0
    %2655 = vmatpush1.msra.mxu0 0.0
    %2656 = vmatprep.subr.mxu0 0.0
    %2657 = vmatpush1.msra.mxu0 0.0
    %2658 = vmatprep.subr.mxu0 0.0
    %2659 = vmatpush1.msra.mxu0 0.0
    %2660 = vmatprep.subr.mxu0 0.0
    %2661 = vmatpush1.msra.mxu0 0.0
    %2662 = vmatprep.subr.mxu0 0.0
    %2663 = vmatpush1.msra.mxu0 0.0
    %2664 = vmatprep.subr.mxu0 0.0
    %2665 = vmatpush1.msra.mxu0 0.0
    %2666 = vmatprep.subr.mxu0 0.0
    %2667 = vmatpush1.msra.mxu0 0.0
    %2668 = vmatprep.subr.mxu0 0.0
    %2669 = vmatpush1.msra.mxu0 0.0
    %2670 = vmatprep.mubr.f32.mxu0 0.0
    %2671 = vmatmul.mubr.f32.gmra.mrb[0].mxu0 %v2559
    %v2672 = vpop.f32.mrb[0].mxu0
    %v2673 = vadd.f32 0.0, %v2672
    %v2674 = vpop.f32.mrb[0].mxu0
    %2675 = vmatprep.mubr.f32.mxu0 0.0
    %2676 = vmatmul.mubr.f32.gmra.mrb[0].mxu0 %v2562
    %v2677 = vpop.f32.mrb[0].mxu0
    %v2678 = vadd.f32 0.0, %v2677
    %v2679 = vpop.f32.mrb[0].mxu0
    %2680 = vmatprep.mubr.f32.mxu0 0.0
    %2681 = vmatmul.mubr.f32.gmra.mrb[0].mxu0 %v2565
    %v2682 = vpop.f32.mrb[0].mxu0
    %v2683 = vadd.f32 0.0, %v2682
    %v2684 = vpop.f32.mrb[0].mxu0
    %2685 = vmatprep.mubr.f32.mxu0 0.0
    %2686 = vmatmul.mubr.f32.gmra.mrb[0].mxu0 %v2568
    %v2687 = vpop.f32.mrb[0].mxu0
    %v2688 = vadd.f32 0.0, %v2687
    %v2689 = vpop.f32.mrb[0].mxu0
    %2690 = vmatprep.mubr.f32.mxu0 0.0
    %2691 = vmatmul.mubr.f32.gmra.mrb[0].mxu0 %v2571
    %v2692 = vpop.f32.mrb[0].mxu0
    %v2693 = vadd.f32 0.0, %v2692
    %v2694 = vpop.f32.mrb[0].mxu0
    %2695 = vmatprep.mubr.f32.mxu0 0.0
    %2696 = vmatmul.mubr.f32.gmra.mrb[0].mxu0 %v2574
    %v2697 = vpop.f32.mrb[0].mxu0
    %v2698 = vadd.f32 0.0, %v2697
    %v2699 = vpop.f32.mrb[0].mxu0
    %2700 = vmatprep.mubr.f32.mxu0 0.0
    %2701 = vmatmul.mubr.f32.gmra.mrb[0].mxu0 %v2577
    %v2702 = vpop.f32.mrb[0].mxu0
    %v2703 = vadd.f32 0.0, %v2702
    %v2704 = vpop.f32.mrb[0].mxu0
    %2705 = vmatprep.mubr.f32.mxu0 0.0
    %2706 = vmatmul.mubr.f32.gmra.mrb[0].mxu0 %v2580
    %v2707 = vpop.f32.mrb[0].mxu0
    %v2708 = vadd.f32 0.0, %v2707
    %v2709 = vpop.f32.mrb[0].mxu0
    %2710 = vmatprep.mubr.f32.mxu0 0.0
    %2711 = vmatmul.mubr.f32.gmra.mrb[0].mxu0 %v2583
    %v2712 = vpop.f32.mrb[0].mxu0
    %v2713 = vadd.f32 0.0, %v2712
    %v2714 = vpop.f32.mrb[0].mxu0
    %2715 = vmatprep.mubr.f32.mxu0 0.0
    %2716 = vmatmul.mubr.f32.gmra.mrb[0].mxu0 %v2586
    %v2717 = vpop.f32.mrb[0].mxu0
    %v2718 = vadd.f32 0.0, %v2717
    %v2719 = vpop.f32.mrb[0].mxu0
    %2720 = vmatprep.mubr.f32.mxu0 0.0
    %2721 = vmatmul.mubr.f32.gmra.mrb[0].mxu0 %v2589
    %v2722 = vpop.f32.mrb[0].mxu0
    %v2723 = vadd.f32 0.0, %v2722
    %v2724 = vpop.f32.mrb[0].mxu0
    %2725 = vmatprep.mubr.f32.mxu0 0.0
    %2726 = vmatmul.mubr.f32.gmra.mrb[0].mxu0 %v2592
    %v2727 = vpop.f32.mrb[0].mxu0
    %v2728 = vadd.f32 0.0, %v2727
    %v2729 = vpop.f32.mrb[0].mxu0
    %2730 = vmatprep.mubr.f32.mxu0 0.0
    %2731 = vmatmul.mubr.f32.gmra.mrb[0].mxu0 %v2595
    %v2732 = vpop.f32.mrb[0].mxu0
    %v2733 = vadd.f32 0.0, %v2732
    %v2734 = vpop.f32.mrb[0].mxu0
    %2735 = vmatprep.mubr.f32.mxu0 0.0
    %2736 = vmatmul.mubr.f32.gmra.mrb[0].mxu0 %v2598
    %v2737 = vpop.f32.mrb[0].mxu0
    %v2738 = vadd.f32 0.0, %v2737
    %v2739 = vpop.f32.mrb[0].mxu0
    %2740 = vmatprep.mubr.f32.mxu0 0.0
    %2741 = vmatmul.mubr.f32.gmra.mrb[0].mxu0 %v2601
    %v2742 = vpop.f32.mrb[0].mxu0
    %v2743 = vadd.f32 0.0, %v2742
    %v2744 = vpop.f32.mrb[0].mxu0
    %2745 = vmatprep.mubr.f32.mxu0 0.0
    %2746 = vmatmul.mubr.f32.gmra.mrb[0].mxu0 %v2604
    %v2747 = vpop.f32.mrb[0].mxu0
    %v2748 = vadd.f32 0.0, %v2747
    %v2749 = vpop.f32.mrb[0].mxu0
    %2750 = vdwg.mxu0
    %v2752 = vsel %vm175, %v2523, 0
    %v2755 = vsel %vm175, %v2524, 0
    %v2758 = vsel %vm175, %v2525, 0
    %v2761 = vsel %vm175, %v2526, 0
    %v2764 = vsel %vm175, %v2527, 0
    %v2767 = vsel %vm175, %v2528, 0
    %v2770 = vsel %vm175, %v2529, 0
    %v2773 = vsel %vm175, %v2530, 0
    %v2776 = vsel %vm175, %v2531, 0
    %v2779 = vsel %vm175, %v2532, 0
    %v2782 = vsel %vm175, %v2533, 0
    %v2785 = vsel %vm175, %v2534, 0
    %v2788 = vsel %vm175, %v2535, 0
    %v2791 = vsel %vm175, %v2536, 0
    %v2794 = vsel %vm175, %v2537, 0
    %v2797 = vsel %vm175, %v2538, 0
    %2799 = vmatprep.subr.mxu0 0.0
    %2800 = vmatpush1.msra.mxu0 %v2539
    %2801 = vmatprep.subr.mxu0 0.0
    %2802 = vmatpush1.msra.mxu0 0.0
    %2803 = vmatprep.subr.mxu0 0.0
    %2804 = vmatpush1.msra.mxu0 0.0
    %2805 = vmatprep.subr.mxu0 0.0
    %2806 = vmatpush1.msra.mxu0 0.0
    %2807 = vmatprep.subr.mxu0 0.0
    %2808 = vmatpush1.msra.mxu0 0.0
    %2809 = vmatprep.subr.mxu0 0.0
    %2810 = vmatpush1.msra.mxu0 0.0
    %2811 = vmatprep.subr.mxu0 0.0
    %2812 = vmatpush1.msra.mxu0 0.0
    %2813 = vmatprep.subr.mxu0 0.0
    %2814 = vmatpush1.msra.mxu0 0.0
    %2815 = vmatprep.subr.mxu0 0.0
    %2816 = vmatpush1.msra.mxu0 0.0
    %2817 = vmatprep.subr.mxu0 0.0
    %2818 = vmatpush1.msra.mxu0 0.0
    %2819 = vmatprep.subr.mxu0 0.0
    %2820 = vmatpush1.msra.mxu0 0.0
    %2821 = vmatprep.subr.mxu0 0.0
    %2822 = vmatpush1.msra.mxu0 0.0
    %2823 = vmatprep.subr.mxu0 0.0
    %2824 = vmatpush1.msra.mxu0 0.0
    %2825 = vmatprep.subr.mxu0 0.0
    %2826 = vmatpush1.msra.mxu0 0.0
    %2827 = vmatprep.subr.mxu0 0.0
    %2828 = vmatpush1.msra.mxu0 0.0
    %2829 = vmatprep.subr.mxu0 0.0
    %2830 = vmatpush1.msra.mxu0 0.0
    %2831 = vmatprep.subr.mxu0 0.0
    %2832 = vmatpush1.msra.mxu0 0.0
    %2833 = vmatprep.subr.mxu0 0.0
    %2834 = vmatpush1.msra.mxu0 0.0
    %2835 = vmatprep.subr.mxu0 0.0
    %2836 = vmatpush1.msra.mxu0 0.0
    %2837 = vmatprep.subr.mxu0 0.0
    %2838 = vmatpush1.msra.mxu0 0.0
    %2839 = vmatprep.subr.mxu0 0.0
    %2840 = vmatpush1.msra.mxu0 0.0
    %2841 = vmatprep.subr.mxu0 0.0
    %2842 = vmatpush1.msra.mxu0 0.0
    %2843 = vmatprep.subr.mxu0 0.0
    %2844 = vmatpush1.msra.mxu0 0.0
    %2845 = vmatprep.subr.mxu0 0.0
    %2846 = vmatpush1.msra.mxu0 0.0
    %2847 = vmatprep.subr.mxu0 0.0
    %2848 = vmatpush1.msra.mxu0 0.0
    %2849 = vmatprep.subr.mxu0 0.0
    %2850 = vmatpush1.msra.mxu0 0.0
    %2851 = vmatprep.subr.mxu0 0.0
    %2852 = vmatpush1.msra.mxu0 0.0
    %2853 = vmatprep.subr.mxu0 0.0
    %2854 = vmatpush1.msra.mxu0 0.0
    %2855 = vmatprep.subr.mxu0 0.0
    %2856 = vmatpush1.msra.mxu0 0.0
    %2857 = vmatprep.subr.mxu0 0.0
    %2858 = vmatpush1.msra.mxu0 0.0
    %2859 = vmatprep.subr.mxu0 0.0
    %2860 = vmatpush1.msra.mxu0 0.0
    %2861 = vmatprep.subr.mxu0 0.0
    %2862 = vmatpush1.msra.mxu0 0.0
    %2863 = vmatprep.mubr.f32.mxu0 0.0
    %2864 = vmatmul.mubr.f32.gmra.mrb[0].mxu0 %v2752
    %v2865 = vpop.f32.mrb[0].mxu0
    %v2866 = vadd.f32 %v2673, %v2865
    %v2867 = vpop.f32.mrb[0].mxu0
    %2868 = vmatprep.mubr.f32.mxu0 0.0
    %2869 = vmatmul.mubr.f32.gmra.mrb[0].mxu0 %v2755
    %v2870 = vpop.f32.mrb[0].mxu0
    %v2871 = vadd.f32 %v2678, %v2870
    %v2872 = vpop.f32.mrb[0].mxu0
    %2873 = vmatprep.mubr.f32.mxu0 0.0
    %2874 = vmatmul.mubr.f32.gmra.mrb[0].mxu0 %v2758
    %v2875 = vpop.f32.mrb[0].mxu0
    %v2876 = vadd.f32 %v2683, %v2875
    %v2877 = vpop.f32.mrb[0].mxu0
    %2878 = vmatprep.mubr.f32.mxu0 0.0
    %2879 = vmatmul.mubr.f32.gmra.mrb[0].mxu0 %v2761
    %v2880 = vpop.f32.mrb[0].mxu0
    %v2881 = vadd.f32 %v2688, %v2880
    %v2882 = vpop.f32.mrb[0].mxu0
    %2883 = vmatprep.mubr.f32.mxu0 0.0
    %2884 = vmatmul.mubr.f32.gmra.mrb[0].mxu0 %v2764
    %v2885 = vpop.f32.mrb[0].mxu0
    %v2886 = vadd.f32 %v2693, %v2885
    %v2887 = vpop.f32.mrb[0].mxu0
    %2888 = vmatprep.mubr.f32.mxu0 0.0
    %2889 = vmatmul.mubr.f32.gmra.mrb[0].mxu0 %v2767
    %v2890 = vpop.f32.mrb[0].mxu0
    %v2891 = vadd.f32 %v2698, %v2890
    %v2892 = vpop.f32.mrb[0].mxu0
    %2893 = vmatprep.mubr.f32.mxu0 0.0
    %2894 = vmatmul.mubr.f32.gmra.mrb[0].mxu0 %v2770
    %v2895 = vpop.f32.mrb[0].mxu0
    %v2896 = vadd.f32 %v2703, %v2895
    %v2897 = vpop.f32.mrb[0].mxu0
    %2898 = vmatprep.mubr.f32.mxu0 0.0
    %2899 = vmatmul.mubr.f32.gmra.mrb[0].mxu0 %v2773
    %v2900 = vpop.f32.mrb[0].mxu0
    %v2901 = vadd.f32 %v2708, %v2900
    %v2902 = vpop.f32.mrb[0].mxu0
    %2903 = vmatprep.mubr.f32.mxu0 0.0
    %2904 = vmatmul.mubr.f32.gmra.mrb[0].mxu0 %v2776
    %v2905 = vpop.f32.mrb[0].mxu0
    %v2906 = vadd.f32 %v2713, %v2905
    %v2907 = vpop.f32.mrb[0].mxu0
    %2908 = vmatprep.mubr.f32.mxu0 0.0
    %2909 = vmatmul.mubr.f32.gmra.mrb[0].mxu0 %v2779
    %v2910 = vpop.f32.mrb[0].mxu0
    %v2911 = vadd.f32 %v2718, %v2910
    %v2912 = vpop.f32.mrb[0].mxu0
    %2913 = vmatprep.mubr.f32.mxu0 0.0
    %2914 = vmatmul.mubr.f32.gmra.mrb[0].mxu0 %v2782
    %v2915 = vpop.f32.mrb[0].mxu0
    %v2916 = vadd.f32 %v2723, %v2915
    %v2917 = vpop.f32.mrb[0].mxu0
    %2918 = vmatprep.mubr.f32.mxu0 0.0
    %2919 = vmatmul.mubr.f32.gmra.mrb[0].mxu0 %v2785
    %v2920 = vpop.f32.mrb[0].mxu0
    %v2921 = vadd.f32 %v2728, %v2920
    %v2922 = vpop.f32.mrb[0].mxu0
    %2923 = vmatprep.mubr.f32.mxu0 0.0
    %2924 = vmatmul.mubr.f32.gmra.mrb[0].mxu0 %v2788
    %v2925 = vpop.f32.mrb[0].mxu0
    %v2926 = vadd.f32 %v2733, %v2925
    %v2927 = vpop.f32.mrb[0].mxu0
    %2928 = vmatprep.mubr.f32.mxu0 0.0
    %2929 = vmatmul.mubr.f32.gmra.mrb[0].mxu0 %v2791
    %v2930 = vpop.f32.mrb[0].mxu0
    %v2931 = vadd.f32 %v2738, %v2930
    %v2932 = vpop.f32.mrb[0].mxu0
    %2933 = vmatprep.mubr.f32.mxu0 0.0
    %2934 = vmatmul.mubr.f32.gmra.mrb[0].mxu0 %v2794
    %v2935 = vpop.f32.mrb[0].mxu0
    %v2936 = vadd.f32 %v2743, %v2935
    %v2937 = vpop.f32.mrb[0].mxu0
    %2938 = vmatprep.mubr.f32.mxu0 0.0
    %2939 = vmatmul.mubr.f32.gmra.mrb[0].mxu0 %v2797
    %v2940 = vpop.f32.mrb[0].mxu0
    %v2941 = vadd.f32 %v2748, %v2940
    %v2942 = vpop.f32.mrb[0].mxu0
    %2943 = vdwg.mxu0
    %v2944 = vld [vmem:[#allocation3 + $0x2] sm:$0xff]
    %v2945 = vld [vmem:[#allocation3 + $0x12] sm:$0xff]
    %v2946 = vld [vmem:[#allocation3 + $0x22] sm:$0xff]
    %v2947 = vld [vmem:[#allocation3 + $0x32] sm:$0xff]
    %v2948 = vld [vmem:[#allocation3 + $0x42] sm:$0xff]
    %v2949 = vld [vmem:[#allocation3 + $0x52] sm:$0xff]
    %v2950 = vld [vmem:[#allocation3 + $0x62] sm:$0xff]
    %v2951 = vld [vmem:[#allocation3 + $0x72] sm:$0xff]
    %v2952 = vld [vmem:[#allocation3 + $0xa2] sm:$0xff]
    %v2953 = vld [vmem:[#allocation3 + $0xb2] sm:$0xff]
    %v2954 = vld [vmem:[#allocation3 + $0xc2] sm:$0xff]
    %v2955 = vld [vmem:[#allocation3 + $0xd2] sm:$0xff]
    %v2956 = vld [vmem:[#allocation3 + $0xe2] sm:$0xff]
    %v2957 = vld [vmem:[#allocation3 + $0xf2] sm:$0xff]
    %v2958 = vld [vmem:[#allocation3 + $0x102] sm:$0xff]
    %v2959 = vld [vmem:[#allocation3 + $0x112] sm:$0xff]
    %s2960 = scalar_lea.vmem [#allocation9], 16
    %v2961 = vld [vmem:[%s2960] sm:$0xff]
    %v2963 = vsel %vm175, %v2944, 0
    %v2966 = vsel %vm175, %v2945, 0
    %v2969 = vsel %vm175, %v2946, 0
    %v2972 = vsel %vm175, %v2947, 0
    %v2975 = vsel %vm175, %v2948, 0
    %v2978 = vsel %vm175, %v2949, 0
    %v2981 = vsel %vm175, %v2950, 0
    %v2984 = vsel %vm175, %v2951, 0
    %v2987 = vsel %vm175, %v2952, 0
    %v2990 = vsel %vm175, %v2953, 0
    %v2993 = vsel %vm175, %v2954, 0
    %v2996 = vsel %vm175, %v2955, 0
    %v2999 = vsel %vm175, %v2956, 0
    %v3002 = vsel %vm175, %v2957, 0
    %v3005 = vsel %vm175, %v2958, 0
    %v3008 = vsel %vm175, %v2959, 0
    %3010 = vmatprep.subr.mxu0 0.0
    %3011 = vmatpush1.msra.mxu0 %v2961
    %3012 = vmatprep.subr.mxu0 0.0
    %3013 = vmatpush1.msra.mxu0 0.0
    %3014 = vmatprep.subr.mxu0 0.0
    %3015 = vmatpush1.msra.mxu0 0.0
    %3016 = vmatprep.subr.mxu0 0.0
    %3017 = vmatpush1.msra.mxu0 0.0
    %3018 = vmatprep.subr.mxu0 0.0
    %3019 = vmatpush1.msra.mxu0 0.0
    %3020 = vmatprep.subr.mxu0 0.0
    %3021 = vmatpush1.msra.mxu0 0.0
    %3022 = vmatprep.subr.mxu0 0.0
    %3023 = vmatpush1.msra.mxu0 0.0
    %3024 = vmatprep.subr.mxu0 0.0
    %3025 = vmatpush1.msra.mxu0 0.0
    %3026 = vmatprep.subr.mxu0 0.0
    %3027 = vmatpush1.msra.mxu0 0.0
    %3028 = vmatprep.subr.mxu0 0.0
    %3029 = vmatpush1.msra.mxu0 0.0
    %3030 = vmatprep.subr.mxu0 0.0
    %3031 = vmatpush1.msra.mxu0 0.0
    %3032 = vmatprep.subr.mxu0 0.0
    %3033 = vmatpush1.msra.mxu0 0.0
    %3034 = vmatprep.subr.mxu0 0.0
    %3035 = vmatpush1.msra.mxu0 0.0
    %3036 = vmatprep.subr.mxu0 0.0
    %3037 = vmatpush1.msra.mxu0 0.0
    %3038 = vmatprep.subr.mxu0 0.0
    %3039 = vmatpush1.msra.mxu0 0.0
    %3040 = vmatprep.subr.mxu0 0.0
    %3041 = vmatpush1.msra.mxu0 0.0
    %3042 = vmatprep.subr.mxu0 0.0
    %3043 = vmatpush1.msra.mxu0 0.0
    %3044 = vmatprep.subr.mxu0 0.0
    %3045 = vmatpush1.msra.mxu0 0.0
    %3046 = vmatprep.subr.mxu0 0.0
    %3047 = vmatpush1.msra.mxu0 0.0
    %3048 = vmatprep.subr.mxu0 0.0
    %3049 = vmatpush1.msra.mxu0 0.0
    %3050 = vmatprep.subr.mxu0 0.0
    %3051 = vmatpush1.msra.mxu0 0.0
    %3052 = vmatprep.subr.mxu0 0.0
    %3053 = vmatpush1.msra.mxu0 0.0
    %3054 = vmatprep.subr.mxu0 0.0
    %3055 = vmatpush1.msra.mxu0 0.0
    %3056 = vmatprep.subr.mxu0 0.0
    %3057 = vmatpush1.msra.mxu0 0.0
    %3058 = vmatprep.subr.mxu0 0.0
    %3059 = vmatpush1.msra.mxu0 0.0
    %3060 = vmatprep.subr.mxu0 0.0
    %3061 = vmatpush1.msra.mxu0 0.0
    %3062 = vmatprep.subr.mxu0 0.0
    %3063 = vmatpush1.msra.mxu0 0.0
    %3064 = vmatprep.subr.mxu0 0.0
    %3065 = vmatpush1.msra.mxu0 0.0
    %3066 = vmatprep.subr.mxu0 0.0
    %3067 = vmatpush1.msra.mxu0 0.0
    %3068 = vmatprep.subr.mxu0 0.0
    %3069 = vmatpush1.msra.mxu0 0.0
    %3070 = vmatprep.subr.mxu0 0.0
    %3071 = vmatpush1.msra.mxu0 0.0
    %3072 = vmatprep.subr.mxu0 0.0
    %3073 = vmatpush1.msra.mxu0 0.0
    %3074 = vmatprep.mubr.f32.mxu0 0.0
    %3075 = vmatmul.mubr.f32.gmra.mrb[0].mxu0 %v2963
    %v3076 = vpop.f32.mrb[0].mxu0
    %v3077 = vadd.f32 0.0, %v3076
    %v3078 = vpop.f32.mrb[0].mxu0
    %3079 = vmatprep.mubr.f32.mxu0 0.0
    %3080 = vmatmul.mubr.f32.gmra.mrb[0].mxu0 %v2966
    %v3081 = vpop.f32.mrb[0].mxu0
    %v3082 = vadd.f32 0.0, %v3081
    %v3083 = vpop.f32.mrb[0].mxu0
    %3084 = vmatprep.mubr.f32.mxu0 0.0
    %3085 = vmatmul.mubr.f32.gmra.mrb[0].mxu0 %v2969
    %v3086 = vpop.f32.mrb[0].mxu0
    %v3087 = vadd.f32 0.0, %v3086
    %v3088 = vpop.f32.mrb[0].mxu0
    %3089 = vmatprep.mubr.f32.mxu0 0.0
    %3090 = vmatmul.mubr.f32.gmra.mrb[0].mxu0 %v2972
    %v3091 = vpop.f32.mrb[0].mxu0
    %v3092 = vadd.f32 0.0, %v3091
    %v3093 = vpop.f32.mrb[0].mxu0
    %3094 = vmatprep.mubr.f32.mxu0 0.0
    %3095 = vmatmul.mubr.f32.gmra.mrb[0].mxu0 %v2975
    %v3096 = vpop.f32.mrb[0].mxu0
    %v3097 = vadd.f32 0.0, %v3096
    %v3098 = vpop.f32.mrb[0].mxu0
    %3099 = vmatprep.mubr.f32.mxu0 0.0
    %3100 = vmatmul.mubr.f32.gmra.mrb[0].mxu0 %v2978
    %v3101 = vpop.f32.mrb[0].mxu0
    %v3102 = vadd.f32 0.0, %v3101
    %v3103 = vpop.f32.mrb[0].mxu0
    %3104 = vmatprep.mubr.f32.mxu0 0.0
    %3105 = vmatmul.mubr.f32.gmra.mrb[0].mxu0 %v2981
    %v3106 = vpop.f32.mrb[0].mxu0
    %v3107 = vadd.f32 0.0, %v3106
    %v3108 = vpop.f32.mrb[0].mxu0
    %3109 = vmatprep.mubr.f32.mxu0 0.0
    %3110 = vmatmul.mubr.f32.gmra.mrb[0].mxu0 %v2984
    %v3111 = vpop.f32.mrb[0].mxu0
    %v3112 = vadd.f32 0.0, %v3111
    %v3113 = vpop.f32.mrb[0].mxu0
    %3114 = vmatprep.mubr.f32.mxu0 0.0
    %3115 = vmatmul.mubr.f32.gmra.mrb[0].mxu0 %v2987
    %v3116 = vpop.f32.mrb[0].mxu0
    %v3117 = vadd.f32 0.0, %v3116
    %v3118 = vpop.f32.mrb[0].mxu0
    %3119 = vmatprep.mubr.f32.mxu0 0.0
    %3120 = vmatmul.mubr.f32.gmra.mrb[0].mxu0 %v2990
    %v3121 = vpop.f32.mrb[0].mxu0
    %v3122 = vadd.f32 0.0, %v3121
    %v3123 = vpop.f32.mrb[0].mxu0
    %3124 = vmatprep.mubr.f32.mxu0 0.0
    %3125 = vmatmul.mubr.f32.gmra.mrb[0].mxu0 %v2993
    %v3126 = vpop.f32.mrb[0].mxu0
    %v3127 = vadd.f32 0.0, %v3126
    %v3128 = vpop.f32.mrb[0].mxu0
    %3129 = vmatprep.mubr.f32.mxu0 0.0
    %3130 = vmatmul.mubr.f32.gmra.mrb[0].mxu0 %v2996
    %v3131 = vpop.f32.mrb[0].mxu0
    %v3132 = vadd.f32 0.0, %v3131
    %v3133 = vpop.f32.mrb[0].mxu0
    %3134 = vmatprep.mubr.f32.mxu0 0.0
    %3135 = vmatmul.mubr.f32.gmra.mrb[0].mxu0 %v2999
    %v3136 = vpop.f32.mrb[0].mxu0
    %v3137 = vadd.f32 0.0, %v3136
    %v3138 = vpop.f32.mrb[0].mxu0
    %3139 = vmatprep.mubr.f32.mxu0 0.0
    %3140 = vmatmul.mubr.f32.gmra.mrb[0].mxu0 %v3002
    %v3141 = vpop.f32.mrb[0].mxu0
    %v3142 = vadd.f32 0.0, %v3141
    %v3143 = vpop.f32.mrb[0].mxu0
    %3144 = vmatprep.mubr.f32.mxu0 0.0
    %3145 = vmatmul.mubr.f32.gmra.mrb[0].mxu0 %v3005
    %v3146 = vpop.f32.mrb[0].mxu0
    %v3147 = vadd.f32 0.0, %v3146
    %v3148 = vpop.f32.mrb[0].mxu0
    %3149 = vmatprep.mubr.f32.mxu0 0.0
    %3150 = vmatmul.mubr.f32.gmra.mrb[0].mxu0 %v3008
    %v3151 = vpop.f32.mrb[0].mxu0
    %v3152 = vadd.f32 0.0, %v3151
    %v3153 = vpop.f32.mrb[0].mxu0
    %3154 = vdwg.mxu0
    %v3155 = vadd.f32 %v2866, %v3077
    %v3156 = vadd.f32 %v2871, %v3082
    %v3157 = vadd.f32 %v2876, %v3087
    %v3158 = vadd.f32 %v2881, %v3092
    %v3159 = vadd.f32 %v2886, %v3097
    %v3160 = vadd.f32 %v2891, %v3102
    %v3161 = vadd.f32 %v2896, %v3107
    %v3162 = vadd.f32 %v2901, %v3112
    %v3163 = vadd.f32 %v2906, %v3117
    %v3164 = vadd.f32 %v2911, %v3122
    %v3165 = vadd.f32 %v2916, %v3127
    %v3166 = vadd.f32 %v2921, %v3132
    %v3167 = vadd.f32 %v2926, %v3137
    %v3168 = vadd.f32 %v2931, %v3142
    %v3169 = vadd.f32 %v2936, %v3147
    %v3170 = vadd.f32 %v2941, %v3152
    %v3171 = vld [vmem:[%s2506] sm:$0xff]
    %v3172 = vld [vmem:[%s2506 + $0x10] sm:$0xff]
    %v3173 = vld [vmem:[%s2506 + $0x20] sm:$0xff]
    %v3174 = vld [vmem:[%s2506 + $0x30] sm:$0xff]
    %v3175 = vld [vmem:[%s2506 + $0x40] sm:$0xff]
    %v3176 = vld [vmem:[%s2506 + $0x50] sm:$0xff]
    %v3177 = vld [vmem:[%s2506 + $0x60] sm:$0xff]
    %v3178 = vld [vmem:[%s2506 + $0x70] sm:$0xff]
    %v3179 = vld [vmem:[%s2506 + $0xa0] sm:$0xff]
    %v3180 = vld [vmem:[%s2506 + $0xb0] sm:$0xff]
    %v3181 = vld [vmem:[%s2506 + $0xc0] sm:$0xff]
    %v3182 = vld [vmem:[%s2506 + $0xd0] sm:$0xff]
    %v3183 = vld [vmem:[%s2506 + $0xe0] sm:$0xff]
    %v3184 = vld [vmem:[%s2506 + $0xf0] sm:$0xff]
    %v3185 = vld [vmem:[%s2506 + $0x100] sm:$0xff]
    %v3186 = vld [vmem:[%s2506 + $0x110] sm:$0xff]
    %s3187 = scalar_lea.vmem [#allocation9], 24
    %v3188 = vld [vmem:[%s3187] sm:$0xff]
    %v3190 = vsel %vm175, %v3171, 0
    %v3193 = vsel %vm175, %v3172, 0
    %v3196 = vsel %vm175, %v3173, 0
    %v3199 = vsel %vm175, %v3174, 0
    %v3202 = vsel %vm175, %v3175, 0
    %v3205 = vsel %vm175, %v3176, 0
    %v3208 = vsel %vm175, %v3177, 0
    %v3211 = vsel %vm175, %v3178, 0
    %v3214 = vsel %vm175, %v3179, 0
    %v3217 = vsel %vm175, %v3180, 0
    %v3220 = vsel %vm175, %v3181, 0
    %v3223 = vsel %vm175, %v3182, 0
    %v3226 = vsel %vm175, %v3183, 0
    %v3229 = vsel %vm175, %v3184, 0
    %v3232 = vsel %vm175, %v3185, 0
    %v3235 = vsel %vm175, %v3186, 0
    %3237 = vmatprep.subr.mxu0 0.0
    %3238 = vmatpush1.msra.mxu0 %v3188
    %3239 = vmatprep.subr.mxu0 0.0
    %3240 = vmatpush1.msra.mxu0 0.0
    %3241 = vmatprep.subr.mxu0 0.0
    %3242 = vmatpush1.msra.mxu0 0.0
    %3243 = vmatprep.subr.mxu0 0.0
    %3244 = vmatpush1.msra.mxu0 0.0
    %3245 = vmatprep.subr.mxu0 0.0
    %3246 = vmatpush1.msra.mxu0 0.0
    %3247 = vmatprep.subr.mxu0 0.0
    %3248 = vmatpush1.msra.mxu0 0.0
    %3249 = vmatprep.subr.mxu0 0.0
    %3250 = vmatpush1.msra.mxu0 0.0
    %3251 = vmatprep.subr.mxu0 0.0
    %3252 = vmatpush1.msra.mxu0 0.0
    %3253 = vmatprep.subr.mxu0 0.0
    %3254 = vmatpush1.msra.mxu0 0.0
    %3255 = vmatprep.subr.mxu0 0.0
    %3256 = vmatpush1.msra.mxu0 0.0
    %3257 = vmatprep.subr.mxu0 0.0
    %3258 = vmatpush1.msra.mxu0 0.0
    %3259 = vmatprep.subr.mxu0 0.0
    %3260 = vmatpush1.msra.mxu0 0.0
    %3261 = vmatprep.subr.mxu0 0.0
    %3262 = vmatpush1.msra.mxu0 0.0
    %3263 = vmatprep.subr.mxu0 0.0
    %3264 = vmatpush1.msra.mxu0 0.0
    %3265 = vmatprep.subr.mxu0 0.0
    %3266 = vmatpush1.msra.mxu0 0.0
    %3267 = vmatprep.subr.mxu0 0.0
    %3268 = vmatpush1.msra.mxu0 0.0
    %3269 = vmatprep.subr.mxu0 0.0
    %3270 = vmatpush1.msra.mxu0 0.0
    %3271 = vmatprep.subr.mxu0 0.0
    %3272 = vmatpush1.msra.mxu0 0.0
    %3273 = vmatprep.subr.mxu0 0.0
    %3274 = vmatpush1.msra.mxu0 0.0
    %3275 = vmatprep.subr.mxu0 0.0
    %3276 = vmatpush1.msra.mxu0 0.0
    %3277 = vmatprep.subr.mxu0 0.0
    %3278 = vmatpush1.msra.mxu0 0.0
    %3279 = vmatprep.subr.mxu0 0.0
    %3280 = vmatpush1.msra.mxu0 0.0
    %3281 = vmatprep.subr.mxu0 0.0
    %3282 = vmatpush1.msra.mxu0 0.0
    %3283 = vmatprep.subr.mxu0 0.0
    %3284 = vmatpush1.msra.mxu0 0.0
    %3285 = vmatprep.subr.mxu0 0.0
    %3286 = vmatpush1.msra.mxu0 0.0
    %3287 = vmatprep.subr.mxu0 0.0
    %3288 = vmatpush1.msra.mxu0 0.0
    %3289 = vmatprep.subr.mxu0 0.0
    %3290 = vmatpush1.msra.mxu0 0.0
    %3291 = vmatprep.subr.mxu0 0.0
    %3292 = vmatpush1.msra.mxu0 0.0
    %3293 = vmatprep.subr.mxu0 0.0
    %3294 = vmatpush1.msra.mxu0 0.0
    %3295 = vmatprep.subr.mxu0 0.0
    %3296 = vmatpush1.msra.mxu0 0.0
    %3297 = vmatprep.subr.mxu0 0.0
    %3298 = vmatpush1.msra.mxu0 0.0
    %3299 = vmatprep.subr.mxu0 0.0
    %3300 = vmatpush1.msra.mxu0 0.0
    %3301 = vmatprep.mubr.f32.mxu0 0.0
    %3302 = vmatmul.mubr.f32.gmra.mrb[0].mxu0 %v3190
    %v3303 = vpop.f32.mrb[0].mxu0
    %v3304 = vadd.f32 0.0, %v3303
    %v3305 = vpop.f32.mrb[0].mxu0
    %3306 = vmatprep.mubr.f32.mxu0 0.0
    %3307 = vmatmul.mubr.f32.gmra.mrb[0].mxu0 %v3193
    %v3308 = vpop.f32.mrb[0].mxu0
    %v3309 = vadd.f32 0.0, %v3308
    %v3310 = vpop.f32.mrb[0].mxu0
    %3311 = vmatprep.mubr.f32.mxu0 0.0
    %3312 = vmatmul.mubr.f32.gmra.mrb[0].mxu0 %v3196
    %v3313 = vpop.f32.mrb[0].mxu0
    %v3314 = vadd.f32 0.0, %v3313
    %v3315 = vpop.f32.mrb[0].mxu0
    %3316 = vmatprep.mubr.f32.mxu0 0.0
    %3317 = vmatmul.mubr.f32.gmra.mrb[0].mxu0 %v3199
    %v3318 = vpop.f32.mrb[0].mxu0
    %v3319 = vadd.f32 0.0, %v3318
    %v3320 = vpop.f32.mrb[0].mxu0
    %3321 = vmatprep.mubr.f32.mxu0 0.0
    %3322 = vmatmul.mubr.f32.gmra.mrb[0].mxu0 %v3202
    %v3323 = vpop.f32.mrb[0].mxu0
    %v3324 = vadd.f32 0.0, %v3323
    %v3325 = vpop.f32.mrb[0].mxu0
    %3326 = vmatprep.mubr.f32.mxu0 0.0
    %3327 = vmatmul.mubr.f32.gmra.mrb[0].mxu0 %v3205
    %v3328 = vpop.f32.mrb[0].mxu0
    %v3329 = vadd.f32 0.0, %v3328
    %v3330 = vpop.f32.mrb[0].mxu0
    %3331 = vmatprep.mubr.f32.mxu0 0.0
    %3332 = vmatmul.mubr.f32.gmra.mrb[0].mxu0 %v3208
    %v3333 = vpop.f32.mrb[0].mxu0
    %v3334 = vadd.f32 0.0, %v3333
    %v3335 = vpop.f32.mrb[0].mxu0
    %3336 = vmatprep.mubr.f32.mxu0 0.0
    %3337 = vmatmul.mubr.f32.gmra.mrb[0].mxu0 %v3211
    %v3338 = vpop.f32.mrb[0].mxu0
    %v3339 = vadd.f32 0.0, %v3338
    %v3340 = vpop.f32.mrb[0].mxu0
    %3341 = vmatprep.mubr.f32.mxu0 0.0
    %3342 = vmatmul.mubr.f32.gmra.mrb[0].mxu0 %v3214
    %v3343 = vpop.f32.mrb[0].mxu0
    %v3344 = vadd.f32 0.0, %v3343
    %v3345 = vpop.f32.mrb[0].mxu0
    %3346 = vmatprep.mubr.f32.mxu0 0.0
    %3347 = vmatmul.mubr.f32.gmra.mrb[0].mxu0 %v3217
    %v3348 = vpop.f32.mrb[0].mxu0
    %v3349 = vadd.f32 0.0, %v3348
    %v3350 = vpop.f32.mrb[0].mxu0
    %3351 = vmatprep.mubr.f32.mxu0 0.0
    %3352 = vmatmul.mubr.f32.gmra.mrb[0].mxu0 %v3220
    %v3353 = vpop.f32.mrb[0].mxu0
    %v3354 = vadd.f32 0.0, %v3353
    %v3355 = vpop.f32.mrb[0].mxu0
    %3356 = vmatprep.mubr.f32.mxu0 0.0
    %3357 = vmatmul.mubr.f32.gmra.mrb[0].mxu0 %v3223
    %v3358 = vpop.f32.mrb[0].mxu0
    %v3359 = vadd.f32 0.0, %v3358
    %v3360 = vpop.f32.mrb[0].mxu0
    %3361 = vmatprep.mubr.f32.mxu0 0.0
    %3362 = vmatmul.mubr.f32.gmra.mrb[0].mxu0 %v3226
    %v3363 = vpop.f32.mrb[0].mxu0
    %v3364 = vadd.f32 0.0, %v3363
    %v3365 = vpop.f32.mrb[0].mxu0
    %3366 = vmatprep.mubr.f32.mxu0 0.0
    %3367 = vmatmul.mubr.f32.gmra.mrb[0].mxu0 %v3229
    %v3368 = vpop.f32.mrb[0].mxu0
    %v3369 = vadd.f32 0.0, %v3368
    %v3370 = vpop.f32.mrb[0].mxu0
    %3371 = vmatprep.mubr.f32.mxu0 0.0
    %3372 = vmatmul.mubr.f32.gmra.mrb[0].mxu0 %v3232
    %v3373 = vpop.f32.mrb[0].mxu0
    %v3374 = vadd.f32 0.0, %v3373
    %v3375 = vpop.f32.mrb[0].mxu0
    %3376 = vmatprep.mubr.f32.mxu0 0.0
    %3377 = vmatmul.mubr.f32.gmra.mrb[0].mxu0 %v3235
    %v3378 = vpop.f32.mrb[0].mxu0
    %v3379 = vadd.f32 0.0, %v3378
    %v3380 = vpop.f32.mrb[0].mxu0
    %3381 = vdwg.mxu0
    %v3382 = vadd.f32 %v3155, %v3304
    %v3383 = vadd.f32 %v3156, %v3309
    %v3384 = vadd.f32 %v3157, %v3314
    %v3385 = vadd.f32 %v3158, %v3319
    %v3386 = vadd.f32 %v3159, %v3324
    %v3387 = vadd.f32 %v3160, %v3329
    %v3388 = vadd.f32 %v3161, %v3334
    %v3389 = vadd.f32 %v3162, %v3339
    %v3390 = vadd.f32 %v3163, %v3344
    %v3391 = vadd.f32 %v3164, %v3349
    %v3392 = vadd.f32 %v3165, %v3354
    %v3393 = vadd.f32 %v3166, %v3359
    %v3394 = vadd.f32 %v3167, %v3364
    %v3395 = vadd.f32 %v3168, %v3369
    %v3396 = vadd.f32 %v3169, %v3374
    %v3397 = vadd.f32 %v3170, %v3379
    %v3398 = vld [vmem:[%s2506 + $0x1] sm:$0xff]
    %v3399 = vld [vmem:[%s2506 + $0x11] sm:$0xff]
    %v3400 = vld [vmem:[%s2506 + $0x21] sm:$0xff]
    %v3401 = vld [vmem:[%s2506 + $0x31] sm:$0xff]
    %v3402 = vld [vmem:[%s2506 + $0x41] sm:$0xff]
    %v3403 = vld [vmem:[%s2506 + $0x51] sm:$0xff]
    %v3404 = vld [vmem:[%s2506 + $0x61] sm:$0xff]
    %v3405 = vld [vmem:[%s2506 + $0x71] sm:$0xff]
    %v3406 = vld [vmem:[%s2506 + $0xa1] sm:$0xff]
    %v3407 = vld [vmem:[%s2506 + $0xb1] sm:$0xff]
    %v3408 = vld [vmem:[%s2506 + $0xc1] sm:$0xff]
    %v3409 = vld [vmem:[%s2506 + $0xd1] sm:$0xff]
    %v3410 = vld [vmem:[%s2506 + $0xe1] sm:$0xff]
    %v3411 = vld [vmem:[%s2506 + $0xf1] sm:$0xff]
    %v3412 = vld [vmem:[%s2506 + $0x101] sm:$0xff]
    %v3413 = vld [vmem:[%s2506 + $0x111] sm:$0xff]
    %s3414 = scalar_lea.vmem [#allocation9], 32
    %v3415 = vld [vmem:[%s3414] sm:$0xff]
    %v3417 = vsel %vm175, %v3398, 0
    %v3420 = vsel %vm175, %v3399, 0
    %v3423 = vsel %vm175, %v3400, 0
    %v3426 = vsel %vm175, %v3401, 0
    %v3429 = vsel %vm175, %v3402, 0
    %v3432 = vsel %vm175, %v3403, 0
    %v3435 = vsel %vm175, %v3404, 0
    %v3438 = vsel %vm175, %v3405, 0
    %v3441 = vsel %vm175, %v3406, 0
    %v3444 = vsel %vm175, %v3407, 0
    %v3447 = vsel %vm175, %v3408, 0
    %v3450 = vsel %vm175, %v3409, 0
    %v3453 = vsel %vm175, %v3410, 0
    %v3456 = vsel %vm175, %v3411, 0
    %v3459 = vsel %vm175, %v3412, 0
    %v3462 = vsel %vm175, %v3413, 0
    %3464 = vmatprep.subr.mxu0 0.0
    %3465 = vmatpush1.msra.mxu0 %v3415
    %3466 = vmatprep.subr.mxu0 0.0
    %3467 = vmatpush1.msra.mxu0 0.0
    %3468 = vmatprep.subr.mxu0 0.0
    %3469 = vmatpush1.msra.mxu0 0.0
    %3470 = vmatprep.subr.mxu0 0.0
    %3471 = vmatpush1.msra.mxu0 0.0
    %3472 = vmatprep.subr.mxu0 0.0
    %3473 = vmatpush1.msra.mxu0 0.0
    %3474 = vmatprep.subr.mxu0 0.0
    %3475 = vmatpush1.msra.mxu0 0.0
    %3476 = vmatprep.subr.mxu0 0.0
    %3477 = vmatpush1.msra.mxu0 0.0
    %3478 = vmatprep.subr.mxu0 0.0
    %3479 = vmatpush1.msra.mxu0 0.0
    %3480 = vmatprep.subr.mxu0 0.0
    %3481 = vmatpush1.msra.mxu0 0.0
    %3482 = vmatprep.subr.mxu0 0.0
    %3483 = vmatpush1.msra.mxu0 0.0
    %3484 = vmatprep.subr.mxu0 0.0
    %3485 = vmatpush1.msra.mxu0 0.0
    %3486 = vmatprep.subr.mxu0 0.0
    %3487 = vmatpush1.msra.mxu0 0.0
    %3488 = vmatprep.subr.mxu0 0.0
    %3489 = vmatpush1.msra.mxu0 0.0
    %3490 = vmatprep.subr.mxu0 0.0
    %3491 = vmatpush1.msra.mxu0 0.0
    %3492 = vmatprep.subr.mxu0 0.0
    %3493 = vmatpush1.msra.mxu0 0.0
    %3494 = vmatprep.subr.mxu0 0.0
    %3495 = vmatpush1.msra.mxu0 0.0
    %3496 = vmatprep.subr.mxu0 0.0
    %3497 = vmatpush1.msra.mxu0 0.0
    %3498 = vmatprep.subr.mxu0 0.0
    %3499 = vmatpush1.msra.mxu0 0.0
    %3500 = vmatprep.subr.mxu0 0.0
    %3501 = vmatpush1.msra.mxu0 0.0
    %3502 = vmatprep.subr.mxu0 0.0
    %3503 = vmatpush1.msra.mxu0 0.0
    %3504 = vmatprep.subr.mxu0 0.0
    %3505 = vmatpush1.msra.mxu0 0.0
    %3506 = vmatprep.subr.mxu0 0.0
    %3507 = vmatpush1.msra.mxu0 0.0
    %3508 = vmatprep.subr.mxu0 0.0
    %3509 = vmatpush1.msra.mxu0 0.0
    %3510 = vmatprep.subr.mxu0 0.0
    %3511 = vmatpush1.msra.mxu0 0.0
    %3512 = vmatprep.subr.mxu0 0.0
    %3513 = vmatpush1.msra.mxu0 0.0
    %3514 = vmatprep.subr.mxu0 0.0
    %3515 = vmatpush1.msra.mxu0 0.0
    %3516 = vmatprep.subr.mxu0 0.0
    %3517 = vmatpush1.msra.mxu0 0.0
    %3518 = vmatprep.subr.mxu0 0.0
    %3519 = vmatpush1.msra.mxu0 0.0
    %3520 = vmatprep.subr.mxu0 0.0
    %3521 = vmatpush1.msra.mxu0 0.0
    %3522 = vmatprep.subr.mxu0 0.0
    %3523 = vmatpush1.msra.mxu0 0.0
    %3524 = vmatprep.subr.mxu0 0.0
    %3525 = vmatpush1.msra.mxu0 0.0
    %3526 = vmatprep.subr.mxu0 0.0
    %3527 = vmatpush1.msra.mxu0 0.0
    %3528 = vmatprep.mubr.f32.mxu0 0.0
    %3529 = vmatmul.mubr.f32.gmra.mrb[0].mxu0 %v3417
    %v3530 = vpop.f32.mrb[0].mxu0
    %v3531 = vadd.f32 0.0, %v3530
    %v3532 = vpop.f32.mrb[0].mxu0
    %3533 = vmatprep.mubr.f32.mxu0 0.0
    %3534 = vmatmul.mubr.f32.gmra.mrb[0].mxu0 %v3420
    %v3535 = vpop.f32.mrb[0].mxu0
    %v3536 = vadd.f32 0.0, %v3535
    %v3537 = vpop.f32.mrb[0].mxu0
    %3538 = vmatprep.mubr.f32.mxu0 0.0
    %3539 = vmatmul.mubr.f32.gmra.mrb[0].mxu0 %v3423
    %v3540 = vpop.f32.mrb[0].mxu0
    %v3541 = vadd.f32 0.0, %v3540
    %v3542 = vpop.f32.mrb[0].mxu0
    %3543 = vmatprep.mubr.f32.mxu0 0.0
    %3544 = vmatmul.mubr.f32.gmra.mrb[0].mxu0 %v3426
    %v3545 = vpop.f32.mrb[0].mxu0
    %v3546 = vadd.f32 0.0, %v3545
    %v3547 = vpop.f32.mrb[0].mxu0
    %3548 = vmatprep.mubr.f32.mxu0 0.0
    %3549 = vmatmul.mubr.f32.gmra.mrb[0].mxu0 %v3429
    %v3550 = vpop.f32.mrb[0].mxu0
    %v3551 = vadd.f32 0.0, %v3550
    %v3552 = vpop.f32.mrb[0].mxu0
    %3553 = vmatprep.mubr.f32.mxu0 0.0
    %3554 = vmatmul.mubr.f32.gmra.mrb[0].mxu0 %v3432
    %v3555 = vpop.f32.mrb[0].mxu0
    %v3556 = vadd.f32 0.0, %v3555
    %v3557 = vpop.f32.mrb[0].mxu0
    %3558 = vmatprep.mubr.f32.mxu0 0.0
    %3559 = vmatmul.mubr.f32.gmra.mrb[0].mxu0 %v3435
    %v3560 = vpop.f32.mrb[0].mxu0
    %v3561 = vadd.f32 0.0, %v3560
    %v3562 = vpop.f32.mrb[0].mxu0
    %3563 = vmatprep.mubr.f32.mxu0 0.0
    %3564 = vmatmul.mubr.f32.gmra.mrb[0].mxu0 %v3438
    %v3565 = vpop.f32.mrb[0].mxu0
    %v3566 = vadd.f32 0.0, %v3565
    %v3567 = vpop.f32.mrb[0].mxu0
    %3568 = vmatprep.mubr.f32.mxu0 0.0
    %3569 = vmatmul.mubr.f32.gmra.mrb[0].mxu0 %v3441
    %v3570 = vpop.f32.mrb[0].mxu0
    %v3571 = vadd.f32 0.0, %v3570
    %v3572 = vpop.f32.mrb[0].mxu0
    %3573 = vmatprep.mubr.f32.mxu0 0.0
    %3574 = vmatmul.mubr.f32.gmra.mrb[0].mxu0 %v3444
    %v3575 = vpop.f32.mrb[0].mxu0
    %v3576 = vadd.f32 0.0, %v3575
    %v3577 = vpop.f32.mrb[0].mxu0
    %3578 = vmatprep.mubr.f32.mxu0 0.0
    %3579 = vmatmul.mubr.f32.gmra.mrb[0].mxu0 %v3447
    %v3580 = vpop.f32.mrb[0].mxu0
    %v3581 = vadd.f32 0.0, %v3580
    %v3582 = vpop.f32.mrb[0].mxu0
    %3583 = vmatprep.mubr.f32.mxu0 0.0
    %3584 = vmatmul.mubr.f32.gmra.mrb[0].mxu0 %v3450
    %v3585 = vpop.f32.mrb[0].mxu0
    %v3586 = vadd.f32 0.0, %v3585
    %v3587 = vpop.f32.mrb[0].mxu0
    %3588 = vmatprep.mubr.f32.mxu0 0.0
    %3589 = vmatmul.mubr.f32.gmra.mrb[0].mxu0 %v3453
    %v3590 = vpop.f32.mrb[0].mxu0
    %v3591 = vadd.f32 0.0, %v3590
    %v3592 = vpop.f32.mrb[0].mxu0
    %3593 = vmatprep.mubr.f32.mxu0 0.0
    %3594 = vmatmul.mubr.f32.gmra.mrb[0].mxu0 %v3456
    %v3595 = vpop.f32.mrb[0].mxu0
    %v3596 = vadd.f32 0.0, %v3595
    %v3597 = vpop.f32.mrb[0].mxu0
    %3598 = vmatprep.mubr.f32.mxu0 0.0
    %3599 = vmatmul.mubr.f32.gmra.mrb[0].mxu0 %v3459
    %v3600 = vpop.f32.mrb[0].mxu0
    %v3601 = vadd.f32 0.0, %v3600
    %v3602 = vpop.f32.mrb[0].mxu0
    %3603 = vmatprep.mubr.f32.mxu0 0.0
    %3604 = vmatmul.mubr.f32.gmra.mrb[0].mxu0 %v3462
    %v3605 = vpop.f32.mrb[0].mxu0
    %v3606 = vadd.f32 0.0, %v3605
    %v3607 = vpop.f32.mrb[0].mxu0
    %3608 = vdwg.mxu0
    %v3609 = vadd.f32 %v3382, %v3531
    %v3610 = vadd.f32 %v3383, %v3536
    %v3611 = vadd.f32 %v3384, %v3541
    %v3612 = vadd.f32 %v3385, %v3546
    %v3613 = vadd.f32 %v3386, %v3551
    %v3614 = vadd.f32 %v3387, %v3556
    %v3615 = vadd.f32 %v3388, %v3561
    %v3616 = vadd.f32 %v3389, %v3566
    %v3617 = vadd.f32 %v3390, %v3571
    %v3618 = vadd.f32 %v3391, %v3576
    %v3619 = vadd.f32 %v3392, %v3581
    %v3620 = vadd.f32 %v3393, %v3586
    %v3621 = vadd.f32 %v3394, %v3591
    %v3622 = vadd.f32 %v3395, %v3596
    %v3623 = vadd.f32 %v3396, %v3601
    %v3624 = vadd.f32 %v3397, %v3606
    %v3625 = vld [vmem:[%s2506 + $0x2] sm:$0xff]
    %v3626 = vld [vmem:[%s2506 + $0x12] sm:$0xff]
    %v3627 = vld [vmem:[%s2506 + $0x22] sm:$0xff]
    %v3628 = vld [vmem:[%s2506 + $0x32] sm:$0xff]
    %v3629 = vld [vmem:[%s2506 + $0x42] sm:$0xff]
    %v3630 = vld [vmem:[%s2506 + $0x52] sm:$0xff]
    %v3631 = vld [vmem:[%s2506 + $0x62] sm:$0xff]
    %v3632 = vld [vmem:[%s2506 + $0x72] sm:$0xff]
    %v3633 = vld [vmem:[%s2506 + $0xa2] sm:$0xff]
    %v3634 = vld [vmem:[%s2506 + $0xb2] sm:$0xff]
    %v3635 = vld [vmem:[%s2506 + $0xc2] sm:$0xff]
    %v3636 = vld [vmem:[%s2506 + $0xd2] sm:$0xff]
    %v3637 = vld [vmem:[%s2506 + $0xe2] sm:$0xff]
    %v3638 = vld [vmem:[%s2506 + $0xf2] sm:$0xff]
    %v3639 = vld [vmem:[%s2506 + $0x102] sm:$0xff]
    %v3640 = vld [vmem:[%s2506 + $0x112] sm:$0xff]
    %s3641 = scalar_lea.vmem [#allocation9], 40
    %v3642 = vld [vmem:[%s3641] sm:$0xff]
    %v3644 = vsel %vm175, %v3625, 0
    %v3647 = vsel %vm175, %v3626, 0
    %v3650 = vsel %vm175, %v3627, 0
    %v3653 = vsel %vm175, %v3628, 0
    %v3656 = vsel %vm175, %v3629, 0
    %v3659 = vsel %vm175, %v3630, 0
    %v3662 = vsel %vm175, %v3631, 0
    %v3665 = vsel %vm175, %v3632, 0
    %v3668 = vsel %vm175, %v3633, 0
    %v3671 = vsel %vm175, %v3634, 0
    %v3674 = vsel %vm175, %v3635, 0
    %v3677 = vsel %vm175, %v3636, 0
    %v3680 = vsel %vm175, %v3637, 0
    %v3683 = vsel %vm175, %v3638, 0
    %v3686 = vsel %vm175, %v3639, 0
    %v3689 = vsel %vm175, %v3640, 0
    %3691 = vmatprep.subr.mxu0 0.0
    %3692 = vmatpush1.msra.mxu0 %v3642
    %3693 = vmatprep.subr.mxu0 0.0
    %3694 = vmatpush1.msra.mxu0 0.0
    %3695 = vmatprep.subr.mxu0 0.0
    %3696 = vmatpush1.msra.mxu0 0.0
    %3697 = vmatprep.subr.mxu0 0.0
    %3698 = vmatpush1.msra.mxu0 0.0
    %3699 = vmatprep.subr.mxu0 0.0
    %3700 = vmatpush1.msra.mxu0 0.0
    %3701 = vmatprep.subr.mxu0 0.0
    %3702 = vmatpush1.msra.mxu0 0.0
    %3703 = vmatprep.subr.mxu0 0.0
    %3704 = vmatpush1.msra.mxu0 0.0
    %3705 = vmatprep.subr.mxu0 0.0
    %3706 = vmatpush1.msra.mxu0 0.0
    %3707 = vmatprep.subr.mxu0 0.0
    %3708 = vmatpush1.msra.mxu0 0.0
    %3709 = vmatprep.subr.mxu0 0.0
    %3710 = vmatpush1.msra.mxu0 0.0
    %3711 = vmatprep.subr.mxu0 0.0
    %3712 = vmatpush1.msra.mxu0 0.0
    %3713 = vmatprep.subr.mxu0 0.0
    %3714 = vmatpush1.msra.mxu0 0.0
    %3715 = vmatprep.subr.mxu0 0.0
    %3716 = vmatpush1.msra.mxu0 0.0
    %3717 = vmatprep.subr.mxu0 0.0
    %3718 = vmatpush1.msra.mxu0 0.0
    %3719 = vmatprep.subr.mxu0 0.0
    %3720 = vmatpush1.msra.mxu0 0.0
    %3721 = vmatprep.subr.mxu0 0.0
    %3722 = vmatpush1.msra.mxu0 0.0
    %3723 = vmatprep.subr.mxu0 0.0
    %3724 = vmatpush1.msra.mxu0 0.0
    %3725 = vmatprep.subr.mxu0 0.0
    %3726 = vmatpush1.msra.mxu0 0.0
    %3727 = vmatprep.subr.mxu0 0.0
    %3728 = vmatpush1.msra.mxu0 0.0
    %3729 = vmatprep.subr.mxu0 0.0
    %3730 = vmatpush1.msra.mxu0 0.0
    %3731 = vmatprep.subr.mxu0 0.0
    %3732 = vmatpush1.msra.mxu0 0.0
    %3733 = vmatprep.subr.mxu0 0.0
    %3734 = vmatpush1.msra.mxu0 0.0
    %3735 = vmatprep.subr.mxu0 0.0
    %3736 = vmatpush1.msra.mxu0 0.0
    %3737 = vmatprep.subr.mxu0 0.0
    %3738 = vmatpush1.msra.mxu0 0.0
    %3739 = vmatprep.subr.mxu0 0.0
    %3740 = vmatpush1.msra.mxu0 0.0
    %3741 = vmatprep.subr.mxu0 0.0
    %3742 = vmatpush1.msra.mxu0 0.0
    %3743 = vmatprep.subr.mxu0 0.0
    %3744 = vmatpush1.msra.mxu0 0.0
    %3745 = vmatprep.subr.mxu0 0.0
    %3746 = vmatpush1.msra.mxu0 0.0
    %3747 = vmatprep.subr.mxu0 0.0
    %3748 = vmatpush1.msra.mxu0 0.0
    %3749 = vmatprep.subr.mxu0 0.0
    %3750 = vmatpush1.msra.mxu0 0.0
    %3751 = vmatprep.subr.mxu0 0.0
    %3752 = vmatpush1.msra.mxu0 0.0
    %3753 = vmatprep.subr.mxu0 0.0
    %3754 = vmatpush1.msra.mxu0 0.0
    %3755 = vmatprep.mubr.f32.mxu0 0.0
    %3756 = vmatmul.mubr.f32.gmra.mrb[0].mxu0 %v3644
    %v3757 = vpop.f32.mrb[0].mxu0
    %v3758 = vadd.f32 0.0, %v3757
    %v3759 = vpop.f32.mrb[0].mxu0
    %3760 = vmatprep.mubr.f32.mxu0 0.0
    %3761 = vmatmul.mubr.f32.gmra.mrb[0].mxu0 %v3647
    %v3762 = vpop.f32.mrb[0].mxu0
    %v3763 = vadd.f32 0.0, %v3762
    %v3764 = vpop.f32.mrb[0].mxu0
    %3765 = vmatprep.mubr.f32.mxu0 0.0
    %3766 = vmatmul.mubr.f32.gmra.mrb[0].mxu0 %v3650
    %v3767 = vpop.f32.mrb[0].mxu0
    %v3768 = vadd.f32 0.0, %v3767
    %v3769 = vpop.f32.mrb[0].mxu0
    %3770 = vmatprep.mubr.f32.mxu0 0.0
    %3771 = vmatmul.mubr.f32.gmra.mrb[0].mxu0 %v3653
    %v3772 = vpop.f32.mrb[0].mxu0
    %v3773 = vadd.f32 0.0, %v3772
    %v3774 = vpop.f32.mrb[0].mxu0
    %3775 = vmatprep.mubr.f32.mxu0 0.0
    %3776 = vmatmul.mubr.f32.gmra.mrb[0].mxu0 %v3656
    %v3777 = vpop.f32.mrb[0].mxu0
    %v3778 = vadd.f32 0.0, %v3777
    %v3779 = vpop.f32.mrb[0].mxu0
    %3780 = vmatprep.mubr.f32.mxu0 0.0
    %3781 = vmatmul.mubr.f32.gmra.mrb[0].mxu0 %v3659
    %v3782 = vpop.f32.mrb[0].mxu0
    %v3783 = vadd.f32 0.0, %v3782
    %v3784 = vpop.f32.mrb[0].mxu0
    %3785 = vmatprep.mubr.f32.mxu0 0.0
    %3786 = vmatmul.mubr.f32.gmra.mrb[0].mxu0 %v3662
    %v3787 = vpop.f32.mrb[0].mxu0
    %v3788 = vadd.f32 0.0, %v3787
    %v3789 = vpop.f32.mrb[0].mxu0
    %3790 = vmatprep.mubr.f32.mxu0 0.0
    %3791 = vmatmul.mubr.f32.gmra.mrb[0].mxu0 %v3665
    %v3792 = vpop.f32.mrb[0].mxu0
    %v3793 = vadd.f32 0.0, %v3792
    %v3794 = vpop.f32.mrb[0].mxu0
    %3795 = vmatprep.mubr.f32.mxu0 0.0
    %3796 = vmatmul.mubr.f32.gmra.mrb[0].mxu0 %v3668
    %v3797 = vpop.f32.mrb[0].mxu0
    %v3798 = vadd.f32 0.0, %v3797
    %v3799 = vpop.f32.mrb[0].mxu0
    %3800 = vmatprep.mubr.f32.mxu0 0.0
    %3801 = vmatmul.mubr.f32.gmra.mrb[0].mxu0 %v3671
    %v3802 = vpop.f32.mrb[0].mxu0
    %v3803 = vadd.f32 0.0, %v3802
    %v3804 = vpop.f32.mrb[0].mxu0
    %3805 = vmatprep.mubr.f32.mxu0 0.0
    %3806 = vmatmul.mubr.f32.gmra.mrb[0].mxu0 %v3674
    %v3807 = vpop.f32.mrb[0].mxu0
    %v3808 = vadd.f32 0.0, %v3807
    %v3809 = vpop.f32.mrb[0].mxu0
    %3810 = vmatprep.mubr.f32.mxu0 0.0
    %3811 = vmatmul.mubr.f32.gmra.mrb[0].mxu0 %v3677
    %v3812 = vpop.f32.mrb[0].mxu0
    %v3813 = vadd.f32 0.0, %v3812
    %v3814 = vpop.f32.mrb[0].mxu0
    %3815 = vmatprep.mubr.f32.mxu0 0.0
    %3816 = vmatmul.mubr.f32.gmra.mrb[0].mxu0 %v3680
    %v3817 = vpop.f32.mrb[0].mxu0
    %v3818 = vadd.f32 0.0, %v3817
    %v3819 = vpop.f32.mrb[0].mxu0
    %3820 = vmatprep.mubr.f32.mxu0 0.0
    %3821 = vmatmul.mubr.f32.gmra.mrb[0].mxu0 %v3683
    %v3822 = vpop.f32.mrb[0].mxu0
    %v3823 = vadd.f32 0.0, %v3822
    %v3824 = vpop.f32.mrb[0].mxu0
    %3825 = vmatprep.mubr.f32.mxu0 0.0
    %3826 = vmatmul.mubr.f32.gmra.mrb[0].mxu0 %v3686
    %v3827 = vpop.f32.mrb[0].mxu0
    %v3828 = vadd.f32 0.0, %v3827
    %v3829 = vpop.f32.mrb[0].mxu0
    %3830 = vmatprep.mubr.f32.mxu0 0.0
    %3831 = vmatmul.mubr.f32.gmra.mrb[0].mxu0 %v3689
    %v3832 = vpop.f32.mrb[0].mxu0
    %v3833 = vadd.f32 0.0, %v3832
    %v3834 = vpop.f32.mrb[0].mxu0
    %3835 = vdwg.mxu0
    %v3836 = vadd.f32 %v3609, %v3758
    %v3837 = vadd.f32 %v3610, %v3763
    %v3838 = vadd.f32 %v3611, %v3768
    %v3839 = vadd.f32 %v3612, %v3773
    %v3840 = vadd.f32 %v3613, %v3778
    %v3841 = vadd.f32 %v3614, %v3783
    %v3842 = vadd.f32 %v3615, %v3788
    %v3843 = vadd.f32 %v3616, %v3793
    %v3844 = vadd.f32 %v3617, %v3798
    %v3845 = vadd.f32 %v3618, %v3803
    %v3846 = vadd.f32 %v3619, %v3808
    %v3847 = vadd.f32 %v3620, %v3813
    %v3848 = vadd.f32 %v3621, %v3818
    %v3849 = vadd.f32 %v3622, %v3823
    %v3850 = vadd.f32 %v3623, %v3828
    %v3851 = vadd.f32 %v3624, %v3833
    %s3852 = scalar_lea.vmem [#allocation3], 32
    %v3853 = vld [vmem:[%s3852] sm:$0xff]
    %v3854 = vld [vmem:[%s3852 + $0x10] sm:$0xff]
    %v3855 = vld [vmem:[%s3852 + $0x20] sm:$0xff]
    %v3856 = vld [vmem:[%s3852 + $0x30] sm:$0xff]
    %v3857 = vld [vmem:[%s3852 + $0x40] sm:$0xff]
    %v3858 = vld [vmem:[%s3852 + $0x50] sm:$0xff]
    %v3859 = vld [vmem:[%s3852 + $0x60] sm:$0xff]
    %v3860 = vld [vmem:[%s3852 + $0x70] sm:$0xff]
    %v3861 = vld [vmem:[%s3852 + $0xa0] sm:$0xff]
    %v3862 = vld [vmem:[%s3852 + $0xb0] sm:$0xff]
    %v3863 = vld [vmem:[%s3852 + $0xc0] sm:$0xff]
    %v3864 = vld [vmem:[%s3852 + $0xd0] sm:$0xff]
    %v3865 = vld [vmem:[%s3852 + $0xe0] sm:$0xff]
    %v3866 = vld [vmem:[%s3852 + $0xf0] sm:$0xff]
    %v3867 = vld [vmem:[%s3852 + $0x100] sm:$0xff]
    %v3868 = vld [vmem:[%s3852 + $0x110] sm:$0xff]
    %s3869 = scalar_lea.vmem [#allocation9], 48
    %v3870 = vld [vmem:[%s3869] sm:$0xff]
    %v3872 = vsel %vm175, %v3853, 0
    %v3875 = vsel %vm175, %v3854, 0
    %v3878 = vsel %vm175, %v3855, 0
    %v3881 = vsel %vm175, %v3856, 0
    %v3884 = vsel %vm175, %v3857, 0
    %v3887 = vsel %vm175, %v3858, 0
    %v3890 = vsel %vm175, %v3859, 0
    %v3893 = vsel %vm175, %v3860, 0
    %v3896 = vsel %vm175, %v3861, 0
    %v3899 = vsel %vm175, %v3862, 0
    %v3902 = vsel %vm175, %v3863, 0
    %v3905 = vsel %vm175, %v3864, 0
    %v3908 = vsel %vm175, %v3865, 0
    %v3911 = vsel %vm175, %v3866, 0
    %v3914 = vsel %vm175, %v3867, 0
    %v3917 = vsel %vm175, %v3868, 0
    %3919 = vmatprep.subr.mxu0 0.0
    %3920 = vmatpush1.msra.mxu0 %v3870
    %3921 = vmatprep.subr.mxu0 0.0
    %3922 = vmatpush1.msra.mxu0 0.0
    %3923 = vmatprep.subr.mxu0 0.0
    %3924 = vmatpush1.msra.mxu0 0.0
    %3925 = vmatprep.subr.mxu0 0.0
    %3926 = vmatpush1.msra.mxu0 0.0
    %3927 = vmatprep.subr.mxu0 0.0
    %3928 = vmatpush1.msra.mxu0 0.0
    %3929 = vmatprep.subr.mxu0 0.0
    %3930 = vmatpush1.msra.mxu0 0.0
    %3931 = vmatprep.subr.mxu0 0.0
    %3932 = vmatpush1.msra.mxu0 0.0
    %3933 = vmatprep.subr.mxu0 0.0
    %3934 = vmatpush1.msra.mxu0 0.0
    %3935 = vmatprep.subr.mxu0 0.0
    %3936 = vmatpush1.msra.mxu0 0.0
    %3937 = vmatprep.subr.mxu0 0.0
    %3938 = vmatpush1.msra.mxu0 0.0
    %3939 = vmatprep.subr.mxu0 0.0
    %3940 = vmatpush1.msra.mxu0 0.0
    %3941 = vmatprep.subr.mxu0 0.0
    %3942 = vmatpush1.msra.mxu0 0.0
    %3943 = vmatprep.subr.mxu0 0.0
    %3944 = vmatpush1.msra.mxu0 0.0
    %3945 = vmatprep.subr.mxu0 0.0
    %3946 = vmatpush1.msra.mxu0 0.0
    %3947 = vmatprep.subr.mxu0 0.0
    %3948 = vmatpush1.msra.mxu0 0.0
    %3949 = vmatprep.subr.mxu0 0.0
    %3950 = vmatpush1.msra.mxu0 0.0
    %3951 = vmatprep.subr.mxu0 0.0
    %3952 = vmatpush1.msra.mxu0 0.0
    %3953 = vmatprep.subr.mxu0 0.0
    %3954 = vmatpush1.msra.mxu0 0.0
    %3955 = vmatprep.subr.mxu0 0.0
    %3956 = vmatpush1.msra.mxu0 0.0
    %3957 = vmatprep.subr.mxu0 0.0
    %3958 = vmatpush1.msra.mxu0 0.0
    %3959 = vmatprep.subr.mxu0 0.0
    %3960 = vmatpush1.msra.mxu0 0.0
    %3961 = vmatprep.subr.mxu0 0.0
    %3962 = vmatpush1.msra.mxu0 0.0
    %3963 = vmatprep.subr.mxu0 0.0
    %3964 = vmatpush1.msra.mxu0 0.0
    %3965 = vmatprep.subr.mxu0 0.0
    %3966 = vmatpush1.msra.mxu0 0.0
    %3967 = vmatprep.subr.mxu0 0.0
    %3968 = vmatpush1.msra.mxu0 0.0
    %3969 = vmatprep.subr.mxu0 0.0
    %3970 = vmatpush1.msra.mxu0 0.0
    %3971 = vmatprep.subr.mxu0 0.0
    %3972 = vmatpush1.msra.mxu0 0.0
    %3973 = vmatprep.subr.mxu0 0.0
    %3974 = vmatpush1.msra.mxu0 0.0
    %3975 = vmatprep.subr.mxu0 0.0
    %3976 = vmatpush1.msra.mxu0 0.0
    %3977 = vmatprep.subr.mxu0 0.0
    %3978 = vmatpush1.msra.mxu0 0.0
    %3979 = vmatprep.subr.mxu0 0.0
    %3980 = vmatpush1.msra.mxu0 0.0
    %3981 = vmatprep.subr.mxu0 0.0
    %3982 = vmatpush1.msra.mxu0 0.0
    %3983 = vmatprep.mubr.f32.mxu0 0.0
    %3984 = vmatmul.mubr.f32.gmra.mrb[0].mxu0 %v3872
    %v3985 = vpop.f32.mrb[0].mxu0
    %v3986 = vadd.f32 0.0, %v3985
    %v3987 = vpop.f32.mrb[0].mxu0
    %3988 = vmatprep.mubr.f32.mxu0 0.0
    %3989 = vmatmul.mubr.f32.gmra.mrb[0].mxu0 %v3875
    %v3990 = vpop.f32.mrb[0].mxu0
    %v3991 = vadd.f32 0.0, %v3990
    %v3992 = vpop.f32.mrb[0].mxu0
    %3993 = vmatprep.mubr.f32.mxu0 0.0
    %3994 = vmatmul.mubr.f32.gmra.mrb[0].mxu0 %v3878
    %v3995 = vpop.f32.mrb[0].mxu0
    %v3996 = vadd.f32 0.0, %v3995
    %v3997 = vpop.f32.mrb[0].mxu0
    %3998 = vmatprep.mubr.f32.mxu0 0.0
    %3999 = vmatmul.mubr.f32.gmra.mrb[0].mxu0 %v3881
    %v4000 = vpop.f32.mrb[0].mxu0
    %v4001 = vadd.f32 0.0, %v4000
    %v4002 = vpop.f32.mrb[0].mxu0
    %4003 = vmatprep.mubr.f32.mxu0 0.0
    %4004 = vmatmul.mubr.f32.gmra.mrb[0].mxu0 %v3884
    %v4005 = vpop.f32.mrb[0].mxu0
    %v4006 = vadd.f32 0.0, %v4005
    %v4007 = vpop.f32.mrb[0].mxu0
    %4008 = vmatprep.mubr.f32.mxu0 0.0
    %4009 = vmatmul.mubr.f32.gmra.mrb[0].mxu0 %v3887
    %v4010 = vpop.f32.mrb[0].mxu0
    %v4011 = vadd.f32 0.0, %v4010
    %v4012 = vpop.f32.mrb[0].mxu0
    %4013 = vmatprep.mubr.f32.mxu0 0.0
    %4014 = vmatmul.mubr.f32.gmra.mrb[0].mxu0 %v3890
    %v4015 = vpop.f32.mrb[0].mxu0
    %v4016 = vadd.f32 0.0, %v4015
    %v4017 = vpop.f32.mrb[0].mxu0
    %4018 = vmatprep.mubr.f32.mxu0 0.0
    %4019 = vmatmul.mubr.f32.gmra.mrb[0].mxu0 %v3893
    %v4020 = vpop.f32.mrb[0].mxu0
    %v4021 = vadd.f32 0.0, %v4020
    %v4022 = vpop.f32.mrb[0].mxu0
    %4023 = vmatprep.mubr.f32.mxu0 0.0
    %4024 = vmatmul.mubr.f32.gmra.mrb[0].mxu0 %v3896
    %v4025 = vpop.f32.mrb[0].mxu0
    %v4026 = vadd.f32 0.0, %v4025
    %v4027 = vpop.f32.mrb[0].mxu0
    %4028 = vmatprep.mubr.f32.mxu0 0.0
    %4029 = vmatmul.mubr.f32.gmra.mrb[0].mxu0 %v3899
    %v4030 = vpop.f32.mrb[0].mxu0
    %v4031 = vadd.f32 0.0, %v4030
    %v4032 = vpop.f32.mrb[0].mxu0
    %4033 = vmatprep.mubr.f32.mxu0 0.0
    %4034 = vmatmul.mubr.f32.gmra.mrb[0].mxu0 %v3902
    %v4035 = vpop.f32.mrb[0].mxu0
    %v4036 = vadd.f32 0.0, %v4035
    %v4037 = vpop.f32.mrb[0].mxu0
    %4038 = vmatprep.mubr.f32.mxu0 0.0
    %4039 = vmatmul.mubr.f32.gmra.mrb[0].mxu0 %v3905
    %v4040 = vpop.f32.mrb[0].mxu0
    %v4041 = vadd.f32 0.0, %v4040
    %v4042 = vpop.f32.mrb[0].mxu0
    %4043 = vmatprep.mubr.f32.mxu0 0.0
    %4044 = vmatmul.mubr.f32.gmra.mrb[0].mxu0 %v3908
    %v4045 = vpop.f32.mrb[0].mxu0
    %v4046 = vadd.f32 0.0, %v4045
    %v4047 = vpop.f32.mrb[0].mxu0
    %4048 = vmatprep.mubr.f32.mxu0 0.0
    %4049 = vmatmul.mubr.f32.gmra.mrb[0].mxu0 %v3911
    %v4050 = vpop.f32.mrb[0].mxu0
    %v4051 = vadd.f32 0.0, %v4050
    %v4052 = vpop.f32.mrb[0].mxu0
    %4053 = vmatprep.mubr.f32.mxu0 0.0
    %4054 = vmatmul.mubr.f32.gmra.mrb[0].mxu0 %v3914
    %v4055 = vpop.f32.mrb[0].mxu0
    %v4056 = vadd.f32 0.0, %v4055
    %v4057 = vpop.f32.mrb[0].mxu0
    %4058 = vmatprep.mubr.f32.mxu0 0.0
    %4059 = vmatmul.mubr.f32.gmra.mrb[0].mxu0 %v3917
    %v4060 = vpop.f32.mrb[0].mxu0
    %v4061 = vadd.f32 0.0, %v4060
    %v4062 = vpop.f32.mrb[0].mxu0
    %4063 = vdwg.mxu0
    %v4064 = vadd.f32 %v3836, %v3986
    %v4065 = vadd.f32 %v3837, %v3991
    %v4066 = vadd.f32 %v3838, %v3996
    %v4067 = vadd.f32 %v3839, %v4001
    %v4068 = vadd.f32 %v3840, %v4006
    %v4069 = vadd.f32 %v3841, %v4011
    %v4070 = vadd.f32 %v3842, %v4016
    %v4071 = vadd.f32 %v3843, %v4021
    %v4072 = vadd.f32 %v3844, %v4026
    %v4073 = vadd.f32 %v3845, %v4031
    %v4074 = vadd.f32 %v3846, %v4036
    %v4075 = vadd.f32 %v3847, %v4041
    %v4076 = vadd.f32 %v3848, %v4046
    %v4077 = vadd.f32 %v3849, %v4051
    %v4078 = vadd.f32 %v3850, %v4056
    %v4079 = vadd.f32 %v3851, %v4061
    %v4080 = vld [vmem:[%s3852 + $0x1] sm:$0xff]
    %v4081 = vld [vmem:[%s3852 + $0x11] sm:$0xff]
    %v4082 = vld [vmem:[%s3852 + $0x21] sm:$0xff]
    %v4083 = vld [vmem:[%s3852 + $0x31] sm:$0xff]
    %v4084 = vld [vmem:[%s3852 + $0x41] sm:$0xff]
    %v4085 = vld [vmem:[%s3852 + $0x51] sm:$0xff]
    %v4086 = vld [vmem:[%s3852 + $0x61] sm:$0xff]
    %v4087 = vld [vmem:[%s3852 + $0x71] sm:$0xff]
    %v4088 = vld [vmem:[%s3852 + $0xa1] sm:$0xff]
    %v4089 = vld [vmem:[%s3852 + $0xb1] sm:$0xff]
    %v4090 = vld [vmem:[%s3852 + $0xc1] sm:$0xff]
    %v4091 = vld [vmem:[%s3852 + $0xd1] sm:$0xff]
    %v4092 = vld [vmem:[%s3852 + $0xe1] sm:$0xff]
    %v4093 = vld [vmem:[%s3852 + $0xf1] sm:$0xff]
    %v4094 = vld [vmem:[%s3852 + $0x101] sm:$0xff]
    %v4095 = vld [vmem:[%s3852 + $0x111] sm:$0xff]
    %s4096 = scalar_lea.vmem [#allocation9], 56
    %v4097 = vld [vmem:[%s4096] sm:$0xff]
    %v4099 = vsel %vm175, %v4080, 0
    %v4102 = vsel %vm175, %v4081, 0
    %v4105 = vsel %vm175, %v4082, 0
    %v4108 = vsel %vm175, %v4083, 0
    %v4111 = vsel %vm175, %v4084, 0
    %v4114 = vsel %vm175, %v4085, 0
    %v4117 = vsel %vm175, %v4086, 0
    %v4120 = vsel %vm175, %v4087, 0
    %v4123 = vsel %vm175, %v4088, 0
    %v4126 = vsel %vm175, %v4089, 0
    %v4129 = vsel %vm175, %v4090, 0
    %v4132 = vsel %vm175, %v4091, 0
    %v4135 = vsel %vm175, %v4092, 0
    %v4138 = vsel %vm175, %v4093, 0
    %v4141 = vsel %vm175, %v4094, 0
    %v4144 = vsel %vm175, %v4095, 0
    %4146 = vmatprep.subr.mxu0 0.0
    %4147 = vmatpush1.msra.mxu0 %v4097
    %4148 = vmatprep.subr.mxu0 0.0
    %4149 = vmatpush1.msra.mxu0 0.0
    %4150 = vmatprep.subr.mxu0 0.0
    %4151 = vmatpush1.msra.mxu0 0.0
    %4152 = vmatprep.subr.mxu0 0.0
    %4153 = vmatpush1.msra.mxu0 0.0
    %4154 = vmatprep.subr.mxu0 0.0
    %4155 = vmatpush1.msra.mxu0 0.0
    %4156 = vmatprep.subr.mxu0 0.0
    %4157 = vmatpush1.msra.mxu0 0.0
    %4158 = vmatprep.subr.mxu0 0.0
    %4159 = vmatpush1.msra.mxu0 0.0
    %4160 = vmatprep.subr.mxu0 0.0
    %4161 = vmatpush1.msra.mxu0 0.0
    %4162 = vmatprep.subr.mxu0 0.0
    %4163 = vmatpush1.msra.mxu0 0.0
    %4164 = vmatprep.subr.mxu0 0.0
    %4165 = vmatpush1.msra.mxu0 0.0
    %4166 = vmatprep.subr.mxu0 0.0
    %4167 = vmatpush1.msra.mxu0 0.0
    %4168 = vmatprep.subr.mxu0 0.0
    %4169 = vmatpush1.msra.mxu0 0.0
    %4170 = vmatprep.subr.mxu0 0.0
    %4171 = vmatpush1.msra.mxu0 0.0
    %4172 = vmatprep.subr.mxu0 0.0
    %4173 = vmatpush1.msra.mxu0 0.0
    %4174 = vmatprep.subr.mxu0 0.0
    %4175 = vmatpush1.msra.mxu0 0.0
    %4176 = vmatprep.subr.mxu0 0.0
    %4177 = vmatpush1.msra.mxu0 0.0
    %4178 = vmatprep.subr.mxu0 0.0
    %4179 = vmatpush1.msra.mxu0 0.0
    %4180 = vmatprep.subr.mxu0 0.0
    %4181 = vmatpush1.msra.mxu0 0.0
    %4182 = vmatprep.subr.mxu0 0.0
    %4183 = vmatpush1.msra.mxu0 0.0
    %4184 = vmatprep.subr.mxu0 0.0
    %4185 = vmatpush1.msra.mxu0 0.0
    %4186 = vmatprep.subr.mxu0 0.0
    %4187 = vmatpush1.msra.mxu0 0.0
    %4188 = vmatprep.subr.mxu0 0.0
    %4189 = vmatpush1.msra.mxu0 0.0
    %4190 = vmatprep.subr.mxu0 0.0
    %4191 = vmatpush1.msra.mxu0 0.0
    %4192 = vmatprep.subr.mxu0 0.0
    %4193 = vmatpush1.msra.mxu0 0.0
    %4194 = vmatprep.subr.mxu0 0.0
    %4195 = vmatpush1.msra.mxu0 0.0
    %4196 = vmatprep.subr.mxu0 0.0
    %4197 = vmatpush1.msra.mxu0 0.0
    %4198 = vmatprep.subr.mxu0 0.0
    %4199 = vmatpush1.msra.mxu0 0.0
    %4200 = vmatprep.subr.mxu0 0.0
    %4201 = vmatpush1.msra.mxu0 0.0
    %4202 = vmatprep.subr.mxu0 0.0
    %4203 = vmatpush1.msra.mxu0 0.0
    %4204 = vmatprep.subr.mxu0 0.0
    %4205 = vmatpush1.msra.mxu0 0.0
    %4206 = vmatprep.subr.mxu0 0.0
    %4207 = vmatpush1.msra.mxu0 0.0
    %4208 = vmatprep.subr.mxu0 0.0
    %4209 = vmatpush1.msra.mxu0 0.0
    %4210 = vmatprep.mubr.f32.mxu0 0.0
    %4211 = vmatmul.mubr.f32.gmra.mrb[0].mxu0 %v4099
    %v4212 = vpop.f32.mrb[0].mxu0
    %v4213 = vadd.f32 0.0, %v4212
    %v4214 = vpop.f32.mrb[0].mxu0
    %4215 = vmatprep.mubr.f32.mxu0 0.0
    %4216 = vmatmul.mubr.f32.gmra.mrb[0].mxu0 %v4102
    %v4217 = vpop.f32.mrb[0].mxu0
    %v4218 = vadd.f32 0.0, %v4217
    %v4219 = vpop.f32.mrb[0].mxu0
    %4220 = vmatprep.mubr.f32.mxu0 0.0
    %4221 = vmatmul.mubr.f32.gmra.mrb[0].mxu0 %v4105
    %v4222 = vpop.f32.mrb[0].mxu0
    %v4223 = vadd.f32 0.0, %v4222
    %v4224 = vpop.f32.mrb[0].mxu0
    %4225 = vmatprep.mubr.f32.mxu0 0.0
    %4226 = vmatmul.mubr.f32.gmra.mrb[0].mxu0 %v4108
    %v4227 = vpop.f32.mrb[0].mxu0
    %v4228 = vadd.f32 0.0, %v4227
    %v4229 = vpop.f32.mrb[0].mxu0
    %4230 = vmatprep.mubr.f32.mxu0 0.0
    %4231 = vmatmul.mubr.f32.gmra.mrb[0].mxu0 %v4111
    %v4232 = vpop.f32.mrb[0].mxu0
    %v4233 = vadd.f32 0.0, %v4232
    %v4234 = vpop.f32.mrb[0].mxu0
    %4235 = vmatprep.mubr.f32.mxu0 0.0
    %4236 = vmatmul.mubr.f32.gmra.mrb[0].mxu0 %v4114
    %v4237 = vpop.f32.mrb[0].mxu0
    %v4238 = vadd.f32 0.0, %v4237
    %v4239 = vpop.f32.mrb[0].mxu0
    %4240 = vmatprep.mubr.f32.mxu0 0.0
    %4241 = vmatmul.mubr.f32.gmra.mrb[0].mxu0 %v4117
    %v4242 = vpop.f32.mrb[0].mxu0
    %v4243 = vadd.f32 0.0, %v4242
    %v4244 = vpop.f32.mrb[0].mxu0
    %4245 = vmatprep.mubr.f32.mxu0 0.0
    %4246 = vmatmul.mubr.f32.gmra.mrb[0].mxu0 %v4120
    %v4247 = vpop.f32.mrb[0].mxu0
    %v4248 = vadd.f32 0.0, %v4247
    %v4249 = vpop.f32.mrb[0].mxu0
    %4250 = vmatprep.mubr.f32.mxu0 0.0
    %4251 = vmatmul.mubr.f32.gmra.mrb[0].mxu0 %v4123
    %v4252 = vpop.f32.mrb[0].mxu0
    %v4253 = vadd.f32 0.0, %v4252
    %v4254 = vpop.f32.mrb[0].mxu0
    %4255 = vmatprep.mubr.f32.mxu0 0.0
    %4256 = vmatmul.mubr.f32.gmra.mrb[0].mxu0 %v4126
    %v4257 = vpop.f32.mrb[0].mxu0
    %v4258 = vadd.f32 0.0, %v4257
    %v4259 = vpop.f32.mrb[0].mxu0
    %4260 = vmatprep.mubr.f32.mxu0 0.0
    %4261 = vmatmul.mubr.f32.gmra.mrb[0].mxu0 %v4129
    %v4262 = vpop.f32.mrb[0].mxu0
    %v4263 = vadd.f32 0.0, %v4262
    %v4264 = vpop.f32.mrb[0].mxu0
    %4265 = vmatprep.mubr.f32.mxu0 0.0
    %4266 = vmatmul.mubr.f32.gmra.mrb[0].mxu0 %v4132
    %v4267 = vpop.f32.mrb[0].mxu0
    %v4268 = vadd.f32 0.0, %v4267
    %v4269 = vpop.f32.mrb[0].mxu0
    %4270 = vmatprep.mubr.f32.mxu0 0.0
    %4271 = vmatmul.mubr.f32.gmra.mrb[0].mxu0 %v4135
    %v4272 = vpop.f32.mrb[0].mxu0
    %v4273 = vadd.f32 0.0, %v4272
    %v4274 = vpop.f32.mrb[0].mxu0
    %4275 = vmatprep.mubr.f32.mxu0 0.0
    %4276 = vmatmul.mubr.f32.gmra.mrb[0].mxu0 %v4138
    %v4277 = vpop.f32.mrb[0].mxu0
    %v4278 = vadd.f32 0.0, %v4277
    %v4279 = vpop.f32.mrb[0].mxu0
    %4280 = vmatprep.mubr.f32.mxu0 0.0
    %4281 = vmatmul.mubr.f32.gmra.mrb[0].mxu0 %v4141
    %v4282 = vpop.f32.mrb[0].mxu0
    %v4283 = vadd.f32 0.0, %v4282
    %v4284 = vpop.f32.mrb[0].mxu0
    %4285 = vmatprep.mubr.f32.mxu0 0.0
    %4286 = vmatmul.mubr.f32.gmra.mrb[0].mxu0 %v4144
    %v4287 = vpop.f32.mrb[0].mxu0
    %v4288 = vadd.f32 0.0, %v4287
    %v4289 = vpop.f32.mrb[0].mxu0
    %4290 = vdwg.mxu0
    %v4291 = vadd.f32 %v4064, %v4213
    %v4292 = vadd.f32 %v4065, %v4218
    %v4293 = vadd.f32 %v4066, %v4223
    %v4294 = vadd.f32 %v4067, %v4228
    %v4295 = vadd.f32 %v4068, %v4233
    %v4296 = vadd.f32 %v4069, %v4238
    %v4297 = vadd.f32 %v4070, %v4243
    %v4298 = vadd.f32 %v4071, %v4248
    %v4299 = vadd.f32 %v4072, %v4253
    %v4300 = vadd.f32 %v4073, %v4258
    %v4301 = vadd.f32 %v4074, %v4263
    %v4302 = vadd.f32 %v4075, %v4268
    %v4303 = vadd.f32 %v4076, %v4273
    %v4304 = vadd.f32 %v4077, %v4278
    %v4305 = vadd.f32 %v4078, %v4283
    %v4306 = vadd.f32 %v4079, %v4288
    %v4307 = vld [vmem:[%s3852 + $0x2] sm:$0xff]
    %v4308 = vld [vmem:[%s3852 + $0x12] sm:$0xff]
    %v4309 = vld [vmem:[%s3852 + $0x22] sm:$0xff]
    %v4310 = vld [vmem:[%s3852 + $0x32] sm:$0xff]
    %v4311 = vld [vmem:[%s3852 + $0x42] sm:$0xff]
    %v4312 = vld [vmem:[%s3852 + $0x52] sm:$0xff]
    %v4313 = vld [vmem:[%s3852 + $0x62] sm:$0xff]
    %v4314 = vld [vmem:[%s3852 + $0x72] sm:$0xff]
    %v4315 = vld [vmem:[%s3852 + $0xa2] sm:$0xff]
    %v4316 = vld [vmem:[%s3852 + $0xb2] sm:$0xff]
    %v4317 = vld [vmem:[%s3852 + $0xc2] sm:$0xff]
    %v4318 = vld [vmem:[%s3852 + $0xd2] sm:$0xff]
    %v4319 = vld [vmem:[%s3852 + $0xe2] sm:$0xff]
    %v4320 = vld [vmem:[%s3852 + $0xf2] sm:$0xff]
    %v4321 = vld [vmem:[%s3852 + $0x102] sm:$0xff]
    %v4322 = vld [vmem:[%s3852 + $0x112] sm:$0xff]
    %s4323 = scalar_lea.vmem [#allocation9], 64
    %v4324 = vld [vmem:[%s4323] sm:$0xff]
    %v4326 = vsel %vm175, %v4307, 0
    %v4329 = vsel %vm175, %v4308, 0
    %v4332 = vsel %vm175, %v4309, 0
    %v4335 = vsel %vm175, %v4310, 0
    %v4338 = vsel %vm175, %v4311, 0
    %v4341 = vsel %vm175, %v4312, 0
    %v4344 = vsel %vm175, %v4313, 0
    %v4347 = vsel %vm175, %v4314, 0
    %v4350 = vsel %vm175, %v4315, 0
    %v4353 = vsel %vm175, %v4316, 0
    %v4356 = vsel %vm175, %v4317, 0
    %v4359 = vsel %vm175, %v4318, 0
    %v4362 = vsel %vm175, %v4319, 0
    %v4365 = vsel %vm175, %v4320, 0
    %v4368 = vsel %vm175, %v4321, 0
    %v4371 = vsel %vm175, %v4322, 0
    %4373 = vmatprep.subr.mxu0 0.0
    %4374 = vmatpush1.msra.mxu0 %v4324
    %4375 = vmatprep.subr.mxu0 0.0
    %4376 = vmatpush1.msra.mxu0 0.0
    %4377 = vmatprep.subr.mxu0 0.0
    %4378 = vmatpush1.msra.mxu0 0.0
    %4379 = vmatprep.subr.mxu0 0.0
    %4380 = vmatpush1.msra.mxu0 0.0
    %4381 = vmatprep.subr.mxu0 0.0
    %4382 = vmatpush1.msra.mxu0 0.0
    %4383 = vmatprep.subr.mxu0 0.0
    %4384 = vmatpush1.msra.mxu0 0.0
    %4385 = vmatprep.subr.mxu0 0.0
    %4386 = vmatpush1.msra.mxu0 0.0
    %4387 = vmatprep.subr.mxu0 0.0
    %4388 = vmatpush1.msra.mxu0 0.0
    %4389 = vmatprep.subr.mxu0 0.0
    %4390 = vmatpush1.msra.mxu0 0.0
    %4391 = vmatprep.subr.mxu0 0.0
    %4392 = vmatpush1.msra.mxu0 0.0
    %4393 = vmatprep.subr.mxu0 0.0
    %4394 = vmatpush1.msra.mxu0 0.0
    %4395 = vmatprep.subr.mxu0 0.0
    %4396 = vmatpush1.msra.mxu0 0.0
    %4397 = vmatprep.subr.mxu0 0.0
    %4398 = vmatpush1.msra.mxu0 0.0
    %4399 = vmatprep.subr.mxu0 0.0
    %4400 = vmatpush1.msra.mxu0 0.0
    %4401 = vmatprep.subr.mxu0 0.0
    %4402 = vmatpush1.msra.mxu0 0.0
    %4403 = vmatprep.subr.mxu0 0.0
    %4404 = vmatpush1.msra.mxu0 0.0
    %4405 = vmatprep.subr.mxu0 0.0
    %4406 = vmatpush1.msra.mxu0 0.0
    %4407 = vmatprep.subr.mxu0 0.0
    %4408 = vmatpush1.msra.mxu0 0.0
    %4409 = vmatprep.subr.mxu0 0.0
    %4410 = vmatpush1.msra.mxu0 0.0
    %4411 = vmatprep.subr.mxu0 0.0
    %4412 = vmatpush1.msra.mxu0 0.0
    %4413 = vmatprep.subr.mxu0 0.0
    %4414 = vmatpush1.msra.mxu0 0.0
    %4415 = vmatprep.subr.mxu0 0.0
    %4416 = vmatpush1.msra.mxu0 0.0
    %4417 = vmatprep.subr.mxu0 0.0
    %4418 = vmatpush1.msra.mxu0 0.0
    %4419 = vmatprep.subr.mxu0 0.0
    %4420 = vmatpush1.msra.mxu0 0.0
    %4421 = vmatprep.subr.mxu0 0.0
    %4422 = vmatpush1.msra.mxu0 0.0
    %4423 = vmatprep.subr.mxu0 0.0
    %4424 = vmatpush1.msra.mxu0 0.0
    %4425 = vmatprep.subr.mxu0 0.0
    %4426 = vmatpush1.msra.mxu0 0.0
    %4427 = vmatprep.subr.mxu0 0.0
    %4428 = vmatpush1.msra.mxu0 0.0
    %4429 = vmatprep.subr.mxu0 0.0
    %4430 = vmatpush1.msra.mxu0 0.0
    %4431 = vmatprep.subr.mxu0 0.0
    %4432 = vmatpush1.msra.mxu0 0.0
    %4433 = vmatprep.subr.mxu0 0.0
    %4434 = vmatpush1.msra.mxu0 0.0
    %4435 = vmatprep.subr.mxu0 0.0
    %4436 = vmatpush1.msra.mxu0 0.0
    %4437 = vmatprep.mubr.f32.mxu0 0.0
    %4438 = vmatmul.mubr.f32.gmra.mrb[0].mxu0 %v4326
    %v4439 = vpop.f32.mrb[0].mxu0
    %v4440 = vadd.f32 0.0, %v4439
    %v4441 = vpop.f32.mrb[0].mxu0
    %4442 = vmatprep.mubr.f32.mxu0 0.0
    %4443 = vmatmul.mubr.f32.gmra.mrb[0].mxu0 %v4329
    %v4444 = vpop.f32.mrb[0].mxu0
    %v4445 = vadd.f32 0.0, %v4444
    %v4446 = vpop.f32.mrb[0].mxu0
    %4447 = vmatprep.mubr.f32.mxu0 0.0
    %4448 = vmatmul.mubr.f32.gmra.mrb[0].mxu0 %v4332
    %v4449 = vpop.f32.mrb[0].mxu0
    %v4450 = vadd.f32 0.0, %v4449
    %v4451 = vpop.f32.mrb[0].mxu0
    %4452 = vmatprep.mubr.f32.mxu0 0.0
    %4453 = vmatmul.mubr.f32.gmra.mrb[0].mxu0 %v4335
    %v4454 = vpop.f32.mrb[0].mxu0
    %v4455 = vadd.f32 0.0, %v4454
    %v4456 = vpop.f32.mrb[0].mxu0
    %4457 = vmatprep.mubr.f32.mxu0 0.0
    %4458 = vmatmul.mubr.f32.gmra.mrb[0].mxu0 %v4338
    %v4459 = vpop.f32.mrb[0].mxu0
    %v4460 = vadd.f32 0.0, %v4459
    %v4461 = vpop.f32.mrb[0].mxu0
    %4462 = vmatprep.mubr.f32.mxu0 0.0
    %4463 = vmatmul.mubr.f32.gmra.mrb[0].mxu0 %v4341
    %v4464 = vpop.f32.mrb[0].mxu0
    %v4465 = vadd.f32 0.0, %v4464
    %v4466 = vpop.f32.mrb[0].mxu0
    %4467 = vmatprep.mubr.f32.mxu0 0.0
    %4468 = vmatmul.mubr.f32.gmra.mrb[0].mxu0 %v4344
    %v4469 = vpop.f32.mrb[0].mxu0
    %v4470 = vadd.f32 0.0, %v4469
    %v4471 = vpop.f32.mrb[0].mxu0
    %4472 = vmatprep.mubr.f32.mxu0 0.0
    %4473 = vmatmul.mubr.f32.gmra.mrb[0].mxu0 %v4347
    %v4474 = vpop.f32.mrb[0].mxu0
    %v4475 = vadd.f32 0.0, %v4474
    %v4476 = vpop.f32.mrb[0].mxu0
    %4477 = vmatprep.mubr.f32.mxu0 0.0
    %4478 = vmatmul.mubr.f32.gmra.mrb[0].mxu0 %v4350
    %v4479 = vpop.f32.mrb[0].mxu0
    %v4480 = vadd.f32 0.0, %v4479
    %v4481 = vpop.f32.mrb[0].mxu0
    %4482 = vmatprep.mubr.f32.mxu0 0.0
    %4483 = vmatmul.mubr.f32.gmra.mrb[0].mxu0 %v4353
    %v4484 = vpop.f32.mrb[0].mxu0
    %v4485 = vadd.f32 0.0, %v4484
    %v4486 = vpop.f32.mrb[0].mxu0
    %4487 = vmatprep.mubr.f32.mxu0 0.0
    %4488 = vmatmul.mubr.f32.gmra.mrb[0].mxu0 %v4356
    %v4489 = vpop.f32.mrb[0].mxu0
    %v4490 = vadd.f32 0.0, %v4489
    %v4491 = vpop.f32.mrb[0].mxu0
    %4492 = vmatprep.mubr.f32.mxu0 0.0
    %4493 = vmatmul.mubr.f32.gmra.mrb[0].mxu0 %v4359
    %v4494 = vpop.f32.mrb[0].mxu0
    %v4495 = vadd.f32 0.0, %v4494
    %v4496 = vpop.f32.mrb[0].mxu0
    %4497 = vmatprep.mubr.f32.mxu0 0.0
    %4498 = vmatmul.mubr.f32.gmra.mrb[0].mxu0 %v4362
    %v4499 = vpop.f32.mrb[0].mxu0
    %v4500 = vadd.f32 0.0, %v4499
    %v4501 = vpop.f32.mrb[0].mxu0
    %4502 = vmatprep.mubr.f32.mxu0 0.0
    %4503 = vmatmul.mubr.f32.gmra.mrb[0].mxu0 %v4365
    %v4504 = vpop.f32.mrb[0].mxu0
    %v4505 = vadd.f32 0.0, %v4504
    %v4506 = vpop.f32.mrb[0].mxu0
    %4507 = vmatprep.mubr.f32.mxu0 0.0
    %4508 = vmatmul.mubr.f32.gmra.mrb[0].mxu0 %v4368
    %v4509 = vpop.f32.mrb[0].mxu0
    %v4510 = vadd.f32 0.0, %v4509
    %v4511 = vpop.f32.mrb[0].mxu0
    %4512 = vmatprep.mubr.f32.mxu0 0.0
    %4513 = vmatmul.mubr.f32.gmra.mrb[0].mxu0 %v4371
    %v4514 = vpop.f32.mrb[0].mxu0
    %v4515 = vadd.f32 0.0, %v4514
    %v4516 = vpop.f32.mrb[0].mxu0
    %4517 = vdwg.mxu0
    %v4518 = vadd.f32 %v4291, %v4440
    %v4519 = vadd.f32 %v4292, %v4445
    %v4520 = vadd.f32 %v4293, %v4450
    %v4521 = vadd.f32 %v4294, %v4455
    %v4522 = vadd.f32 %v4295, %v4460
    %v4523 = vadd.f32 %v4296, %v4465
    %v4524 = vadd.f32 %v4297, %v4470
    %v4525 = vadd.f32 %v4298, %v4475
    %v4526 = vadd.f32 %v4299, %v4480
    %v4527 = vadd.f32 %v4300, %v4485
    %v4528 = vadd.f32 %v4301, %v4490
    %v4529 = vadd.f32 %v4302, %v4495
    %v4530 = vadd.f32 %v4303, %v4500
    %v4531 = vadd.f32 %v4304, %v4505
    %v4532 = vadd.f32 %v4305, %v4510
    %v4533 = vadd.f32 %v4306, %v4515
    %v4534 = vlaneseq
    %v4535 = vshrl.u32 %v4534, 7
    %v4536 = vsub.s32 3, %v4535
    %v4537 = vrot.slane %v174, %v4536
    %v4538 = vadd.f32 %v4518, %v4537
    %v4539 = vadd.f32 %v4519, %v4537
    %v4540 = vadd.f32 %v4520, %v4537
    %v4541 = vadd.f32 %v4521, %v4537
    %v4542 = vadd.f32 %v4522, %v4537
    %v4543 = vadd.f32 %v4523, %v4537
    %v4544 = vadd.f32 %v4524, %v4537
    %v4545 = vadd.f32 %v4525, %v4537
    %v4546 = vadd.f32 %v4526, %v4537
    %v4547 = vadd.f32 %v4527, %v4537
    %v4548 = vadd.f32 %v4528, %v4537
    %v4549 = vadd.f32 %v4529, %v4537
    %v4550 = vadd.f32 %v4530, %v4537
    %v4551 = vadd.f32 %v4531, %v4537
    %v4552 = vadd.f32 %v4532, %v4537
    %v4553 = vadd.f32 %v4533, %v4537
    %v4554 = vadd.f32 %v4538, %v4539
    %v4555 = vadd.f32 %v4554, %v4540
    %v4556 = vadd.f32 %v4555, %v4541
    %v4557 = vadd.f32 %v4556, %v4542
    %v4558 = vadd.f32 %v4557, %v4543
    %v4559 = vadd.f32 %v4558, %v4544
    %v4560 = vadd.f32 %v4559, %v4545
    %v4561 = vadd.f32 %v4560, %v4546
    %v4562 = vadd.f32 %v4561, %v4547
    %v4563 = vadd.f32 %v4562, %v4548
    %v4564 = vadd.f32 %v4563, %v4549
    %v4565 = vadd.f32 %v4564, %v4550
    %v4566 = vadd.f32 %v4565, %v4551
    %v4567 = vadd.f32 %v4566, %v4552
    %v4568 = vadd.f32 %v4567, %v4553
    %v4569 = vrot.slane %v4568, 4
    %v4570 = vadd.f32 %v4568, %v4569
    %v4571 = vrot.slane %v4570, 2
    %v4572 = vadd.f32 %v4570, %v4571
    %v4573 = vrot.slane %v4572, 1
    %v4574 = vadd.f32 %v4572, %v4573
    %v4575 = vmul.f32 %v4574, %v2295
    %v4576 = vsub.f32 %v4538, %v4575
    %v4577 = vsub.f32 %v4539, %v4575
    %v4578 = vsub.f32 %v4540, %v4575
    %v4579 = vsub.f32 %v4541, %v4575
    %v4580 = vsub.f32 %v4542, %v4575
    %v4581 = vsub.f32 %v4543, %v4575
    %v4582 = vsub.f32 %v4544, %v4575
    %v4583 = vsub.f32 %v4545, %v4575
    %v4584 = vsub.f32 %v4546, %v4575
    %v4585 = vsub.f32 %v4547, %v4575
    %v4586 = vsub.f32 %v4548, %v4575
    %v4587 = vsub.f32 %v4549, %v4575
    %v4588 = vsub.f32 %v4550, %v4575
    %v4589 = vsub.f32 %v4551, %v4575
    %v4590 = vsub.f32 %v4552, %v4575
    %v4591 = vsub.f32 %v4553, %v4575
    %v4592 = vmul.f32 %v4576, %v4576
    %v4593 = vmul.f32 %v4577, %v4577
    %v4594 = vmul.f32 %v4578, %v4578
    %v4595 = vmul.f32 %v4579, %v4579
    %v4596 = vmul.f32 %v4580, %v4580
    %v4597 = vmul.f32 %v4581, %v4581
    %v4598 = vmul.f32 %v4582, %v4582
    %v4599 = vmul.f32 %v4583, %v4583
    %v4600 = vmul.f32 %v4584, %v4584
    %v4601 = vmul.f32 %v4585, %v4585
    %v4602 = vmul.f32 %v4586, %v4586
    %v4603 = vmul.f32 %v4587, %v4587
    %v4604 = vmul.f32 %v4588, %v4588
    %v4605 = vmul.f32 %v4589, %v4589
    %v4606 = vmul.f32 %v4590, %v4590
    %v4607 = vmul.f32 %v4591, %v4591
    %v4608 = vadd.f32 %v4592, %v4593
    %v4609 = vadd.f32 %v4608, %v4594
    %v4610 = vadd.f32 %v4609, %v4595
    %v4611 = vadd.f32 %v4610, %v4596
    %v4612 = vadd.f32 %v4611, %v4597
    %v4613 = vadd.f32 %v4612, %v4598
    %v4614 = vadd.f32 %v4613, %v4599
    %v4615 = vadd.f32 %v4614, %v4600
    %v4616 = vadd.f32 %v4615, %v4601
    %v4617 = vadd.f32 %v4616, %v4602
    %v4618 = vadd.f32 %v4617, %v4603
    %v4619 = vadd.f32 %v4618, %v4604
    %v4620 = vadd.f32 %v4619, %v4605
    %v4621 = vadd.f32 %v4620, %v4606
    %v4622 = vadd.f32 %v4621, %v4607
    %v4623 = vrot.slane %v4622, 4
    %v4624 = vadd.f32 %v4622, %v4623
    %v4625 = vrot.slane %v4624, 2
    %v4626 = vadd.f32 %v4624, %v4625
    %v4627 = vrot.slane %v4626, 1
    %v4628 = vadd.f32 %v4626, %v4627
    %v4629 = vmul.f32 %v4628, %v2295
    %v4630 = vadd.f32 %v4629, 1e-05
    %v4631 = vrsqrt.pop %v4630
    %v4632 = vmul.f32 %v4576, %v4631
    %v4633 = vmul.f32 %v4577, %v4631
    %v4634 = vmul.f32 %v4578, %v4631
    %v4635 = vmul.f32 %v4579, %v4631
    %v4636 = vmul.f32 %v4580, %v4631
    %v4637 = vmul.f32 %v4581, %v4631
    %v4638 = vmul.f32 %v4582, %v4631
    %v4639 = vmul.f32 %v4583, %v4631
    %v4640 = vmul.f32 %v4584, %v4631
    %v4641 = vmul.f32 %v4585, %v4631
    %v4642 = vmul.f32 %v4586, %v4631
    %v4643 = vmul.f32 %v4587, %v4631
    %v4644 = vmul.f32 %v4588, %v4631
    %v4645 = vmul.f32 %v4589, %v4631
    %v4646 = vmul.f32 %v4590, %v4631
    %v4647 = vmul.f32 %v4591, %v4631
    %v4648 = vlaneseq
    %v4649 = vshrl.u32 %v4648, 7
    %v4650 = vsub.s32 4, %v4649
    %v4651 = vrot.slane %v174, %v4650
    %v4652 = vmul.f32 %v4632, %v4651
    %v4653 = vmul.f32 %v4633, %v4651
    %v4654 = vmul.f32 %v4634, %v4651
    %v4655 = vmul.f32 %v4635, %v4651
    %v4656 = vmul.f32 %v4636, %v4651
    %v4657 = vmul.f32 %v4637, %v4651
    %v4658 = vmul.f32 %v4638, %v4651
    %v4659 = vmul.f32 %v4639, %v4651
    %v4660 = vmul.f32 %v4640, %v4651
    %v4661 = vmul.f32 %v4641, %v4651
    %v4662 = vmul.f32 %v4642, %v4651
    %v4663 = vmul.f32 %v4643, %v4651
    %v4664 = vmul.f32 %v4644, %v4651
    %v4665 = vmul.f32 %v4645, %v4651
    %v4666 = vmul.f32 %v4646, %v4651
    %v4667 = vmul.f32 %v4647, %v4651
    %v4668 = vlaneseq
    %v4669 = vshrl.u32 %v4668, 7
    %v4670 = vsub.s32 5, %v4669
    %v4671 = vrot.slane %v174, %v4670
    %v4672 = vadd.f32 %v4652, %v4671
    %v4673 = vadd.f32 %v4653, %v4671
    %v4674 = vadd.f32 %v4654, %v4671
    %v4675 = vadd.f32 %v4655, %v4671
    %v4676 = vadd.f32 %v4656, %v4671
    %v4677 = vadd.f32 %v4657, %v4671
    %v4678 = vadd.f32 %v4658, %v4671
    %v4679 = vadd.f32 %v4659, %v4671
    %v4680 = vadd.f32 %v4660, %v4671
    %v4681 = vadd.f32 %v4661, %v4671
    %v4682 = vadd.f32 %v4662, %v4671
    %v4683 = vadd.f32 %v4663, %v4671
    %v4684 = vadd.f32 %v4664, %v4671
    %v4685 = vadd.f32 %v4665, %v4671
    %v4686 = vadd.f32 %v4666, %v4671
    %v4687 = vadd.f32 %v4667, %v4671
    %vm4688 = vcmp.ge.f32.partialorder %v4672, 0.0
    %vm4689 = vcmp.ge.f32.partialorder %v4673, 0.0
    %vm4690 = vcmp.ge.f32.partialorder %v4674, 0.0
    %vm4691 = vcmp.ge.f32.partialorder %v4675, 0.0
    %vm4692 = vcmp.ge.f32.partialorder %v4676, 0.0
    %vm4693 = vcmp.ge.f32.partialorder %v4677, 0.0
    %vm4694 = vcmp.ge.f32.partialorder %v4678, 0.0
    %vm4695 = vcmp.ge.f32.partialorder %v4679, 0.0
    %vm4696 = vcmp.ge.f32.partialorder %v4680, 0.0
    %vm4697 = vcmp.ge.f32.partialorder %v4681, 0.0
    %vm4698 = vcmp.ge.f32.partialorder %v4682, 0.0
    %vm4699 = vcmp.ge.f32.partialorder %v4683, 0.0
    %vm4700 = vcmp.ge.f32.partialorder %v4684, 0.0
    %vm4701 = vcmp.ge.f32.partialorder %v4685, 0.0
    %vm4702 = vcmp.ge.f32.partialorder %v4686, 0.0
    %vm4703 = vcmp.ge.f32.partialorder %v4687, 0.0
    %v4704 = vmul.f32 %v4672, 0.01
    %v4705 = vmul.f32 %v4673, 0.01
    %v4706 = vmul.f32 %v4674, 0.01
    %v4707 = vmul.f32 %v4675, 0.01
    %v4708 = vmul.f32 %v4676, 0.01
    %v4709 = vmul.f32 %v4677, 0.01
    %v4710 = vmul.f32 %v4678, 0.01
    %v4711 = vmul.f32 %v4679, 0.01
    %v4712 = vmul.f32 %v4680, 0.01
    %v4713 = vmul.f32 %v4681, 0.01
    %v4714 = vmul.f32 %v4682, 0.01
    %v4715 = vmul.f32 %v4683, 0.01
    %v4716 = vmul.f32 %v4684, 0.01
    %v4717 = vmul.f32 %v4685, 0.01
    %v4718 = vmul.f32 %v4686, 0.01
    %v4719 = vmul.f32 %v4687, 0.01
    %v4720 = vsel %vm4688, %v4672, %v4704
    %v4721 = vsel %vm4689, %v4673, %v4705
    %v4722 = vsel %vm4690, %v4674, %v4706
    %v4723 = vsel %vm4691, %v4675, %v4707
    %v4724 = vsel %vm4692, %v4676, %v4708
    %v4725 = vsel %vm4693, %v4677, %v4709
    %v4726 = vsel %vm4694, %v4678, %v4710
    %v4727 = vsel %vm4695, %v4679, %v4711
    %v4728 = vsel %vm4696, %v4680, %v4712
    %v4729 = vsel %vm4697, %v4681, %v4713
    %v4730 = vsel %vm4698, %v4682, %v4714
    %v4731 = vsel %vm4699, %v4683, %v4715
    %v4732 = vsel %vm4700, %v4684, %v4716
    %v4733 = vsel %vm4701, %v4685, %v4717
    %v4734 = vsel %vm4702, %v4686, %v4718
    %v4735 = vsel %vm4703, %v4687, %v4719
    %4736 = vst [vmem:[#allocation10] sm:$0xff] %v4720
    %4737 = vst [vmem:[#allocation10 + $0x8] sm:$0xff] %v4721
    %4738 = vst [vmem:[#allocation10 + $0x10] sm:$0xff] %v4722
    %4739 = vst [vmem:[#allocation10 + $0x18] sm:$0xff] %v4723
    %4740 = vst [vmem:[#allocation10 + $0x20] sm:$0xff] %v4724
    %4741 = vst [vmem:[#allocation10 + $0x28] sm:$0xff] %v4725
    %4742 = vst [vmem:[#allocation10 + $0x30] sm:$0xff] %v4726
    %4743 = vst [vmem:[#allocation10 + $0x38] sm:$0xff] %v4727
    %4744 = vst [vmem:[#allocation10 + $0x40] sm:$0xff] %v4728
    %4745 = vst [vmem:[#allocation10 + $0x48] sm:$0xff] %v4729
    %4746 = vst [vmem:[#allocation10 + $0x50] sm:$0xff] %v4730
    %4747 = vst [vmem:[#allocation10 + $0x58] sm:$0xff] %v4731
    %4748 = vst [vmem:[#allocation10 + $0x60] sm:$0xff] %v4732
    %4749 = vst [vmem:[#allocation10 + $0x68] sm:$0xff] %v4733
    %4750 = vst [vmem:[#allocation10 + $0x70] sm:$0xff] %v4734
    %4751 = vst [vmem:[#allocation10 + $0x78] sm:$0xff] %v4735
    // Predicated region
    $region30: #{tpu_custom_call.1} parent=1 // pred_check
      _
    $region31: #{tpu_custom_call.1} parent=1 // pred_check_branch
      %4753 = sbr.rel (0) target = $region33
    $region32: #{tpu_custom_call.1} parent=1 // pred_region
      %s4755 = ssub.s32 2048, 2048
      %4756 = vsyncadd [#allocation6], %s4755
      %s4757 = sshll.u32 [#allocation10], 4
      %s4758 = int_to_ptr.vmem [resolvable:$true] %s4757
      %4763 = dma.vmem_to_hbm [thread:$0]  %s4758, 2048, %s4, [#allocation6], 128, 128, 8
    $region33: #{tpu_custom_call.1} parent=1 // pred_fallthru
      _
    // Predicated region
    $region34: #{tpu_custom_call.1} parent=1 // pred_check
      _
    $region35: #{tpu_custom_call.1} parent=1 // pred_check_branch
      %4765 = sbr.rel (0) target = $region37
    $region36: #{tpu_custom_call.1} parent=1 // pred_region
      %4766 = dma.done [#allocation6], 2048
    $region37: #{tpu_custom_call.1} parent=1 // pred_fallthru
      _
    %4767 = vsyncpa [#allocation5], 1
    %4768 = vsyncpa [#allocation8], 1
    %4769 = vsyncpa [#allocation6], 1

</llo_original>
